<compile_context>
chip_gen: v7x
topology: tpu7x:2x2x1
jax: 0.10.0
libtpu: 0.0.40
codegen_flags: <defaults>
</compile_context>

<pallas_src>
import math

import jax
import jax.numpy as jnp
from jax import lax
from jax.experimental import pallas as pl
from jax.experimental.pallas import tpu as pltpu

_LN_EPS = 1e-5
_INV_SQRT2 = 1.0 / math.sqrt(2.0)
_VMEM_LIMIT = 48 * 1024 * 1024          # leave headroom vs v7x's 64 MiB VMEM
_MM_DTYPE = jnp.bfloat16                # MXU-native matmul operand dtype

_CONTRACT_IN = (((1,), (1,)), ((), ()))  # (rows,in) . (out,in) -> (rows,out)


def _layernorm_f32(x, gamma, beta):
    mean = jnp.mean(x, axis=-1, keepdims=True)
    c = x - mean
    var = jnp.mean(c * c, axis=-1, keepdims=True)
    return c * lax.rsqrt(var + _LN_EPS) * gamma + beta


def _linear(x, w_ref, b_ref):
    """x @ W^T + b with W in nn.Linear (out,in) layout.

    Operands are cast to the weight's storage dtype (bf16) for the MXU;
    accumulation is f32 via preferred_element_type. No transpose materialized.
    """
    y = lax.dot_general(x.astype(w_ref.dtype), w_ref[...], _CONTRACT_IN,
                        preferred_element_type=jnp.float32)
    return y + b_ref[...].astype(jnp.float32)


def _gelu_exact(x):
    # Matches PyTorch nn.GELU() default (erf-based, not tanh-approx).
    return 0.5 * x * (1.0 + lax.erf(x * _INV_SQRT2))


def _softmax_rows(s):
    m = jnp.max(s, axis=-1, keepdims=True)
    e = jnp.exp(s - m)
    # EUP approximate reciprocal instead of a VALU divide.
    return e * pl.reciprocal(jnp.sum(e, axis=-1, keepdims=True), approx=True)


def _mha_heads(q, k, v, num_heads, dh, bias_fn):
    """q: (S,H) pre-scaled f32; k/v: (Skv,H) f32 -> concatenated heads (S,H).

    QKV projections happen outside as full-width matmuls; only the small
    per-head score / PV matmuls live here.
    """
    outs = []
    for h in range(num_heads):
        lo = h * dh
        q_h = q[:, lo:lo + dh].astype(_MM_DTYPE)
        k_h = k[:, lo:lo + dh].astype(_MM_DTYPE)
        v_h = v[:, lo:lo + dh].astype(_MM_DTYPE)
        s = lax.dot_general(q_h, k_h, _CONTRACT_IN,
                            preferred_element_type=jnp.float32)       # (S,Skv)
        p = _softmax_rows(bias_fn(s, h))
        outs.append(jnp.dot(p.astype(_MM_DTYPE), v_h,
                            preferred_element_type=jnp.float32))      # (S,dh)
    return jnp.concatenate(outs, axis=-1)                             # (S,H)


# ---------------------------------------------------------------------------
# Fused DecoderLayer kernel: one grid step == one batch row.
# ---------------------------------------------------------------------------
def _make_decoder_kernel(num_heads, dh, hidden, scale, has_bias):
    H = hidden

    def kernel(x_ref, memk_ref, memv_ref, mask_ref, *refs):
        if has_bias:
            bias_ref, *refs = refs
        (wqkv_s, bqkv_s, wo_s, bo_s, g1, be1,
         wq_m, bq_m, wk_m, bk_m, wv_m, bv_m, wo_m, bo_m, g2, be2,
         w1, b1, w2, b2, g3, be3, o_ref) = refs

        x = x_ref[...].astype(jnp.float32)                            # (S, H)
        mask = mask_ref[...].astype(jnp.float32)                      # (S, S)

        # ---- masked self-attention sublayer (pre-LN, fused QKV, residual) --
        y = _layernorm_f32(x, g1[...], be1[...])
        qkv = _linear(y, wqkv_s, bqkv_s)                              # (S, 3H)
        q = qkv[:, :H] * scale
        k = qkv[:, H:2 * H]
        v = qkv[:, 2 * H:]
        if has_bias:
            bias = bias_ref[...].astype(jnp.float32)                  # (h,S,S)
            add_bias = lambda s, h: s + bias[h] + mask
        else:
            add_bias = lambda s, h: s + mask
        o = _mha_heads(q, k, v, num_heads, dh, add_bias)
        x = x + _linear(o, wo_s, bo_s)

        # ---- memory cross-attention sublayer --------------------------------
        # memk / memv feed linear_k / linear_v directly (no LayerNorm on them).
        y = _layernorm_f32(x, g2[...], be2[...])
        qm = _linear(y, wq_m, bq_m) * scale
        km = _linear(memk_ref[...], wk_m, bk_m)
        vm = _linear(memv_ref[...], wv_m, bv_m)
        o = _mha_heads(qm, km, vm, num_heads, dh, lambda s, h: s)
        x = x + _linear(o, wo_m, bo_m)

        # ---- feed-forward sublayer ------------------------------------------
        y = _layernorm_f32(x, g3[...], be3[...])
        hmid = _gelu_exact(_linear(y, w1, b1))
        x = x + _linear(hmid, w2, b2)

        o_ref[...] = x.astype(o_ref.dtype)

    return kernel


# ---------------------------------------------------------------------------
# Wrapper: builds operands / BlockSpecs and calls the fused kernel.
# ---------------------------------------------------------------------------
def decoder_layer_forward(x, memk, memv, tgt_padding_mask, params, *,
                          num_heads, attn_bias=None):
    B, S, H = x.shape
    Sm = memk.shape[1]
    dh = H // num_heads
    scale = dh ** (-0.5)

    sp, mp, fp = params["self_attn"], params["mem_attn"], params["ffn"]
    F = fp["w1"].shape[0]

    def w(a):                       # MXU operand storage dtype
        return jnp.asarray(a, _MM_DTYPE)

    def row(a):                     # bias / LN vector -> (1, len) f32
        return jnp.asarray(a, jnp.float32).reshape(1, -1)

    # Fused self-attention QKV weight: single (S,H)x(H,3H) lane-dense matmul.
    wqkv_s = w(jnp.concatenate([sp["wq"], sp["wk"], sp["wv"]], axis=0))  # (3H,H)
    bqkv_s = row(jnp.concatenate([sp["bq"], sp["bk"], sp["bv"]]))        # (1,3H)

    # Subsequent/padding mask stays (S,S) (or (B,S,S)); never broadcast to
    # (B, heads, S, S) in HBM.
    mask = jnp.asarray(tgt_padding_mask, jnp.float32).reshape(-1, S, S)
    if mask.shape[0] == 1:
        mask_arr = mask[0]
        mask_spec = pl.BlockSpec((S, S), lambda b: (0, 0))
    else:
        if mask.shape[0] != B:
            raise ValueError("tgt_padding_mask must broadcast over heads")
        mask_arr = mask
        mask_spec = pl.BlockSpec((None, S, S), lambda b: (b, 0, 0))

    has_bias = attn_bias is not None
    extras, extra_specs = [], []
    if has_bias:
        ab = jnp.asarray(attn_bias, jnp.float32).reshape(-1, num_heads, S, S)
        if ab.shape[0] == 1:
            extra_specs.append(pl.BlockSpec((None, num_heads, S, S),
                                            lambda b: (0, 0, 0, 0)))
        else:
            if ab.shape[0] != B:
                raise ValueError("attn_bias leading dim must be 1 or batch")
            extra_specs.append(pl.BlockSpec((None, num_heads, S, S),
                                            lambda b: (b, 0, 0, 0)))
        extras.append(ab)

    # Grid-invariant operands (weights / biases / LN params).
    # TODO(synk): on v7x add pipeline_mode=pl.Buffered(1) here to drop the
    #             double buffer on these blocks (halves resident weight VMEM).
    def const(shape):
        return pl.BlockSpec(shape, lambda b: (0,) * len(shape))

    weight_operands = [
        wqkv_s, bqkv_s, w(sp["wo"]), row(sp["bo"]),
        row(params["self_ln_g"]), row(params["self_ln_b"]),
        w(mp["wq"]), row(mp["bq"]), w(mp["wk"]), row(mp["bk"]),
        w(mp["wv"]), row(mp["bv"]), w(mp["wo"]), row(mp["bo"]),
        row(params["mem_ln_g"]), row(params["mem_ln_b"]),
        w(fp["w1"]), row(fp["b1"]), w(fp["w2"]), row(fp["b2"]),
        row(params["ffn_ln_g"]), row(params["ffn_ln_b"]),
    ]
    weight_specs = [const(op.shape) for op in weight_operands]

    in_specs = ([pl.BlockSpec((None, S, H), lambda b: (b, 0, 0)),
                 pl.BlockSpec((None, Sm, H), lambda b: (b, 0, 0)),
                 pl.BlockSpec((None, Sm, H), lambda b: (b, 0, 0)),
                 mask_spec]
                + extra_specs + weight_specs)
    operands = [x, memk, memv, mask_arr] + extras + weight_operands

    flops = int(B * (2 * S * H * (3 * H) + 2 * S * H * H          # self qkv+out
                     + 4 * num_heads * S * S * dh                 # self scores+pv
                     + 2 * S * H * H + 4 * Sm * H * H             # mem q + k/v
                     + 4 * num_heads * S * Sm * dh + 2 * S * H * H
                     + 4 * S * H * F))                            # ffn
    trans = int(B * (num_heads * S * (S + Sm) + S * F))
    bytes_acc = int(4 * (2 * x.size + memk.size + memv.size
                         + mask_arr.size + sum(int(e.size) for e in extras))
                    + sum(int(o.size) * jnp.dtype(o.dtype).itemsize
                          for o in weight_operands))
    cost = pl.CostEstimate(flops=flops, transcendentals=trans,
                           bytes_accessed=bytes_acc)

    kernel = _make_decoder_kernel(num_heads, dh, H, scale, has_bias)

    return pl.pallas_call(
        kernel,
        out_shape=jax.ShapeDtypeStruct((B, S, H), x.dtype),
        grid_spec=pltpu.PrefetchScalarGridSpec(
            num_scalar_prefetch=0,
            grid=(B,),
            in_specs=in_specs,
            out_specs=pl.BlockSpec((None, S, H), lambda b: (b, 0, 0)),
        ),
        compiler_params=pltpu.CompilerParams(
            dimension_semantics=("parallel",),
            vmem_limit_bytes=_VMEM_LIMIT),
        cost_estimate=cost,
    )(*operands)


# ---------------------------------------------------------------------------
# Pure-JAX f32 reference (mirrors the PyTorch forward in eval mode).
# ---------------------------------------------------------------------------
def _reference_mha(q_in, k_in, v_in, p, num_heads, bias):
    B, Sq, H = q_in.shape
    dh = H // num_heads
    q = q_in @ p["wq"].T + p["bq"]
    k = k_in @ p["wk"].T + p["bk"]
    v = v_in @ p["wv"].T + p["bv"]
    q = q.reshape(B, Sq, num_heads, dh).transpose(0, 2, 1, 3)
    k = k.reshape(B, -1, num_heads, dh).transpose(0, 2, 1, 3)
    v = v.reshape(B, -1, num_heads, dh).transpose(0, 2, 1, 3)
    s = (q * dh ** (-0.5)) @ jnp.swapaxes(k, -1, -2)
    if bias is not None:
        s = s + bias
    a = jax.nn.softmax(s, axis=-1)
    o = (a @ v).transpose(0, 2, 1, 3).reshape(B, Sq, H)
    return o @ p["wo"].T + p["bo"]


def decoder_layer_reference(x, memk, memv, tgt_padding_mask, params, *,
                            num_heads, attn_bias=None):
    def ln(v, g, b):
        m = jnp.mean(v, axis=-1, keepdims=True)
        var = jnp.mean((v - m) ** 2, axis=-1, keepdims=True)
        return (v - m) / jnp.sqrt(var + _LN_EPS) * g + b

    bias = tgt_padding_mask if attn_bias is None else attn_bias + tgt_padding_mask
    y = ln(x, params["self_ln_g"], params["self_ln_b"])
    y = _reference_mha(y, y, y, params["self_attn"], num_heads, bias)
    x = x + y
    y = ln(x, params["mem_ln_g"], params["mem_ln_b"])
    y = _reference_mha(y, memk, memv, params["mem_attn"], num_heads, None)
    x = x + y
    y = ln(x, params["ffn_ln_g"], params["ffn_ln_b"])
    h = y @ params["ffn"]["w1"].T + params["ffn"]["b1"]
    h = _gelu_exact(h)
    y = h @ params["ffn"]["w2"].T + params["ffn"]["b2"]
    return x + y


if __name__ == "__main__":
    # Small but lane-dense shapes (hidden / ffn multiples of 128).
    batch, tgt_len, mem_len = 2, 16, 24
    hidden, ffn_size, num_heads = 128, 256, 4

    root = jax.random.PRNGKey(0)
    keys = iter(jax.random.split(root, 32))

    def linear_params(k, in_dim, out_dim):
        kw, kb = jax.random.split(k)
        bound = 1.0 / math.sqrt(in_dim)
        w = jax.random.uniform(kw, (out_dim, in_dim), jnp.float32, -bound, bound)
        b = jax.random.uniform(kb, (out_dim,), jnp.float32, -bound, bound)
        return w, b

    def mha_params():
        wq, bq = linear_params(next(keys), hidden, hidden)
        wk, bk = linear_params(next(keys), hidden, hidden)
        wv, bv = linear_params(next(keys), hidden, hidden)
        wo, bo = linear_params(next(keys), hidden, hidden)
        return dict(wq=wq, bq=bq, wk=wk, bk=bk, wv=wv, bv=bv, wo=wo, bo=bo)

    def ln_params():
        g = 1.0 + 0.1 * jax.random.normal(next(keys), (hidden,), jnp.float32)
        b = 0.1 * jax.random.normal(next(keys), (hidden,), jnp.float32)
        return g, b

    self_ln_g, self_ln_b = ln_params()
    mem_ln_g, mem_ln_b = ln_params()
    ffn_ln_g, ffn_ln_b = ln_params()
    w1, b1 = linear_params(next(keys), hidden, ffn_size)
    w2, b2 = linear_params(next(keys), ffn_size, hidden)

    params = dict(
        self_attn=mha_params(), mem_attn=mha_params(),
        self_ln_g=self_ln_g, self_ln_b=self_ln_b,
        mem_ln_g=mem_ln_g, mem_ln_b=mem_ln_b,
        ffn_ln_g=ffn_ln_g, ffn_ln_b=ffn_ln_b,
        ffn=dict(w1=w1, b1=b1, w2=w2, b2=b2),
    )

    x = jax.random.normal(next(keys), (batch, tgt_len, hidden), jnp.float32)
    memk = jax.random.normal(next(keys), (batch, mem_len, hidden), jnp.float32)
    memv = jax.random.normal(next(keys), (batch, mem_len, hidden), jnp.float32)

    # Causal ("subsequent") target mask + per-head attention bias.
    causal = jnp.triu(jnp.full((tgt_len, tgt_len), -1e9, jnp.float32), k=1)
    tgt_padding_mask = causal[None, None, :, :]                  # (1, 1, S, S)
    attn_bias = 0.1 * jax.random.normal(
        next(keys), (batch, num_heads, tgt_len, tgt_len), jnp.float32)

    out = decoder_layer_forward(x, memk, memv, tgt_padding_mask, params,
                                num_heads=num_heads, attn_bias=attn_bias)
    out = jax.block_until_ready(out)

    ref = decoder_layer_reference(x, memk, memv, tgt_padding_mask, params,
                                  num_heads=num_heads, attn_bias=attn_bias)
    assert out.shape == (batch, tgt_len, hidden)
    max_err = float(jnp.max(jnp.abs(out - ref)))
    # bf16 MXU operands + approx reciprocal -> looser tolerance than f32.
    assert jnp.allclose(out, ref, atol=7.5e-2, rtol=7.5e-2), f"mismatch: {max_err}"

    print("KERNEL_OK")
</pallas_src>

<mosaic_0001>
module attributes {stable_mosaic.version = 11 : i64} {
  func.func @kernel(%arg0: i32, %arg1: memref<1x16x128xf32, #tpu.memory_space<vmem>>, %arg2: memref<1x24x128xf32, #tpu.memory_space<vmem>>, %arg3: memref<1x24x128xf32, #tpu.memory_space<vmem>>, %arg4: memref<16x16xf32, #tpu.memory_space<vmem>>, %arg5: memref<1x4x16x16xf32, #tpu.memory_space<vmem>>, %arg6: memref<384x128xbf16, #tpu.memory_space<vmem>>, %arg7: memref<1x384xf32, #tpu.memory_space<vmem>>, %arg8: memref<128x128xbf16, #tpu.memory_space<vmem>>, %arg9: memref<1x128xf32, #tpu.memory_space<vmem>>, %arg10: memref<1x128xf32, #tpu.memory_space<vmem>>, %arg11: memref<1x128xf32, #tpu.memory_space<vmem>>, %arg12: memref<128x128xbf16, #tpu.memory_space<vmem>>, %arg13: memref<1x128xf32, #tpu.memory_space<vmem>>, %arg14: memref<128x128xbf16, #tpu.memory_space<vmem>>, %arg15: memref<1x128xf32, #tpu.memory_space<vmem>>, %arg16: memref<128x128xbf16, #tpu.memory_space<vmem>>, %arg17: memref<1x128xf32, #tpu.memory_space<vmem>>, %arg18: memref<128x128xbf16, #tpu.memory_space<vmem>>, %arg19: memref<1x128xf32, #tpu.memory_space<vmem>>, %arg20: memref<1x128xf32, #tpu.memory_space<vmem>>, %arg21: memref<1x128xf32, #tpu.memory_space<vmem>>, %arg22: memref<256x128xbf16, #tpu.memory_space<vmem>>, %arg23: memref<1x256xf32, #tpu.memory_space<vmem>>, %arg24: memref<128x256xbf16, #tpu.memory_space<vmem>>, %arg25: memref<1x128xf32, #tpu.memory_space<vmem>>, %arg26: memref<1x128xf32, #tpu.memory_space<vmem>>, %arg27: memref<1x128xf32, #tpu.memory_space<vmem>>, %arg28: memref<1x16x128xf32, #tpu.memory_space<vmem>>) attributes {dimension_semantics = [#tpu.dimension_semantics<parallel>], iteration_bounds = array<i64: 2>, scalar_prefetch = 0 : i64, scratch_operands = 0 : i64, tpu.core_type = #tpu.core_type<tc>, window_params = [{transform_indices = @transform_0, window_bounds = array<i64: 1, 16, 128>}, {transform_indices = @transform_1, window_bounds = array<i64: 1, 24, 128>}, {transform_indices = @transform_2, window_bounds = array<i64: 1, 24, 128>}, {pipeline_mode = #tpu.pipeline_mode<synchronous>, transform_indices = @transform_3, window_bounds = array<i64: 16, 16>}, {transform_indices = @transform_4, window_bounds = array<i64: 1, 4, 16, 16>}, {pipeline_mode = #tpu.pipeline_mode<synchronous>, transform_indices = @transform_5, window_bounds = array<i64: 384, 128>}, {pipeline_mode = #tpu.pipeline_mode<synchronous>, transform_indices = @transform_6, window_bounds = array<i64: 1, 384>}, {pipeline_mode = #tpu.pipeline_mode<synchronous>, transform_indices = @transform_7, window_bounds = array<i64: 128, 128>}, {pipeline_mode = #tpu.pipeline_mode<synchronous>, transform_indices = @transform_8, window_bounds = array<i64: 1, 128>}, {pipeline_mode = #tpu.pipeline_mode<synchronous>, transform_indices = @transform_9, window_bounds = array<i64: 1, 128>}, {pipeline_mode = #tpu.pipeline_mode<synchronous>, transform_indices = @transform_10, window_bounds = array<i64: 1, 128>}, {pipeline_mode = #tpu.pipeline_mode<synchronous>, transform_indices = @transform_11, window_bounds = array<i64: 128, 128>}, {pipeline_mode = #tpu.pipeline_mode<synchronous>, transform_indices = @transform_12, window_bounds = array<i64: 1, 128>}, {pipeline_mode = #tpu.pipeline_mode<synchronous>, transform_indices = @transform_13, window_bounds = array<i64: 128, 128>}, {pipeline_mode = #tpu.pipeline_mode<synchronous>, transform_indices = @transform_14, window_bounds = array<i64: 1, 128>}, {pipeline_mode = #tpu.pipeline_mode<synchronous>, transform_indices = @transform_15, window_bounds = array<i64: 128, 128>}, {pipeline_mode = #tpu.pipeline_mode<synchronous>, transform_indices = @transform_16, window_bounds = array<i64: 1, 128>}, {pipeline_mode = #tpu.pipeline_mode<synchronous>, transform_indices = @transform_17, window_bounds = array<i64: 128, 128>}, {pipeline_mode = #tpu.pipeline_mode<synchronous>, transform_indices = @transform_18, window_bounds = array<i64: 1, 128>}, {pipeline_mode = #tpu.pipeline_mode<synchronous>, transform_indices = @transform_19, window_bounds = array<i64: 1, 128>}, {pipeline_mode = #tpu.pipeline_mode<synchronous>, transform_indices = @transform_20, window_bounds = array<i64: 1, 128>}, {pipeline_mode = #tpu.pipeline_mode<synchronous>, transform_indices = @transform_21, window_bounds = array<i64: 256, 128>}, {pipeline_mode = #tpu.pipeline_mode<synchronous>, transform_indices = @transform_22, window_bounds = array<i64: 1, 256>}, {pipeline_mode = #tpu.pipeline_mode<synchronous>, transform_indices = @transform_23, window_bounds = array<i64: 128, 256>}, {pipeline_mode = #tpu.pipeline_mode<synchronous>, transform_indices = @transform_24, window_bounds = array<i64: 1, 128>}, {pipeline_mode = #tpu.pipeline_mode<synchronous>, transform_indices = @transform_25, window_bounds = array<i64: 1, 128>}, {pipeline_mode = #tpu.pipeline_mode<synchronous>, transform_indices = @transform_26, window_bounds = array<i64: 1, 128>}, {transform_indices = @transform_27, window_bounds = array<i64: 1, 16, 128>}]} {
    %c0 = arith.constant 0 : index
    %c0_0 = arith.constant 0 : index
    %c0_1 = arith.constant 0 : index
    %0 = vector.load %arg1[%c0, %c0_0, %c0_1] : memref<1x16x128xf32, #tpu.memory_space<vmem>>, vector<1x16x128xf32>
    %1 = vector.shape_cast %0 : vector<1x16x128xf32> to vector<16x128xf32>
    %c0_2 = arith.constant 0 : index
    %c0_3 = arith.constant 0 : index
    %2 = vector.load %arg4[%c0_2, %c0_3] : memref<16x16xf32, #tpu.memory_space<vmem>>, vector<16x16xf32>
    %c0_4 = arith.constant 0 : index
    %c0_5 = arith.constant 0 : index
    %3 = vector.load %arg10[%c0_4, %c0_5] : memref<1x128xf32, #tpu.memory_space<vmem>>, vector<1x128xf32>
    %c0_6 = arith.constant 0 : index
    %c0_7 = arith.constant 0 : index
    %4 = vector.load %arg11[%c0_6, %c0_7] : memref<1x128xf32, #tpu.memory_space<vmem>>, vector<1x128xf32>
    %cst = arith.constant dense<0.000000e+00> : vector<16xf32>
    %5 = vector.multi_reduction <add>, %1, %cst [1] : vector<16x128xf32> to vector<16xf32>
    %6 = vector.shape_cast %5 : vector<16xf32> to vector<16x1xf32>
    %cst_8 = arith.constant 1.280000e+02 : f32
    %7 = vector.broadcast %cst_8 : f32 to vector<16x1xf32>
    %8 = arith.divf %6, %7 : vector<16x1xf32>
    %9 = vector.broadcast %8 : vector<16x1xf32> to vector<16x128xf32>
    %10 = arith.subf %1, %9 : vector<16x128xf32>
    %11 = arith.mulf %10, %10 : vector<16x128xf32>
    %cst_9 = arith.constant dense<0.000000e+00> : vector<16xf32>
    %12 = vector.multi_reduction <add>, %11, %cst_9 [1] : vector<16x128xf32> to vector<16xf32>
    %13 = vector.shape_cast %12 : vector<16xf32> to vector<16x1xf32>
    %cst_10 = arith.constant 1.280000e+02 : f32
    %14 = vector.broadcast %cst_10 : f32 to vector<16x1xf32>
    %15 = arith.divf %13, %14 : vector<16x1xf32>
    %cst_11 = arith.constant 9.99999974E-6 : f32
    %16 = vector.broadcast %cst_11 : f32 to vector<16x1xf32>
    %17 = arith.addf %15, %16 : vector<16x1xf32>
    %18 = math.rsqrt %17 : vector<16x1xf32>
    %19 = vector.broadcast %18 : vector<16x1xf32> to vector<16x128xf32>
    %20 = arith.mulf %10, %19 : vector<16x128xf32>
    %21 = vector.broadcast %3 : vector<1x128xf32> to vector<16x128xf32>
    %22 = arith.mulf %20, %21 : vector<16x128xf32>
    %23 = vector.broadcast %4 : vector<1x128xf32> to vector<16x128xf32>
    %24 = arith.addf %22, %23 : vector<16x128xf32>
    %25 = arith.truncf %24 : vector<16x128xf32> to vector<16x128xbf16>
    %c0_12 = arith.constant 0 : index
    %c0_13 = arith.constant 0 : index
    %26 = vector.load %arg6[%c0_12, %c0_13] : memref<384x128xbf16, #tpu.memory_space<vmem>>, vector<384x128xbf16>
    %cst_14 = arith.constant dense<0.000000e+00> : vector<16x384xf32>
    %27 = tpu.matmul %25, %26, %cst_14 {dimension_numbers = #tpu.dot_dimension_numbers<[1], [1], [0], [0], [0, 0, 1, 0], [], []>} : vector<16x128xbf16>, vector<384x128xbf16>, vector<16x384xf32> -> vector<16x384xf32>
    %c0_15 = arith.constant 0 : index
    %c0_16 = arith.constant 0 : index
    %28 = vector.load %arg7[%c0_15, %c0_16] : memref<1x384xf32, #tpu.memory_space<vmem>>, vector<1x384xf32>
    %29 = vector.broadcast %28 : vector<1x384xf32> to vector<16x384xf32>
    %30 = arith.addf %27, %29 : vector<16x384xf32>
    %31 = vector.extract_strided_slice %30 {offsets = [0, 0], sizes = [16, 128], strides = [1, 1]} : vector<16x384xf32> to vector<16x128xf32>
    %cst_17 = arith.constant 0.176776692 : f32
    %32 = vector.broadcast %cst_17 : f32 to vector<16x128xf32>
    %33 = arith.mulf %31, %32 : vector<16x128xf32>
    %34 = vector.extract_strided_slice %30 {offsets = [0, 128], sizes = [16, 128], strides = [1, 1]} : vector<16x384xf32> to vector<16x128xf32>
    %35 = vector.extract_strided_slice %30 {offsets = [0, 256], sizes = [16, 128], strides = [1, 1]} : vector<16x384xf32> to vector<16x128xf32>
    %c0_18 = arith.constant 0 : index
    %c0_19 = arith.constant 0 : index
    %c0_20 = arith.constant 0 : index
    %c0_21 = arith.constant 0 : index
    %36 = vector.load %arg5[%c0_18, %c0_19, %c0_20, %c0_21] : memref<1x4x16x16xf32, #tpu.memory_space<vmem>>, vector<1x4x16x16xf32>
    %37 = vector.shape_cast %36 : vector<1x4x16x16xf32> to vector<4x16x16xf32>
    %38 = vector.extract_strided_slice %33 {offsets = [0, 0], sizes = [16, 32], strides = [1, 1]} : vector<16x128xf32> to vector<16x32xf32>
    %39 = arith.truncf %38 : vector<16x32xf32> to vector<16x32xbf16>
    %40 = vector.extract_strided_slice %34 {offsets = [0, 0], sizes = [16, 32], strides = [1, 1]} : vector<16x128xf32> to vector<16x32xf32>
    %41 = arith.truncf %40 : vector<16x32xf32> to vector<16x32xbf16>
    %42 = vector.extract_strided_slice %35 {offsets = [0, 0], sizes = [16, 32], strides = [1, 1]} : vector<16x128xf32> to vector<16x32xf32>
    %43 = arith.truncf %42 : vector<16x32xf32> to vector<16x32xbf16>
    %cst_22 = arith.constant dense<0.000000e+00> : vector<16x16xf32>
    %44 = tpu.matmul %39, %41, %cst_22 {dimension_numbers = #tpu.dot_dimension_numbers<[1], [1], [0], [0], [0, 0, 1, 0], [], []>} : vector<16x32xbf16>, vector<16x32xbf16>, vector<16x16xf32> -> vector<16x16xf32>
    %45 = vector.extract_strided_slice %37 {offsets = [0, 0, 0], sizes = [1, 16, 16], strides = [1, 1, 1]} : vector<4x16x16xf32> to vector<1x16x16xf32>
    %46 = vector.shape_cast %45 : vector<1x16x16xf32> to vector<16x16xf32>
    %47 = arith.addf %44, %46 : vector<16x16xf32>
    %48 = arith.addf %47, %2 : vector<16x16xf32>
    %cst_23 = arith.constant dense<0xFF800000> : vector<16xf32>
    %49 = vector.multi_reduction <maximumf>, %48, %cst_23 [1] : vector<16x16xf32> to vector<16xf32>
    %50 = vector.shape_cast %49 : vector<16xf32> to vector<16x1xf32>
    %51 = vector.broadcast %50 : vector<16x1xf32> to vector<16x16xf32>
    %52 = arith.subf %48, %51 : vector<16x16xf32>
    %53 = math.exp %52 : vector<16x16xf32>
    %cst_24 = arith.constant dense<0.000000e+00> : vector<16xf32>
    %54 = vector.multi_reduction <add>, %53, %cst_24 [1] : vector<16x16xf32> to vector<16xf32>
    %55 = vector.shape_cast %54 : vector<16xf32> to vector<16x1xf32>
    %56 = tpu.reciprocal %55 {approx = true} : vector<16x1xf32> -> vector<16x1xf32>
    %57 = vector.broadcast %56 : vector<16x1xf32> to vector<16x16xf32>
    %58 = arith.mulf %53, %57 : vector<16x16xf32>
    %59 = arith.truncf %58 : vector<16x16xf32> to vector<16x16xbf16>
    %cst_25 = arith.constant dense<0.000000e+00> : vector<16x32xf32>
    %60 = tpu.matmul %59, %43, %cst_25 {dimension_numbers = #tpu.dot_dimension_numbers<[1], [0], [0], [1], [0, 0, 1, 1], [], []>} : vector<16x16xbf16>, vector<16x32xbf16>, vector<16x32xf32> -> vector<16x32xf32>
    %61 = vector.extract_strided_slice %33 {offsets = [0, 32], sizes = [16, 32], strides = [1, 1]} : vector<16x128xf32> to vector<16x32xf32>
    %62 = arith.truncf %61 : vector<16x32xf32> to vector<16x32xbf16>
    %63 = vector.extract_strided_slice %34 {offsets = [0, 32], sizes = [16, 32], strides = [1, 1]} : vector<16x128xf32> to vector<16x32xf32>
    %64 = arith.truncf %63 : vector<16x32xf32> to vector<16x32xbf16>
    %65 = vector.extract_strided_slice %35 {offsets = [0, 32], sizes = [16, 32], strides = [1, 1]} : vector<16x128xf32> to vector<16x32xf32>
    %66 = arith.truncf %65 : vector<16x32xf32> to vector<16x32xbf16>
    %cst_26 = arith.constant dense<0.000000e+00> : vector<16x16xf32>
    %67 = tpu.matmul %62, %64, %cst_26 {dimension_numbers = #tpu.dot_dimension_numbers<[1], [1], [0], [0], [0, 0, 1, 0], [], []>} : vector<16x32xbf16>, vector<16x32xbf16>, vector<16x16xf32> -> vector<16x16xf32>
    %68 = vector.extract_strided_slice %37 {offsets = [1, 0, 0], sizes = [1, 16, 16], strides = [1, 1, 1]} : vector<4x16x16xf32> to vector<1x16x16xf32>
    %69 = vector.shape_cast %68 : vector<1x16x16xf32> to vector<16x16xf32>
    %70 = arith.addf %67, %69 : vector<16x16xf32>
    %71 = arith.addf %70, %2 : vector<16x16xf32>
    %cst_27 = arith.constant dense<0xFF800000> : vector<16xf32>
    %72 = vector.multi_reduction <maximumf>, %71, %cst_27 [1] : vector<16x16xf32> to vector<16xf32>
    %73 = vector.shape_cast %72 : vector<16xf32> to vector<16x1xf32>
    %74 = vector.broadcast %73 : vector<16x1xf32> to vector<16x16xf32>
    %75 = arith.subf %71, %74 : vector<16x16xf32>
    %76 = math.exp %75 : vector<16x16xf32>
    %cst_28 = arith.constant dense<0.000000e+00> : vector<16xf32>
    %77 = vector.multi_reduction <add>, %76, %cst_28 [1] : vector<16x16xf32> to vector<16xf32>
    %78 = vector.shape_cast %77 : vector<16xf32> to vector<16x1xf32>
    %79 = tpu.reciprocal %78 {approx = true} : vector<16x1xf32> -> vector<16x1xf32>
    %80 = vector.broadcast %79 : vector<16x1xf32> to vector<16x16xf32>
    %81 = arith.mulf %76, %80 : vector<16x16xf32>
    %82 = arith.truncf %81 : vector<16x16xf32> to vector<16x16xbf16>
    %cst_29 = arith.constant dense<0.000000e+00> : vector<16x32xf32>
    %83 = tpu.matmul %82, %66, %cst_29 {dimension_numbers = #tpu.dot_dimension_numbers<[1], [0], [0], [1], [0, 0, 1, 1], [], []>} : vector<16x16xbf16>, vector<16x32xbf16>, vector<16x32xf32> -> vector<16x32xf32>
    %84 = vector.extract_strided_slice %33 {offsets = [0, 64], sizes = [16, 32], strides = [1, 1]} : vector<16x128xf32> to vector<16x32xf32>
    %85 = arith.truncf %84 : vector<16x32xf32> to vector<16x32xbf16>
    %86 = vector.extract_strided_slice %34 {offsets = [0, 64], sizes = [16, 32], strides = [1, 1]} : vector<16x128xf32> to vector<16x32xf32>
    %87 = arith.truncf %86 : vector<16x32xf32> to vector<16x32xbf16>
    %88 = vector.extract_strided_slice %35 {offsets = [0, 64], sizes = [16, 32], strides = [1, 1]} : vector<16x128xf32> to vector<16x32xf32>
    %89 = arith.truncf %88 : vector<16x32xf32> to vector<16x32xbf16>
    %cst_30 = arith.constant dense<0.000000e+00> : vector<16x16xf32>
    %90 = tpu.matmul %85, %87, %cst_30 {dimension_numbers = #tpu.dot_dimension_numbers<[1], [1], [0], [0], [0, 0, 1, 0], [], []>} : vector<16x32xbf16>, vector<16x32xbf16>, vector<16x16xf32> -> vector<16x16xf32>
    %91 = vector.extract_strided_slice %37 {offsets = [2, 0, 0], sizes = [1, 16, 16], strides = [1, 1, 1]} : vector<4x16x16xf32> to vector<1x16x16xf32>
    %92 = vector.shape_cast %91 : vector<1x16x16xf32> to vector<16x16xf32>
    %93 = arith.addf %90, %92 : vector<16x16xf32>
    %94 = arith.addf %93, %2 : vector<16x16xf32>
    %cst_31 = arith.constant dense<0xFF800000> : vector<16xf32>
    %95 = vector.multi_reduction <maximumf>, %94, %cst_31 [1] : vector<16x16xf32> to vector<16xf32>
    %96 = vector.shape_cast %95 : vector<16xf32> to vector<16x1xf32>
    %97 = vector.broadcast %96 : vector<16x1xf32> to vector<16x16xf32>
    %98 = arith.subf %94, %97 : vector<16x16xf32>
    %99 = math.exp %98 : vector<16x16xf32>
    %cst_32 = arith.constant dense<0.000000e+00> : vector<16xf32>
    %100 = vector.multi_reduction <add>, %99, %cst_32 [1] : vector<16x16xf32> to vector<16xf32>
    %101 = vector.shape_cast %100 : vector<16xf32> to vector<16x1xf32>
    %102 = tpu.reciprocal %101 {approx = true} : vector<16x1xf32> -> vector<16x1xf32>
    %103 = vector.broadcast %102 : vector<16x1xf32> to vector<16x16xf32>
    %104 = arith.mulf %99, %103 : vector<16x16xf32>
    %105 = arith.truncf %104 : vector<16x16xf32> to vector<16x16xbf16>
    %cst_33 = arith.constant dense<0.000000e+00> : vector<16x32xf32>
    %106 = tpu.matmul %105, %89, %cst_33 {dimension_numbers = #tpu.dot_dimension_numbers<[1], [0], [0], [1], [0, 0, 1, 1], [], []>} : vector<16x16xbf16>, vector<16x32xbf16>, vector<16x32xf32> -> vector<16x32xf32>
    %107 = vector.extract_strided_slice %33 {offsets = [0, 96], sizes = [16, 32], strides = [1, 1]} : vector<16x128xf32> to vector<16x32xf32>
    %108 = arith.truncf %107 : vector<16x32xf32> to vector<16x32xbf16>
    %109 = vector.extract_strided_slice %34 {offsets = [0, 96], sizes = [16, 32], strides = [1, 1]} : vector<16x128xf32> to vector<16x32xf32>
    %110 = arith.truncf %109 : vector<16x32xf32> to vector<16x32xbf16>
    %111 = vector.extract_strided_slice %35 {offsets = [0, 96], sizes = [16, 32], strides = [1, 1]} : vector<16x128xf32> to vector<16x32xf32>
    %112 = arith.truncf %111 : vector<16x32xf32> to vector<16x32xbf16>
    %cst_34 = arith.constant dense<0.000000e+00> : vector<16x16xf32>
    %113 = tpu.matmul %108, %110, %cst_34 {dimension_numbers = #tpu.dot_dimension_numbers<[1], [1], [0], [0], [0, 0, 1, 0], [], []>} : vector<16x32xbf16>, vector<16x32xbf16>, vector<16x16xf32> -> vector<16x16xf32>
    %114 = vector.extract_strided_slice %37 {offsets = [3, 0, 0], sizes = [1, 16, 16], strides = [1, 1, 1]} : vector<4x16x16xf32> to vector<1x16x16xf32>
    %115 = vector.shape_cast %114 : vector<1x16x16xf32> to vector<16x16xf32>
    %116 = arith.addf %113, %115 : vector<16x16xf32>
    %117 = arith.addf %116, %2 : vector<16x16xf32>
    %cst_35 = arith.constant dense<0xFF800000> : vector<16xf32>
    %118 = vector.multi_reduction <maximumf>, %117, %cst_35 [1] : vector<16x16xf32> to vector<16xf32>
    %119 = vector.shape_cast %118 : vector<16xf32> to vector<16x1xf32>
    %120 = vector.broadcast %119 : vector<16x1xf32> to vector<16x16xf32>
    %121 = arith.subf %117, %120 : vector<16x16xf32>
    %122 = math.exp %121 : vector<16x16xf32>
    %cst_36 = arith.constant dense<0.000000e+00> : vector<16xf32>
    %123 = vector.multi_reduction <add>, %122, %cst_36 [1] : vector<16x16xf32> to vector<16xf32>
    %124 = vector.shape_cast %123 : vector<16xf32> to vector<16x1xf32>
    %125 = tpu.reciprocal %124 {approx = true} : vector<16x1xf32> -> vector<16x1xf32>
    %126 = vector.broadcast %125 : vector<16x1xf32> to vector<16x16xf32>
    %127 = arith.mulf %122, %126 : vector<16x16xf32>
    %128 = arith.truncf %127 : vector<16x16xf32> to vector<16x16xbf16>
    %cst_37 = arith.constant dense<0.000000e+00> : vector<16x32xf32>
    %129 = tpu.matmul %128, %112, %cst_37 {dimension_numbers = #tpu.dot_dimension_numbers<[1], [0], [0], [1], [0, 0, 1, 1], [], []>} : vector<16x16xbf16>, vector<16x32xbf16>, vector<16x32xf32> -> vector<16x32xf32>
    %130 = tpu.concatenate %60, %83, %106, %129 in 1 : vector<16x32xf32>, vector<16x32xf32>, vector<16x32xf32>, vector<16x32xf32> -> vector<16x128xf32>
    %131 = arith.truncf %130 : vector<16x128xf32> to vector<16x128xbf16>
    %c0_38 = arith.constant 0 : index
    %c0_39 = arith.constant 0 : index
    %132 = vector.load %arg8[%c0_38, %c0_39] : memref<128x128xbf16, #tpu.memory_space<vmem>>, vector<128x128xbf16>
    %cst_40 = arith.constant dense<0.000000e+00> : vector<16x128xf32>
    %133 = tpu.matmul %131, %132, %cst_40 {dimension_numbers = #tpu.dot_dimension_numbers<[1], [1], [0], [0], [0, 0, 1, 0], [], []>} : vector<16x128xbf16>, vector<128x128xbf16>, vector<16x128xf32> -> vector<16x128xf32>
    %c0_41 = arith.constant 0 : index
    %c0_42 = arith.constant 0 : index
    %134 = vector.load %arg9[%c0_41, %c0_42] : memref<1x128xf32, #tpu.memory_space<vmem>>, vector<1x128xf32>
    %135 = vector.broadcast %134 : vector<1x128xf32> to vector<16x128xf32>
    %136 = arith.addf %133, %135 : vector<16x128xf32>
    %137 = arith.addf %1, %136 : vector<16x128xf32>
    %c0_43 = arith.constant 0 : index
    %c0_44 = arith.constant 0 : index
    %138 = vector.load %arg20[%c0_43, %c0_44] : memref<1x128xf32, #tpu.memory_space<vmem>>, vector<1x128xf32>
    %c0_45 = arith.constant 0 : index
    %c0_46 = arith.constant 0 : index
    %139 = vector.load %arg21[%c0_45, %c0_46] : memref<1x128xf32, #tpu.memory_space<vmem>>, vector<1x128xf32>
    %cst_47 = arith.constant dense<0.000000e+00> : vector<16xf32>
    %140 = vector.multi_reduction <add>, %137, %cst_47 [1] : vector<16x128xf32> to vector<16xf32>
    %141 = vector.shape_cast %140 : vector<16xf32> to vector<16x1xf32>
    %cst_48 = arith.constant 1.280000e+02 : f32
    %142 = vector.broadcast %cst_48 : f32 to vector<16x1xf32>
    %143 = arith.divf %141, %142 : vector<16x1xf32>
    %144 = vector.broadcast %143 : vector<16x1xf32> to vector<16x128xf32>
    %145 = arith.subf %137, %144 : vector<16x128xf32>
    %146 = arith.mulf %145, %145 : vector<16x128xf32>
    %cst_49 = arith.constant dense<0.000000e+00> : vector<16xf32>
    %147 = vector.multi_reduction <add>, %146, %cst_49 [1] : vector<16x128xf32> to vector<16xf32>
    %148 = vector.shape_cast %147 : vector<16xf32> to vector<16x1xf32>
    %cst_50 = arith.constant 1.280000e+02 : f32
    %149 = vector.broadcast %cst_50 : f32 to vector<16x1xf32>
    %150 = arith.divf %148, %149 : vector<16x1xf32>
    %cst_51 = arith.constant 9.99999974E-6 : f32
    %151 = vector.broadcast %cst_51 : f32 to vector<16x1xf32>
    %152 = arith.addf %150, %151 : vector<16x1xf32>
    %153 = math.rsqrt %152 : vector<16x1xf32>
    %154 = vector.broadcast %153 : vector<16x1xf32> to vector<16x128xf32>
    %155 = arith.mulf %145, %154 : vector<16x128xf32>
    %156 = vector.broadcast %138 : vector<1x128xf32> to vector<16x128xf32>
    %157 = arith.mulf %155, %156 : vector<16x128xf32>
    %158 = vector.broadcast %139 : vector<1x128xf32> to vector<16x128xf32>
    %159 = arith.addf %157, %158 : vector<16x128xf32>
    %160 = arith.truncf %159 : vector<16x128xf32> to vector<16x128xbf16>
    %c0_52 = arith.constant 0 : index
    %c0_53 = arith.constant 0 : index
    %161 = vector.load %arg12[%c0_52, %c0_53] : memref<128x128xbf16, #tpu.memory_space<vmem>>, vector<128x128xbf16>
    %cst_54 = arith.constant dense<0.000000e+00> : vector<16x128xf32>
    %162 = tpu.matmul %160, %161, %cst_54 {dimension_numbers = #tpu.dot_dimension_numbers<[1], [1], [0], [0], [0, 0, 1, 0], [], []>} : vector<16x128xbf16>, vector<128x128xbf16>, vector<16x128xf32> -> vector<16x128xf32>
    %c0_55 = arith.constant 0 : index
    %c0_56 = arith.constant 0 : index
    %163 = vector.load %arg13[%c0_55, %c0_56] : memref<1x128xf32, #tpu.memory_space<vmem>>, vector<1x128xf32>
    %164 = vector.broadcast %163 : vector<1x128xf32> to vector<16x128xf32>
    %165 = arith.addf %162, %164 : vector<16x128xf32>
    %cst_57 = arith.constant 0.176776692 : f32
    %166 = vector.broadcast %cst_57 : f32 to vector<16x128xf32>
    %167 = arith.mulf %165, %166 : vector<16x128xf32>
    %c0_58 = arith.constant 0 : index
    %c0_59 = arith.constant 0 : index
    %c0_60 = arith.constant 0 : index
    %168 = vector.load %arg2[%c0_58, %c0_59, %c0_60] : memref<1x24x128xf32, #tpu.memory_space<vmem>>, vector<1x24x128xf32>
    %169 = vector.shape_cast %168 : vector<1x24x128xf32> to vector<24x128xf32>
    %170 = arith.truncf %169 : vector<24x128xf32> to vector<24x128xbf16>
    %c0_61 = arith.constant 0 : index
    %c0_62 = arith.constant 0 : index
    %171 = vector.load %arg14[%c0_61, %c0_62] : memref<128x128xbf16, #tpu.memory_space<vmem>>, vector<128x128xbf16>
    %cst_63 = arith.constant dense<0.000000e+00> : vector<24x128xf32>
    %172 = tpu.matmul %170, %171, %cst_63 {dimension_numbers = #tpu.dot_dimension_numbers<[1], [1], [0], [0], [0, 0, 1, 0], [], []>} : vector<24x128xbf16>, vector<128x128xbf16>, vector<24x128xf32> -> vector<24x128xf32>
    %c0_64 = arith.constant 0 : index
    %c0_65 = arith.constant 0 : index
    %173 = vector.load %arg15[%c0_64, %c0_65] : memref<1x128xf32, #tpu.memory_space<vmem>>, vector<1x128xf32>
    %174 = vector.broadcast %173 : vector<1x128xf32> to vector<24x128xf32>
    %175 = arith.addf %172, %174 : vector<24x128xf32>
    %c0_66 = arith.constant 0 : index
    %c0_67 = arith.constant 0 : index
    %c0_68 = arith.constant 0 : index
    %176 = vector.load %arg3[%c0_66, %c0_67, %c0_68] : memref<1x24x128xf32, #tpu.memory_space<vmem>>, vector<1x24x128xf32>
    %177 = vector.shape_cast %176 : vector<1x24x128xf32> to vector<24x128xf32>
    %178 = arith.truncf %177 : vector<24x128xf32> to vector<24x128xbf16>
    %c0_69 = arith.constant 0 : index
    %c0_70 = arith.constant 0 : index
    %179 = vector.load %arg16[%c0_69, %c0_70] : memref<128x128xbf16, #tpu.memory_space<vmem>>, vector<128x128xbf16>
    %cst_71 = arith.constant dense<0.000000e+00> : vector<24x128xf32>
    %180 = tpu.matmul %178, %179, %cst_71 {dimension_numbers = #tpu.dot_dimension_numbers<[1], [1], [0], [0], [0, 0, 1, 0], [], []>} : vector<24x128xbf16>, vector<128x128xbf16>, vector<24x128xf32> -> vector<24x128xf32>
    %c0_72 = arith.constant 0 : index
    %c0_73 = arith.constant 0 : index
    %181 = vector.load %arg17[%c0_72, %c0_73] : memref<1x128xf32, #tpu.memory_space<vmem>>, vector<1x128xf32>
    %182 = vector.broadcast %181 : vector<1x128xf32> to vector<24x128xf32>
    %183 = arith.addf %180, %182 : vector<24x128xf32>
    %184 = vector.extract_strided_slice %167 {offsets = [0, 0], sizes = [16, 32], strides = [1, 1]} : vector<16x128xf32> to vector<16x32xf32>
    %185 = arith.truncf %184 : vector<16x32xf32> to vector<16x32xbf16>
    %186 = vector.extract_strided_slice %175 {offsets = [0, 0], sizes = [24, 32], strides = [1, 1]} : vector<24x128xf32> to vector<24x32xf32>
    %187 = arith.truncf %186 : vector<24x32xf32> to vector<24x32xbf16>
    %188 = vector.extract_strided_slice %183 {offsets = [0, 0], sizes = [24, 32], strides = [1, 1]} : vector<24x128xf32> to vector<24x32xf32>
    %189 = arith.truncf %188 : vector<24x32xf32> to vector<24x32xbf16>
    %cst_74 = arith.constant dense<0.000000e+00> : vector<16x24xf32>
    %190 = tpu.matmul %185, %187, %cst_74 {dimension_numbers = #tpu.dot_dimension_numbers<[1], [1], [0], [0], [0, 0, 1, 0], [], []>} : vector<16x32xbf16>, vector<24x32xbf16>, vector<16x24xf32> -> vector<16x24xf32>
    %cst_75 = arith.constant dense<0xFF800000> : vector<16xf32>
    %191 = vector.multi_reduction <maximumf>, %190, %cst_75 [1] : vector<16x24xf32> to vector<16xf32>
    %192 = vector.shape_cast %191 : vector<16xf32> to vector<16x1xf32>
    %193 = vector.broadcast %192 : vector<16x1xf32> to vector<16x24xf32>
    %194 = arith.subf %190, %193 : vector<16x24xf32>
    %195 = math.exp %194 : vector<16x24xf32>
    %cst_76 = arith.constant dense<0.000000e+00> : vector<16xf32>
    %196 = vector.multi_reduction <add>, %195, %cst_76 [1] : vector<16x24xf32> to vector<16xf32>
    %197 = vector.shape_cast %196 : vector<16xf32> to vector<16x1xf32>
    %198 = tpu.reciprocal %197 {approx = true} : vector<16x1xf32> -> vector<16x1xf32>
    %199 = vector.broadcast %198 : vector<16x1xf32> to vector<16x24xf32>
    %200 = arith.mulf %195, %199 : vector<16x24xf32>
    %201 = arith.truncf %200 : vector<16x24xf32> to vector<16x24xbf16>
    %cst_77 = arith.constant dense<0.000000e+00> : vector<16x32xf32>
    %202 = tpu.matmul %201, %189, %cst_77 {dimension_numbers = #tpu.dot_dimension_numbers<[1], [0], [0], [1], [0, 0, 1, 1], [], []>} : vector<16x24xbf16>, vector<24x32xbf16>, vector<16x32xf32> -> vector<16x32xf32>
    %203 = vector.extract_strided_slice %167 {offsets = [0, 32], sizes = [16, 32], strides = [1, 1]} : vector<16x128xf32> to vector<16x32xf32>
    %204 = arith.truncf %203 : vector<16x32xf32> to vector<16x32xbf16>
    %205 = vector.extract_strided_slice %175 {offsets = [0, 32], sizes = [24, 32], strides = [1, 1]} : vector<24x128xf32> to vector<24x32xf32>
    %206 = arith.truncf %205 : vector<24x32xf32> to vector<24x32xbf16>
    %207 = vector.extract_strided_slice %183 {offsets = [0, 32], sizes = [24, 32], strides = [1, 1]} : vector<24x128xf32> to vector<24x32xf32>
    %208 = arith.truncf %207 : vector<24x32xf32> to vector<24x32xbf16>
    %cst_78 = arith.constant dense<0.000000e+00> : vector<16x24xf32>
    %209 = tpu.matmul %204, %206, %cst_78 {dimension_numbers = #tpu.dot_dimension_numbers<[1], [1], [0], [0], [0, 0, 1, 0], [], []>} : vector<16x32xbf16>, vector<24x32xbf16>, vector<16x24xf32> -> vector<16x24xf32>
    %cst_79 = arith.constant dense<0xFF800000> : vector<16xf32>
    %210 = vector.multi_reduction <maximumf>, %209, %cst_79 [1] : vector<16x24xf32> to vector<16xf32>
    %211 = vector.shape_cast %210 : vector<16xf32> to vector<16x1xf32>
    %212 = vector.broadcast %211 : vector<16x1xf32> to vector<16x24xf32>
    %213 = arith.subf %209, %212 : vector<16x24xf32>
    %214 = math.exp %213 : vector<16x24xf32>
    %cst_80 = arith.constant dense<0.000000e+00> : vector<16xf32>
    %215 = vector.multi_reduction <add>, %214, %cst_80 [1] : vector<16x24xf32> to vector<16xf32>
    %216 = vector.shape_cast %215 : vector<16xf32> to vector<16x1xf32>
    %217 = tpu.reciprocal %216 {approx = true} : vector<16x1xf32> -> vector<16x1xf32>
    %218 = vector.broadcast %217 : vector<16x1xf32> to vector<16x24xf32>
    %219 = arith.mulf %214, %218 : vector<16x24xf32>
    %220 = arith.truncf %219 : vector<16x24xf32> to vector<16x24xbf16>
    %cst_81 = arith.constant dense<0.000000e+00> : vector<16x32xf32>
    %221 = tpu.matmul %220, %208, %cst_81 {dimension_numbers = #tpu.dot_dimension_numbers<[1], [0], [0], [1], [0, 0, 1, 1], [], []>} : vector<16x24xbf16>, vector<24x32xbf16>, vector<16x32xf32> -> vector<16x32xf32>
    %222 = vector.extract_strided_slice %167 {offsets = [0, 64], sizes = [16, 32], strides = [1, 1]} : vector<16x128xf32> to vector<16x32xf32>
    %223 = arith.truncf %222 : vector<16x32xf32> to vector<16x32xbf16>
    %224 = vector.extract_strided_slice %175 {offsets = [0, 64], sizes = [24, 32], strides = [1, 1]} : vector<24x128xf32> to vector<24x32xf32>
    %225 = arith.truncf %224 : vector<24x32xf32> to vector<24x32xbf16>
    %226 = vector.extract_strided_slice %183 {offsets = [0, 64], sizes = [24, 32], strides = [1, 1]} : vector<24x128xf32> to vector<24x32xf32>
    %227 = arith.truncf %226 : vector<24x32xf32> to vector<24x32xbf16>
    %cst_82 = arith.constant dense<0.000000e+00> : vector<16x24xf32>
    %228 = tpu.matmul %223, %225, %cst_82 {dimension_numbers = #tpu.dot_dimension_numbers<[1], [1], [0], [0], [0, 0, 1, 0], [], []>} : vector<16x32xbf16>, vector<24x32xbf16>, vector<16x24xf32> -> vector<16x24xf32>
    %cst_83 = arith.constant dense<0xFF800000> : vector<16xf32>
    %229 = vector.multi_reduction <maximumf>, %228, %cst_83 [1] : vector<16x24xf32> to vector<16xf32>
    %230 = vector.shape_cast %229 : vector<16xf32> to vector<16x1xf32>
    %231 = vector.broadcast %230 : vector<16x1xf32> to vector<16x24xf32>
    %232 = arith.subf %228, %231 : vector<16x24xf32>
    %233 = math.exp %232 : vector<16x24xf32>
    %cst_84 = arith.constant dense<0.000000e+00> : vector<16xf32>
    %234 = vector.multi_reduction <add>, %233, %cst_84 [1] : vector<16x24xf32> to vector<16xf32>
    %235 = vector.shape_cast %234 : vector<16xf32> to vector<16x1xf32>
    %236 = tpu.reciprocal %235 {approx = true} : vector<16x1xf32> -> vector<16x1xf32>
    %237 = vector.broadcast %236 : vector<16x1xf32> to vector<16x24xf32>
    %238 = arith.mulf %233, %237 : vector<16x24xf32>
    %239 = arith.truncf %238 : vector<16x24xf32> to vector<16x24xbf16>
    %cst_85 = arith.constant dense<0.000000e+00> : vector<16x32xf32>
    %240 = tpu.matmul %239, %227, %cst_85 {dimension_numbers = #tpu.dot_dimension_numbers<[1], [0], [0], [1], [0, 0, 1, 1], [], []>} : vector<16x24xbf16>, vector<24x32xbf16>, vector<16x32xf32> -> vector<16x32xf32>
    %241 = vector.extract_strided_slice %167 {offsets = [0, 96], sizes = [16, 32], strides = [1, 1]} : vector<16x128xf32> to vector<16x32xf32>
    %242 = arith.truncf %241 : vector<16x32xf32> to vector<16x32xbf16>
    %243 = vector.extract_strided_slice %175 {offsets = [0, 96], sizes = [24, 32], strides = [1, 1]} : vector<24x128xf32> to vector<24x32xf32>
    %244 = arith.truncf %243 : vector<24x32xf32> to vector<24x32xbf16>
    %245 = vector.extract_strided_slice %183 {offsets = [0, 96], sizes = [24, 32], strides = [1, 1]} : vector<24x128xf32> to vector<24x32xf32>
    %246 = arith.truncf %245 : vector<24x32xf32> to vector<24x32xbf16>
    %cst_86 = arith.constant dense<0.000000e+00> : vector<16x24xf32>
    %247 = tpu.matmul %242, %244, %cst_86 {dimension_numbers = #tpu.dot_dimension_numbers<[1], [1], [0], [0], [0, 0, 1, 0], [], []>} : vector<16x32xbf16>, vector<24x32xbf16>, vector<16x24xf32> -> vector<16x24xf32>
    %cst_87 = arith.constant dense<0xFF800000> : vector<16xf32>
    %248 = vector.multi_reduction <maximumf>, %247, %cst_87 [1] : vector<16x24xf32> to vector<16xf32>
    %249 = vector.shape_cast %248 : vector<16xf32> to vector<16x1xf32>
    %250 = vector.broadcast %249 : vector<16x1xf32> to vector<16x24xf32>
    %251 = arith.subf %247, %250 : vector<16x24xf32>
    %252 = math.exp %251 : vector<16x24xf32>
    %cst_88 = arith.constant dense<0.000000e+00> : vector<16xf32>
    %253 = vector.multi_reduction <add>, %252, %cst_88 [1] : vector<16x24xf32> to vector<16xf32>
    %254 = vector.shape_cast %253 : vector<16xf32> to vector<16x1xf32>
    %255 = tpu.reciprocal %254 {approx = true} : vector<16x1xf32> -> vector<16x1xf32>
    %256 = vector.broadcast %255 : vector<16x1xf32> to vector<16x24xf32>
    %257 = arith.mulf %252, %256 : vector<16x24xf32>
    %258 = arith.truncf %257 : vector<16x24xf32> to vector<16x24xbf16>
    %cst_89 = arith.constant dense<0.000000e+00> : vector<16x32xf32>
    %259 = tpu.matmul %258, %246, %cst_89 {dimension_numbers = #tpu.dot_dimension_numbers<[1], [0], [0], [1], [0, 0, 1, 1], [], []>} : vector<16x24xbf16>, vector<24x32xbf16>, vector<16x32xf32> -> vector<16x32xf32>
    %260 = tpu.concatenate %202, %221, %240, %259 in 1 : vector<16x32xf32>, vector<16x32xf32>, vector<16x32xf32>, vector<16x32xf32> -> vector<16x128xf32>
    %261 = arith.truncf %260 : vector<16x128xf32> to vector<16x128xbf16>
    %c0_90 = arith.constant 0 : index
    %c0_91 = arith.constant 0 : index
    %262 = vector.load %arg18[%c0_90, %c0_91] : memref<128x128xbf16, #tpu.memory_space<vmem>>, vector<128x128xbf16>
    %cst_92 = arith.constant dense<0.000000e+00> : vector<16x128xf32>
    %263 = tpu.matmul %261, %262, %cst_92 {dimension_numbers = #tpu.dot_dimension_numbers<[1], [1], [0], [0], [0, 0, 1, 0], [], []>} : vector<16x128xbf16>, vector<128x128xbf16>, vector<16x128xf32> -> vector<16x128xf32>
    %c0_93 = arith.constant 0 : index
    %c0_94 = arith.constant 0 : index
    %264 = vector.load %arg19[%c0_93, %c0_94] : memref<1x128xf32, #tpu.memory_space<vmem>>, vector<1x128xf32>
    %265 = vector.broadcast %264 : vector<1x128xf32> to vector<16x128xf32>
    %266 = arith.addf %263, %265 : vector<16x128xf32>
    %267 = arith.addf %137, %266 : vector<16x128xf32>
    %c0_95 = arith.constant 0 : index
    %c0_96 = arith.constant 0 : index
    %268 = vector.load %arg26[%c0_95, %c0_96] : memref<1x128xf32, #tpu.memory_space<vmem>>, vector<1x128xf32>
    %c0_97 = arith.constant 0 : index
    %c0_98 = arith.constant 0 : index
    %269 = vector.load %arg27[%c0_97, %c0_98] : memref<1x128xf32, #tpu.memory_space<vmem>>, vector<1x128xf32>
    %cst_99 = arith.constant dense<0.000000e+00> : vector<16xf32>
    %270 = vector.multi_reduction <add>, %267, %cst_99 [1] : vector<16x128xf32> to vector<16xf32>
    %271 = vector.shape_cast %270 : vector<16xf32> to vector<16x1xf32>
    %cst_100 = arith.constant 1.280000e+02 : f32
    %272 = vector.broadcast %cst_100 : f32 to vector<16x1xf32>
    %273 = arith.divf %271, %272 : vector<16x1xf32>
    %274 = vector.broadcast %273 : vector<16x1xf32> to vector<16x128xf32>
    %275 = arith.subf %267, %274 : vector<16x128xf32>
    %276 = arith.mulf %275, %275 : vector<16x128xf32>
    %cst_101 = arith.constant dense<0.000000e+00> : vector<16xf32>
    %277 = vector.multi_reduction <add>, %276, %cst_101 [1] : vector<16x128xf32> to vector<16xf32>
    %278 = vector.shape_cast %277 : vector<16xf32> to vector<16x1xf32>
    %cst_102 = arith.constant 1.280000e+02 : f32
    %279 = vector.broadcast %cst_102 : f32 to vector<16x1xf32>
    %280 = arith.divf %278, %279 : vector<16x1xf32>
    %cst_103 = arith.constant 9.99999974E-6 : f32
    %281 = vector.broadcast %cst_103 : f32 to vector<16x1xf32>
    %282 = arith.addf %280, %281 : vector<16x1xf32>
    %283 = math.rsqrt %282 : vector<16x1xf32>
    %284 = vector.broadcast %283 : vector<16x1xf32> to vector<16x128xf32>
    %285 = arith.mulf %275, %284 : vector<16x128xf32>
    %286 = vector.broadcast %268 : vector<1x128xf32> to vector<16x128xf32>
    %287 = arith.mulf %285, %286 : vector<16x128xf32>
    %288 = vector.broadcast %269 : vector<1x128xf32> to vector<16x128xf32>
    %289 = arith.addf %287, %288 : vector<16x128xf32>
    %290 = arith.truncf %289 : vector<16x128xf32> to vector<16x128xbf16>
    %c0_104 = arith.constant 0 : index
    %c0_105 = arith.constant 0 : index
    %291 = vector.load %arg22[%c0_104, %c0_105] : memref<256x128xbf16, #tpu.memory_space<vmem>>, vector<256x128xbf16>
    %cst_106 = arith.constant dense<0.000000e+00> : vector<16x256xf32>
    %292 = tpu.matmul %290, %291, %cst_106 {dimension_numbers = #tpu.dot_dimension_numbers<[1], [1], [0], [0], [0, 0, 1, 0], [], []>} : vector<16x128xbf16>, vector<256x128xbf16>, vector<16x256xf32> -> vector<16x256xf32>
    %c0_107 = arith.constant 0 : index
    %c0_108 = arith.constant 0 : index
    %293 = vector.load %arg23[%c0_107, %c0_108] : memref<1x256xf32, #tpu.memory_space<vmem>>, vector<1x256xf32>
    %294 = vector.broadcast %293 : vector<1x256xf32> to vector<16x256xf32>
    %295 = arith.addf %292, %294 : vector<16x256xf32>
    %cst_109 = arith.constant 5.000000e-01 : f32
    %296 = vector.broadcast %cst_109 : f32 to vector<16x256xf32>
    %297 = arith.mulf %296, %295 : vector<16x256xf32>
    %cst_110 = arith.constant 0.707106769 : f32
    %298 = vector.broadcast %cst_110 : f32 to vector<16x256xf32>
    %299 = arith.mulf %295, %298 : vector<16x256xf32>
    %300 = math.erf %299 : vector<16x256xf32>
    %cst_111 = arith.constant 1.000000e+00 : f32
    %301 = vector.broadcast %cst_111 : f32 to vector<16x256xf32>
    %302 = arith.addf %301, %300 : vector<16x256xf32>
    %303 = arith.mulf %297, %302 : vector<16x256xf32>
    %304 = arith.truncf %303 : vector<16x256xf32> to vector<16x256xbf16>
    %c0_112 = arith.constant 0 : index
    %c0_113 = arith.constant 0 : index
    %305 = vector.load %arg24[%c0_112, %c0_113] : memref<128x256xbf16, #tpu.memory_space<vmem>>, vector<128x256xbf16>
    %cst_114 = arith.constant dense<0.000000e+00> : vector<16x128xf32>
    %306 = tpu.matmul %304, %305, %cst_114 {dimension_numbers = #tpu.dot_dimension_numbers<[1], [1], [0], [0], [0, 0, 1, 0], [], []>} : vector<16x256xbf16>, vector<128x256xbf16>, vector<16x128xf32> -> vector<16x128xf32>
    %c0_115 = arith.constant 0 : index
    %c0_116 = arith.constant 0 : index
    %307 = vector.load %arg25[%c0_115, %c0_116] : memref<1x128xf32, #tpu.memory_space<vmem>>, vector<1x128xf32>
    %308 = vector.broadcast %307 : vector<1x128xf32> to vector<16x128xf32>
    %309 = arith.addf %306, %308 : vector<16x128xf32>
    %310 = arith.addf %267, %309 : vector<16x128xf32>
    %c0_117 = arith.constant 0 : index
    %c0_118 = arith.constant 0 : index
    %c0_119 = arith.constant 0 : index
    %311 = vector.load %arg28[%c0_117, %c0_118, %c0_119] : memref<1x16x128xf32, #tpu.memory_space<vmem>>, vector<1x16x128xf32>
    %312 = vector.shape_cast %311 : vector<1x16x128xf32> to vector<16x128xf32>
    %313 = vector.shape_cast %310 : vector<16x128xf32> to vector<1x16x128xf32>
    tpu.vector_store %arg28[%c0_117, %c0_118, %c0_119], %313 {strides = array<i32>} : memref<1x16x128xf32, #tpu.memory_space<vmem>>, vector<1x16x128xf32>,
    return
  }
  func.func @transform_0(%arg0: i32) -> (i32, i32, i32) {
    %c0_i32 = arith.constant 0 : i32
    %c0_i32_0 = arith.constant 0 : i32
    %c0_i32_1 = arith.constant 0 : i32
    return %arg0, %c0_i32, %c0_i32_0 : i32, i32, i32
  }
  func.func @transform_1(%arg0: i32) -> (i32, i32, i32) {
    %c0_i32 = arith.constant 0 : i32
    %c0_i32_0 = arith.constant 0 : i32
    %c0_i32_1 = arith.constant 0 : i32
    return %arg0, %c0_i32, %c0_i32_0 : i32, i32, i32
  }
  func.func @transform_2(%arg0: i32) -> (i32, i32, i32) {
    %c0_i32 = arith.constant 0 : i32
    %c0_i32_0 = arith.constant 0 : i32
    %c0_i32_1 = arith.constant 0 : i32
    return %arg0, %c0_i32, %c0_i32_0 : i32, i32, i32
  }
  func.func @transform_3(%arg0: i32) -> (i32, i32) {
    %c0_i32 = arith.constant 0 : i32
    %c0_i32_0 = arith.constant 0 : i32
    %c0_i32_1 = arith.constant 0 : i32
    return %c0_i32, %c0_i32_0 : i32, i32
  }
  func.func @transform_4(%arg0: i32) -> (i32, i32, i32, i32) {
    %c0_i32 = arith.constant 0 : i32
    %c0_i32_0 = arith.constant 0 : i32
    %c0_i32_1 = arith.constant 0 : i32
    %c0_i32_2 = arith.constant 0 : i32
    return %arg0, %c0_i32, %c0_i32_0, %c0_i32_1 : i32, i32, i32, i32
  }
  func.func @transform_5(%arg0: i32) -> (i32, i32) {
    %c0_i32 = arith.constant 0 : i32
    %c0_i32_0 = arith.constant 0 : i32
    %c0_i32_1 = arith.constant 0 : i32
    return %c0_i32, %c0_i32_0 : i32, i32
  }
  func.func @transform_6(%arg0: i32) -> (i32, i32) {
    %c0_i32 = arith.constant 0 : i32
    %c0_i32_0 = arith.constant 0 : i32
    %c0_i32_1 = arith.constant 0 : i32
    return %c0_i32, %c0_i32_0 : i32, i32
  }
  func.func @transform_7(%arg0: i32) -> (i32, i32) {
    %c0_i32 = arith.constant 0 : i32
    %c0_i32_0 = arith.constant 0 : i32
    %c0_i32_1 = arith.constant 0 : i32
    return %c0_i32, %c0_i32_0 : i32, i32
  }
  func.func @transform_8(%arg0: i32) -> (i32, i32) {
    %c0_i32 = arith.constant 0 : i32
    %c0_i32_0 = arith.constant 0 : i32
    %c0_i32_1 = arith.constant 0 : i32
    return %c0_i32, %c0_i32_0 : i32, i32
  }
  func.func @transform_9(%arg0: i32) -> (i32, i32) {
    %c0_i32 = arith.constant 0 : i32
    %c0_i32_0 = arith.constant 0 : i32
    %c0_i32_1 = arith.constant 0 : i32
    return %c0_i32, %c0_i32_0 : i32, i32
  }
  func.func @transform_10(%arg0: i32) -> (i32, i32) {
    %c0_i32 = arith.constant 0 : i32
    %c0_i32_0 = arith.constant 0 : i32
    %c0_i32_1 = arith.constant 0 : i32
    return %c0_i32, %c0_i32_0 : i32, i32
  }
  func.func @transform_11(%arg0: i32) -> (i32, i32) {
    %c0_i32 = arith.constant 0 : i32
    %c0_i32_0 = arith.constant 0 : i32
    %c0_i32_1 = arith.constant 0 : i32
    return %c0_i32, %c0_i32_0 : i32, i32
  }
  func.func @transform_12(%arg0: i32) -> (i32, i32) {
    %c0_i32 = arith.constant 0 : i32
    %c0_i32_0 = arith.constant 0 : i32
    %c0_i32_1 = arith.constant 0 : i32
    return %c0_i32, %c0_i32_0 : i32, i32
  }
  func.func @transform_13(%arg0: i32) -> (i32, i32) {
    %c0_i32 = arith.constant 0 : i32
    %c0_i32_0 = arith.constant 0 : i32
    %c0_i32_1 = arith.constant 0 : i32
    return %c0_i32, %c0_i32_0 : i32, i32
  }
  func.func @transform_14(%arg0: i32) -> (i32, i32) {
    %c0_i32 = arith.constant 0 : i32
    %c0_i32_0 = arith.constant 0 : i32
    %c0_i32_1 = arith.constant 0 : i32
    return %c0_i32, %c0_i32_0 : i32, i32
  }
  func.func @transform_15(%arg0: i32) -> (i32, i32) {
    %c0_i32 = arith.constant 0 : i32
    %c0_i32_0 = arith.constant 0 : i32
    %c0_i32_1 = arith.constant 0 : i32
    return %c0_i32, %c0_i32_0 : i32, i32
  }
  func.func @transform_16(%arg0: i32) -> (i32, i32) {
    %c0_i32 = arith.constant 0 : i32
    %c0_i32_0 = arith.constant 0 : i32
    %c0_i32_1 = arith.constant 0 : i32
    return %c0_i32, %c0_i32_0 : i32, i32
  }
  func.func @transform_17(%arg0: i32) -> (i32, i32) {
    %c0_i32 = arith.constant 0 : i32
    %c0_i32_0 = arith.constant 0 : i32
    %c0_i32_1 = arith.constant 0 : i32
    return %c0_i32, %c0_i32_0 : i32, i32
  }
  func.func @transform_18(%arg0: i32) -> (i32, i32) {
    %c0_i32 = arith.constant 0 : i32
    %c0_i32_0 = arith.constant 0 : i32
    %c0_i32_1 = arith.constant 0 : i32
    return %c0_i32, %c0_i32_0 : i32, i32
  }
  func.func @transform_19(%arg0: i32) -> (i32, i32) {
    %c0_i32 = arith.constant 0 : i32
    %c0_i32_0 = arith.constant 0 : i32
    %c0_i32_1 = arith.constant 0 : i32
    return %c0_i32, %c0_i32_0 : i32, i32
  }
  func.func @transform_20(%arg0: i32) -> (i32, i32) {
    %c0_i32 = arith.constant 0 : i32
    %c0_i32_0 = arith.constant 0 : i32
    %c0_i32_1 = arith.constant 0 : i32
    return %c0_i32, %c0_i32_0 : i32, i32
  }
  func.func @transform_21(%arg0: i32) -> (i32, i32) {
    %c0_i32 = arith.constant 0 : i32
    %c0_i32_0 = arith.constant 0 : i32
    %c0_i32_1 = arith.constant 0 : i32
    return %c0_i32, %c0_i32_0 : i32, i32
  }
  func.func @transform_22(%arg0: i32) -> (i32, i32) {
    %c0_i32 = arith.constant 0 : i32
    %c0_i32_0 = arith.constant 0 : i32
    %c0_i32_1 = arith.constant 0 : i32
    return %c0_i32, %c0_i32_0 : i32, i32
  }
  func.func @transform_23(%arg0: i32) -> (i32, i32) {
    %c0_i32 = arith.constant 0 : i32
    %c0_i32_0 = arith.constant 0 : i32
    %c0_i32_1 = arith.constant 0 : i32
    return %c0_i32, %c0_i32_0 : i32, i32
  }
  func.func @transform_24(%arg0: i32) -> (i32, i32) {
    %c0_i32 = arith.constant 0 : i32
    %c0_i32_0 = arith.constant 0 : i32
    %c0_i32_1 = arith.constant 0 : i32
    return %c0_i32, %c0_i32_0 : i32, i32
  }
  func.func @transform_25(%arg0: i32) -> (i32, i32) {
    %c0_i32 = arith.constant 0 : i32
    %c0_i32_0 = arith.constant 0 : i32
    %c0_i32_1 = arith.constant 0 : i32
    return %c0_i32, %c0_i32_0 : i32, i32
  }
  func.func @transform_26(%arg0: i32) -> (i32, i32) {
    %c0_i32 = arith.constant 0 : i32
    %c0_i32_0 = arith.constant 0 : i32
    %c0_i32_1 = arith.constant 0 : i32
    return %c0_i32, %c0_i32_0 : i32, i32
  }
  func.func @transform_27(%arg0: i32) -> (i32, i32, i32) {
    %c0_i32 = arith.constant 0 : i32
    %c0_i32_0 = arith.constant 0 : i32
    %c0_i32_1 = arith.constant 0 : i32
    return %arg0, %c0_i32, %c0_i32_0 : i32, i32, i32
  }
}

</mosaic_0001>

<llo_original>
// kernel: tpu_custom_call.1
$region0: #{tpu_custom_call.1}
  #allocation0 [shape = 'u32[]', space=smem, size = 0x4, offset = 0x4, fixed_abs, tag = 'smem constant byte address 0x4 - core index']
  #allocation1 [shape = 'u32[144,128]{1,0:T(1,128)}', space=vmem, size = 0x12000, scoped, tag = 'internal scratch']
  %s0 = inlined_call_operand.hbm [shape: f32[2,16,128], index: 0, kind: input, shape index: {}]
  %s1 = inlined_call_operand.hbm [shape: f32[2,24,128], index: 1, kind: input, shape index: {}]
  %s2 = inlined_call_operand.hbm [shape: f32[2,24,128], index: 2, kind: input, shape index: {}]
  %s3 = inlined_call_operand.hbm [shape: f32[16,16], index: 3, kind: input, shape index: {}]
  %s4 = inlined_call_operand.hbm [shape: f32[2,4,16,16], index: 4, kind: input, shape index: {}]
  %s5 = inlined_call_operand.hbm [shape: bf16[384,128], index: 5, kind: input, shape index: {}]
  %s6 = inlined_call_operand.hbm [shape: f32[1,384], index: 6, kind: input, shape index: {}]
  %s7 = inlined_call_operand.hbm [shape: bf16[128,128], index: 7, kind: input, shape index: {}]
  %s8 = inlined_call_operand.hbm [shape: f32[1,128], index: 8, kind: input, shape index: {}]
  %s9 = inlined_call_operand.hbm [shape: f32[1,128], index: 9, kind: input, shape index: {}]
  %s10 = inlined_call_operand.hbm [shape: f32[1,128], index: 10, kind: input, shape index: {}]
  %s11 = inlined_call_operand.hbm [shape: bf16[128,128], index: 11, kind: input, shape index: {}]
  %s12 = inlined_call_operand.hbm [shape: f32[1,128], index: 12, kind: input, shape index: {}]
  %s13 = inlined_call_operand.hbm [shape: bf16[128,128], index: 13, kind: input, shape index: {}]
  %s14 = inlined_call_operand.hbm [shape: f32[1,128], index: 14, kind: input, shape index: {}]
  %s15 = inlined_call_operand.hbm [shape: bf16[128,128], index: 15, kind: input, shape index: {}]
  %s16 = inlined_call_operand.hbm [shape: f32[1,128], index: 16, kind: input, shape index: {}]
  %s17 = inlined_call_operand.vmem [shape: bf16[128,128], index: 17, kind: input, shape index: {}]
  %s18 = inlined_call_operand.vmem [shape: f32[1,128], index: 18, kind: input, shape index: {}]
  %s19 = inlined_call_operand.vmem [shape: f32[1,128], index: 19, kind: input, shape index: {}]
  %s20 = inlined_call_operand.vmem [shape: f32[1,128], index: 20, kind: input, shape index: {}]
  %s21 = inlined_call_operand.hbm [shape: bf16[256,128], index: 21, kind: input, shape index: {}]
  %s22 = inlined_call_operand.vmem [shape: f32[1,256], index: 22, kind: input, shape index: {}]
  %s23 = inlined_call_operand.hbm [shape: bf16[128,256], index: 23, kind: input, shape index: {}]
  %s24 = inlined_call_operand.vmem [shape: f32[1,128], index: 24, kind: input, shape index: {}]
  %s25 = inlined_call_operand.vmem [shape: f32[1,128], index: 25, kind: input, shape index: {}]
  %s26 = inlined_call_operand.vmem [shape: f32[1,128], index: 26, kind: input, shape index: {}]
  %s27 = inlined_call_operand.hbm [shape: f32[2,16,128], index: 27, kind: output, shape index: {}]
  %s28 = sld [smem:[#allocation0]]
  $region217: #{tpu_custom_call.1} parent=0
    _
  %s30 = ssub.s32 1, %s28
  %s31 = scalar_select 0, %s30, %s28
  $region1: #{tpu_custom_call.1} parent=0
    #allocation2 [shape = 'u8[16384]{0}', space=vmem, size = 0x4000, scoped, tag = 'input window, operand 0']
    #allocation3 [shape = 's32[2]{0}', space=sflag, size = 0x8, scoped, tag = 'scoped memory for tpu_custom_call.1']
    #allocation4 [shape = 's32[2]{0}', space=sflag, size = 0x8, scoped, tag = 'scoped memory for tpu_custom_call.1']
    #allocation5 [shape = 'u8[24576]{0}', space=vmem, size = 0x6000, scoped, tag = 'input window, operand 1']
    #allocation6 [shape = 's32[2]{0}', space=sflag, size = 0x8, scoped, tag = 'scoped memory for tpu_custom_call.1']
    #allocation7 [shape = 'u8[24576]{0}', space=vmem, size = 0x6000, scoped, tag = 'input window, operand 2']
    #allocation8 [shape = 'u8[8192]{0}', space=vmem, size = 0x2000, scoped, tag = 'input window, operand 3, single buffered']
    #allocation9 [shape = 's32[1]{0}', space=sflag, size = 0x4, scoped, tag = 'scoped memory for tpu_custom_call.1']
    #allocation10 [shape = 'u8[65536]{0}', space=vmem, size = 0x10000, scoped, tag = 'input window, operand 4']
    #allocation11 [shape = 'u8[98304]{0}', space=vmem, size = 0x18000, scoped, tag = 'input window, operand 5, single buffered']
    #allocation12 [shape = 'u8[1536]{0}', space=vmem, size = 0x800, scoped, tag = 'input window, operand 6, single buffered']
    #allocation13 [shape = 'u8[32768]{0}', space=vmem, size = 0x8000, scoped, tag = 'input window, operand 7, single buffered']
    #allocation14 [shape = 's32[1]{0}', space=sflag, size = 0x4, scoped, tag = 'scoped memory for tpu_custom_call.1']
    #allocation15 [shape = 'u8[512]{0}', space=vmem, size = 0x400, scoped, tag = 'input window, operand 8, single buffered']
    #allocation16 [shape = 'u8[512]{0}', space=vmem, size = 0x400, scoped, tag = 'input window, operand 9, single buffered']
    #allocation17 [shape = 's32[1]{0}', space=sflag, size = 0x4, scoped, tag = 'scoped memory for tpu_custom_call.1']
    #allocation18 [shape = 'u8[512]{0}', space=vmem, size = 0x400, scoped, tag = 'input window, operand 10, single buffered']
    #allocation19 [shape = 'u8[32768]{0}', space=vmem, size = 0x8000, scoped, tag = 'input window, operand 11, single buffered']
    #allocation20 [shape = 's32[1]{0}', space=sflag, size = 0x4, scoped, tag = 'scoped memory for tpu_custom_call.1']
    #allocation21 [shape = 'u8[512]{0}', space=vmem, size = 0x400, scoped, tag = 'input window, operand 12, single buffered']
    #allocation22 [shape = 'u8[32768]{0}', space=vmem, size = 0x8000, scoped, tag = 'input window, operand 13, single buffered']
    #allocation23 [shape = 's32[1]{0}', space=sflag, size = 0x4, scoped, tag = 'scoped memory for tpu_custom_call.1']
    #allocation24 [shape = 'u8[512]{0}', space=vmem, size = 0x400, scoped, tag = 'input window, operand 14, single buffered']
    #allocation25 [shape = 'u8[32768]{0}', space=vmem, size = 0x8000, scoped, tag = 'input window, operand 15, single buffered']
    #allocation26 [shape = 's32[1]{0}', space=sflag, size = 0x4, scoped, tag = 'scoped memory for tpu_custom_call.1']
    #allocation27 [shape = 'u8[512]{0}', space=vmem, size = 0x400, scoped, tag = 'input window, operand 16, single buffered']
    #allocation28 [shape = 'u8[65536]{0}', space=vmem, size = 0x10000, scoped, tag = 'input window, operand 21, single buffered']
    #allocation29 [shape = 's32[1]{0}', space=sflag, size = 0x4, scoped, tag = 'scoped memory for tpu_custom_call.1']
    #allocation30 [shape = 'u8[65536]{0}', space=vmem, size = 0x10000, scoped, tag = 'input window, operand 23, single buffered']
    #allocation31 [shape = 'u8[16384]{0}', space=vmem, size = 0x4000, scoped, tag = 'output window, operand 0']
    %32 = vsyncpa [#allocation3], 0
    %s33 = scalar_lea.sflag [#allocation3], 1
    %34 = vsyncpa %s33, 0
    %35 = vsyncpa [#allocation6], 0
    %s36 = scalar_lea.sflag [#allocation6], 1
    %37 = vsyncpa %s36, 0
    %38 = vsyncpa [#allocation9], 0
    %39 = vsyncpa [#allocation14], 0
    %40 = vsyncpa [#allocation17], 0
    %41 = vsyncpa [#allocation20], 0
    %42 = vsyncpa [#allocation23], 0
    %43 = vsyncpa [#allocation26], 0
    %44 = vsyncpa [#allocation29], 0
    %45 = vsyncpa [#allocation4], 0
    %s46 = scalar_lea.sflag [#allocation4], 1
    %47 = vsyncpa %s46, 0
    loop: start=0, step=1, limit=4
    $region2: #{tpu_custom_call.1} parent=1 // loop_pre_header
      _
    $region3: #{tpu_custom_call.1} parent=1 // loop_header
      %s49 = sphi 0, %s53
      %p50 = scmp.ge.s32.totalorder %s49, 4
      %s59 = sphi 0, %s61
      %s62 = sphi 0, %s59
      %s63 = sphi 0, %s62
      %s79 = sphi 0, %s63
      %s85 = sphi 0, %s87
      %s88 = sphi 0, %s85
      %s89 = sphi 0, %s88
      %s105 = sphi 0, %s89
      %s111 = sphi 0, %s113
      %s114 = sphi 0, %s111
      %s115 = sphi 0, %s114
      %s131 = sphi 0, %s115
      %s135 = sphi 0, %s135
      %s137 = sphi 0, %s135
      %s138 = sphi 0, %s137
      %s152 = sphi 0, %s138
      %s158 = sphi 0, %s160
      %s161 = sphi 0, %s158
      %s162 = sphi 0, %s161
      %s178 = sphi 0, %s162
      %s182 = sphi 0, %s182
      %s184 = sphi 0, %s182
      %s185 = sphi 0, %s184
      %s199 = sphi 0, %s185
      %s203 = sphi 0, %s203
      %s205 = sphi 0, %s203
      %s206 = sphi 0, %s205
      %s220 = sphi 0, %s206
      %s224 = sphi 0, %s224
      %s226 = sphi 0, %s224
      %s227 = sphi 0, %s226
      %s241 = sphi 0, %s227
      %s245 = sphi 0, %s245
      %s247 = sphi 0, %s245
      %s248 = sphi 0, %s247
      %s262 = sphi 0, %s248
      %s266 = sphi 0, %s266
      %s268 = sphi 0, %s266
      %s269 = sphi 0, %s268
      %s283 = sphi 0, %s269
      %s287 = sphi 0, %s287
      %s289 = sphi 0, %s287
      %s290 = sphi 0, %s289
      %s304 = sphi 0, %s290
      %s308 = sphi 0, %s308
      %s310 = sphi 0, %s308
      %s311 = sphi 0, %s310
      %s325 = sphi 0, %s311
      %s329 = sphi 0, %s329
      %s331 = sphi 0, %s329
      %s332 = sphi 0, %s331
      %s346 = sphi 0, %s332
      %s350 = sphi 0, %s350
      %s352 = sphi 0, %s350
      %s353 = sphi 0, %s352
      %s367 = sphi 0, %s353
      %s371 = sphi 0, %s371
      %s373 = sphi 0, %s371
      %s374 = sphi 0, %s373
      %s388 = sphi 0, %s374
      %s392 = sphi 0, %s392
      %s394 = sphi 0, %s392
      %s395 = sphi 0, %s394
      %s409 = sphi 0, %s395
      %s413 = sphi 0, %s413
      %s415 = sphi 0, %s413
      %s416 = sphi 0, %s415
      %s430 = sphi 0, %s416
      %s434 = sphi 0, %s434
      %s436 = sphi 0, %s434
      %s437 = sphi 0, %s436
      %s451 = sphi 0, %s437
      %s455 = sphi 0, %s455
      %s457 = sphi 0, %s455
      %s458 = sphi 0, %s457
      %s472 = sphi 0, %s458
      %s476 = sphi 0, %s476
      %s478 = sphi 0, %s476
      %s479 = sphi 0, %s478
      %s493 = sphi 0, %s479
      %s497 = sphi 0, %s497
      %s499 = sphi 0, %s497
      %s500 = sphi 0, %s499
      %s514 = sphi 0, %s500
      %s518 = sphi 0, %s518
      %s520 = sphi 0, %s518
      %s521 = sphi 0, %s520
      %s535 = sphi 0, %s521
      %s539 = sphi 0, %s539
      %s541 = sphi 0, %s539
      %s542 = sphi 0, %s541
      %s556 = sphi 0, %s542
      %s560 = sphi 0, %s560
      %s562 = sphi 0, %s560
      %s563 = sphi 0, %s562
      %s577 = sphi 0, %s563
      %s581 = sphi 0, %s581
      %s583 = sphi 0, %s581
      %s584 = sphi 0, %s583
      %s598 = sphi 0, %s584
      %s602 = sphi 0, %s602
      %s604 = sphi 0, %s602
      %s605 = sphi 0, %s604
      %s619 = sphi 0, %s605
      %s623 = sphi 0, %s623
      %s625 = sphi 0, %s623
      %s626 = sphi 0, %s625
      %s640 = sphi 0, %s626
      %s646 = sphi 0, %s648
      %s649 = sphi 0, %s646
      %s650 = sphi 0, %s649
      %s666 = sphi 0, %s650
    $region4: #{tpu_custom_call.1} parent=1 // loop_header_branch
      %52 = sbr.rel (%p50) target = $region8
    $region5: #{tpu_custom_call.1} parent=1 // loop_body
      %s54 = ssub.s32 %s49, 1
      %s55 = ssub.s32 %s49, 2
      %s56 = sadd.s32 %s49, 1
      %s57 = ssub.s32 %s49, %s56
      %p58 = scmp.eq.s32.totalorder %s57, 0
      %s60 = sadd.s32 %s59, 1
      %s61 = scalar_select %p58, %s59, %s60
      %p64 = pneg %p58
      %p65 = scmp.eq.s32.totalorder %s49, 1
      %p66 = por %p64, %p65
      %p67 = scmp.ne.s32.totalorder %s59, %s62
      %p68 = scmp.eq.s32.totalorder %s49, 0
      %p69 = por %p67, %p68
      %p70 = scmp.ne.s32.totalorder %s59, %s62
      %p71 = scmp.eq.s32.totalorder %s54, 1
      %p72 = por %p70, %p71
      %p73 = scmp.ne.s32.totalorder %s62, %s63
      %p74 = scmp.eq.s32.totalorder %s54, 0
      %p75 = por %p73, %p74
      %p76 = scmp.ne.s32.totalorder %s62, %s63
      %p77 = scmp.eq.s32.totalorder %s55, 1
      %p78 = por %p76, %p77
      %p80 = scmp.ne.s32.totalorder %s63, %s79
      %p81 = scmp.eq.s32.totalorder %s55, 0
      %p82 = por %p80, %p81
      %s83 = ssub.s32 %s49, %s56
      %p84 = scmp.eq.s32.totalorder %s83, 0
      %s86 = sadd.s32 %s85, 1
      %s87 = scalar_select %p84, %s85, %s86
      %p90 = pneg %p84
      %p91 = scmp.eq.s32.totalorder %s49, 1
      %p92 = por %p90, %p91
      %p93 = scmp.ne.s32.totalorder %s85, %s88
      %p94 = scmp.eq.s32.totalorder %s49, 0
      %p95 = por %p93, %p94
      %p96 = scmp.ne.s32.totalorder %s85, %s88
      %p97 = scmp.eq.s32.totalorder %s54, 1
      %p98 = por %p96, %p97
      %p99 = scmp.ne.s32.totalorder %s88, %s89
      %p100 = scmp.eq.s32.totalorder %s54, 0
      %p101 = por %p99, %p100
      %p102 = scmp.ne.s32.totalorder %s88, %s89
      %p103 = scmp.eq.s32.totalorder %s55, 1
      %p104 = por %p102, %p103
      %p106 = scmp.ne.s32.totalorder %s89, %s105
      %p107 = scmp.eq.s32.totalorder %s55, 0
      %p108 = por %p106, %p107
      %s109 = ssub.s32 %s49, %s56
      %p110 = scmp.eq.s32.totalorder %s109, 0
      %s112 = sadd.s32 %s111, 1
      %s113 = scalar_select %p110, %s111, %s112
      %p116 = pneg %p110
      %p117 = scmp.eq.s32.totalorder %s49, 1
      %p118 = por %p116, %p117
      %p119 = scmp.ne.s32.totalorder %s111, %s114
      %p120 = scmp.eq.s32.totalorder %s49, 0
      %p121 = por %p119, %p120
      %p122 = scmp.ne.s32.totalorder %s111, %s114
      %p123 = scmp.eq.s32.totalorder %s54, 1
      %p124 = por %p122, %p123
      %p125 = scmp.ne.s32.totalorder %s114, %s115
      %p126 = scmp.eq.s32.totalorder %s54, 0
      %p127 = por %p125, %p126
      %p128 = scmp.ne.s32.totalorder %s114, %s115
      %p129 = scmp.eq.s32.totalorder %s55, 1
      %p130 = por %p128, %p129
      %p132 = scmp.ne.s32.totalorder %s115, %s131
      %p133 = scmp.eq.s32.totalorder %s55, 0
      %p134 = por %p132, %p133
      %s136 = sadd.s32 %s135, 1
      %p139 = scmp.eq.s32.totalorder %s49, 1
      %p140 = scmp.ne.s32.totalorder %s135, %s137
      %p141 = scmp.eq.s32.totalorder %s49, 0
      %p142 = por %p140, %p141
      %p143 = scmp.ne.s32.totalorder %s135, %s137
      %p144 = scmp.eq.s32.totalorder %s54, 1
      %p145 = por %p143, %p144
      %p146 = scmp.ne.s32.totalorder %s137, %s138
      %p147 = scmp.eq.s32.totalorder %s54, 0
      %p148 = por %p146, %p147
      %p149 = scmp.ne.s32.totalorder %s137, %s138
      %p150 = scmp.eq.s32.totalorder %s55, 1
      %p151 = por %p149, %p150
      %p153 = scmp.ne.s32.totalorder %s138, %s152
      %p154 = scmp.eq.s32.totalorder %s55, 0
      %p155 = por %p153, %p154
      %s156 = ssub.s32 %s49, %s56
      %p157 = scmp.eq.s32.totalorder %s156, 0
      %s159 = sadd.s32 %s158, 1
      %s160 = scalar_select %p157, %s158, %s159
      %p163 = pneg %p157
      %p164 = scmp.eq.s32.totalorder %s49, 1
      %p165 = por %p163, %p164
      %p166 = scmp.ne.s32.totalorder %s158, %s161
      %p167 = scmp.eq.s32.totalorder %s49, 0
      %p168 = por %p166, %p167
      %p169 = scmp.ne.s32.totalorder %s158, %s161
      %p170 = scmp.eq.s32.totalorder %s54, 1
      %p171 = por %p169, %p170
      %p172 = scmp.ne.s32.totalorder %s161, %s162
      %p173 = scmp.eq.s32.totalorder %s54, 0
      %p174 = por %p172, %p173
      %p175 = scmp.ne.s32.totalorder %s161, %s162
      %p176 = scmp.eq.s32.totalorder %s55, 1
      %p177 = por %p175, %p176
      %p179 = scmp.ne.s32.totalorder %s162, %s178
      %p180 = scmp.eq.s32.totalorder %s55, 0
      %p181 = por %p179, %p180
      %s183 = sadd.s32 %s182, 1
      %p186 = scmp.eq.s32.totalorder %s49, 1
      %p187 = scmp.ne.s32.totalorder %s182, %s184
      %p188 = scmp.eq.s32.totalorder %s49, 0
      %p189 = por %p187, %p188
      %p190 = scmp.ne.s32.totalorder %s182, %s184
      %p191 = scmp.eq.s32.totalorder %s54, 1
      %p192 = por %p190, %p191
      %p193 = scmp.ne.s32.totalorder %s184, %s185
      %p194 = scmp.eq.s32.totalorder %s54, 0
      %p195 = por %p193, %p194
      %p196 = scmp.ne.s32.totalorder %s184, %s185
      %p197 = scmp.eq.s32.totalorder %s55, 1
      %p198 = por %p196, %p197
      %p200 = scmp.ne.s32.totalorder %s185, %s199
      %p201 = scmp.eq.s32.totalorder %s55, 0
      %p202 = por %p200, %p201
      %s204 = sadd.s32 %s203, 1
      %p207 = scmp.eq.s32.totalorder %s49, 1
      %p208 = scmp.ne.s32.totalorder %s203, %s205
      %p209 = scmp.eq.s32.totalorder %s49, 0
      %p210 = por %p208, %p209
      %p211 = scmp.ne.s32.totalorder %s203, %s205
      %p212 = scmp.eq.s32.totalorder %s54, 1
      %p213 = por %p211, %p212
      %p214 = scmp.ne.s32.totalorder %s205, %s206
      %p215 = scmp.eq.s32.totalorder %s54, 0
      %p216 = por %p214, %p215
      %p217 = scmp.ne.s32.totalorder %s205, %s206
      %p218 = scmp.eq.s32.totalorder %s55, 1
      %p219 = por %p217, %p218
      %p221 = scmp.ne.s32.totalorder %s206, %s220
      %p222 = scmp.eq.s32.totalorder %s55, 0
      %p223 = por %p221, %p222
      %s225 = sadd.s32 %s224, 1
      %p228 = scmp.eq.s32.totalorder %s49, 1
      %p229 = scmp.ne.s32.totalorder %s224, %s226
      %p230 = scmp.eq.s32.totalorder %s49, 0
      %p231 = por %p229, %p230
      %p232 = scmp.ne.s32.totalorder %s224, %s226
      %p233 = scmp.eq.s32.totalorder %s54, 1
      %p234 = por %p232, %p233
      %p235 = scmp.ne.s32.totalorder %s226, %s227
      %p236 = scmp.eq.s32.totalorder %s54, 0
      %p237 = por %p235, %p236
      %p238 = scmp.ne.s32.totalorder %s226, %s227
      %p239 = scmp.eq.s32.totalorder %s55, 1
      %p240 = por %p238, %p239
      %p242 = scmp.ne.s32.totalorder %s227, %s241
      %p243 = scmp.eq.s32.totalorder %s55, 0
      %p244 = por %p242, %p243
      %s246 = sadd.s32 %s245, 1
      %p249 = scmp.eq.s32.totalorder %s49, 1
      %p250 = scmp.ne.s32.totalorder %s245, %s247
      %p251 = scmp.eq.s32.totalorder %s49, 0
      %p252 = por %p250, %p251
      %p253 = scmp.ne.s32.totalorder %s245, %s247
      %p254 = scmp.eq.s32.totalorder %s54, 1
      %p255 = por %p253, %p254
      %p256 = scmp.ne.s32.totalorder %s247, %s248
      %p257 = scmp.eq.s32.totalorder %s54, 0
      %p258 = por %p256, %p257
      %p259 = scmp.ne.s32.totalorder %s247, %s248
      %p260 = scmp.eq.s32.totalorder %s55, 1
      %p261 = por %p259, %p260
      %p263 = scmp.ne.s32.totalorder %s248, %s262
      %p264 = scmp.eq.s32.totalorder %s55, 0
      %p265 = por %p263, %p264
      %s267 = sadd.s32 %s266, 1
      %p270 = scmp.eq.s32.totalorder %s49, 1
      %p271 = scmp.ne.s32.totalorder %s266, %s268
      %p272 = scmp.eq.s32.totalorder %s49, 0
      %p273 = por %p271, %p272
      %p274 = scmp.ne.s32.totalorder %s266, %s268
      %p275 = scmp.eq.s32.totalorder %s54, 1
      %p276 = por %p274, %p275
      %p277 = scmp.ne.s32.totalorder %s268, %s269
      %p278 = scmp.eq.s32.totalorder %s54, 0
      %p279 = por %p277, %p278
      %p280 = scmp.ne.s32.totalorder %s268, %s269
      %p281 = scmp.eq.s32.totalorder %s55, 1
      %p282 = por %p280, %p281
      %p284 = scmp.ne.s32.totalorder %s269, %s283
      %p285 = scmp.eq.s32.totalorder %s55, 0
      %p286 = por %p284, %p285
      %s288 = sadd.s32 %s287, 1
      %p291 = scmp.eq.s32.totalorder %s49, 1
      %p292 = scmp.ne.s32.totalorder %s287, %s289
      %p293 = scmp.eq.s32.totalorder %s49, 0
      %p294 = por %p292, %p293
      %p295 = scmp.ne.s32.totalorder %s287, %s289
      %p296 = scmp.eq.s32.totalorder %s54, 1
      %p297 = por %p295, %p296
      %p298 = scmp.ne.s32.totalorder %s289, %s290
      %p299 = scmp.eq.s32.totalorder %s54, 0
      %p300 = por %p298, %p299
      %p301 = scmp.ne.s32.totalorder %s289, %s290
      %p302 = scmp.eq.s32.totalorder %s55, 1
      %p303 = por %p301, %p302
      %p305 = scmp.ne.s32.totalorder %s290, %s304
      %p306 = scmp.eq.s32.totalorder %s55, 0
      %p307 = por %p305, %p306
      %s309 = sadd.s32 %s308, 1
      %p312 = scmp.eq.s32.totalorder %s49, 1
      %p313 = scmp.ne.s32.totalorder %s308, %s310
      %p314 = scmp.eq.s32.totalorder %s49, 0
      %p315 = por %p313, %p314
      %p316 = scmp.ne.s32.totalorder %s308, %s310
      %p317 = scmp.eq.s32.totalorder %s54, 1
      %p318 = por %p316, %p317
      %p319 = scmp.ne.s32.totalorder %s310, %s311
      %p320 = scmp.eq.s32.totalorder %s54, 0
      %p321 = por %p319, %p320
      %p322 = scmp.ne.s32.totalorder %s310, %s311
      %p323 = scmp.eq.s32.totalorder %s55, 1
      %p324 = por %p322, %p323
      %p326 = scmp.ne.s32.totalorder %s311, %s325
      %p327 = scmp.eq.s32.totalorder %s55, 0
      %p328 = por %p326, %p327
      %s330 = sadd.s32 %s329, 1
      %p333 = scmp.eq.s32.totalorder %s49, 1
      %p334 = scmp.ne.s32.totalorder %s329, %s331
      %p335 = scmp.eq.s32.totalorder %s49, 0
      %p336 = por %p334, %p335
      %p337 = scmp.ne.s32.totalorder %s329, %s331
      %p338 = scmp.eq.s32.totalorder %s54, 1
      %p339 = por %p337, %p338
      %p340 = scmp.ne.s32.totalorder %s331, %s332
      %p341 = scmp.eq.s32.totalorder %s54, 0
      %p342 = por %p340, %p341
      %p343 = scmp.ne.s32.totalorder %s331, %s332
      %p344 = scmp.eq.s32.totalorder %s55, 1
      %p345 = por %p343, %p344
      %p347 = scmp.ne.s32.totalorder %s332, %s346
      %p348 = scmp.eq.s32.totalorder %s55, 0
      %p349 = por %p347, %p348
      %s351 = sadd.s32 %s350, 1
      %p354 = scmp.eq.s32.totalorder %s49, 1
      %p355 = scmp.ne.s32.totalorder %s350, %s352
      %p356 = scmp.eq.s32.totalorder %s49, 0
      %p357 = por %p355, %p356
      %p358 = scmp.ne.s32.totalorder %s350, %s352
      %p359 = scmp.eq.s32.totalorder %s54, 1
      %p360 = por %p358, %p359
      %p361 = scmp.ne.s32.totalorder %s352, %s353
      %p362 = scmp.eq.s32.totalorder %s54, 0
      %p363 = por %p361, %p362
      %p364 = scmp.ne.s32.totalorder %s352, %s353
      %p365 = scmp.eq.s32.totalorder %s55, 1
      %p366 = por %p364, %p365
      %p368 = scmp.ne.s32.totalorder %s353, %s367
      %p369 = scmp.eq.s32.totalorder %s55, 0
      %p370 = por %p368, %p369
      %s372 = sadd.s32 %s371, 1
      %p375 = scmp.eq.s32.totalorder %s49, 1
      %p376 = scmp.ne.s32.totalorder %s371, %s373
      %p377 = scmp.eq.s32.totalorder %s49, 0
      %p378 = por %p376, %p377
      %p379 = scmp.ne.s32.totalorder %s371, %s373
      %p380 = scmp.eq.s32.totalorder %s54, 1
      %p381 = por %p379, %p380
      %p382 = scmp.ne.s32.totalorder %s373, %s374
      %p383 = scmp.eq.s32.totalorder %s54, 0
      %p384 = por %p382, %p383
      %p385 = scmp.ne.s32.totalorder %s373, %s374
      %p386 = scmp.eq.s32.totalorder %s55, 1
      %p387 = por %p385, %p386
      %p389 = scmp.ne.s32.totalorder %s374, %s388
      %p390 = scmp.eq.s32.totalorder %s55, 0
      %p391 = por %p389, %p390
      %s393 = sadd.s32 %s392, 1
      %p396 = scmp.eq.s32.totalorder %s49, 1
      %p397 = scmp.ne.s32.totalorder %s392, %s394
      %p398 = scmp.eq.s32.totalorder %s49, 0
      %p399 = por %p397, %p398
      %p400 = scmp.ne.s32.totalorder %s392, %s394
      %p401 = scmp.eq.s32.totalorder %s54, 1
      %p402 = por %p400, %p401
      %p403 = scmp.ne.s32.totalorder %s394, %s395
      %p404 = scmp.eq.s32.totalorder %s54, 0
      %p405 = por %p403, %p404
      %p406 = scmp.ne.s32.totalorder %s394, %s395
      %p407 = scmp.eq.s32.totalorder %s55, 1
      %p408 = por %p406, %p407
      %p410 = scmp.ne.s32.totalorder %s395, %s409
      %p411 = scmp.eq.s32.totalorder %s55, 0
      %p412 = por %p410, %p411
      %s414 = sadd.s32 %s413, 1
      %p417 = scmp.eq.s32.totalorder %s49, 1
      %p418 = scmp.ne.s32.totalorder %s413, %s415
      %p419 = scmp.eq.s32.totalorder %s49, 0
      %p420 = por %p418, %p419
      %p421 = scmp.ne.s32.totalorder %s413, %s415
      %p422 = scmp.eq.s32.totalorder %s54, 1
      %p423 = por %p421, %p422
      %p424 = scmp.ne.s32.totalorder %s415, %s416
      %p425 = scmp.eq.s32.totalorder %s54, 0
      %p426 = por %p424, %p425
      %p427 = scmp.ne.s32.totalorder %s415, %s416
      %p428 = scmp.eq.s32.totalorder %s55, 1
      %p429 = por %p427, %p428
      %p431 = scmp.ne.s32.totalorder %s416, %s430
      %p432 = scmp.eq.s32.totalorder %s55, 0
      %p433 = por %p431, %p432
      %s435 = sadd.s32 %s434, 1
      %p438 = scmp.eq.s32.totalorder %s49, 1
      %p439 = scmp.ne.s32.totalorder %s434, %s436
      %p440 = scmp.eq.s32.totalorder %s49, 0
      %p441 = por %p439, %p440
      %p442 = scmp.ne.s32.totalorder %s434, %s436
      %p443 = scmp.eq.s32.totalorder %s54, 1
      %p444 = por %p442, %p443
      %p445 = scmp.ne.s32.totalorder %s436, %s437
      %p446 = scmp.eq.s32.totalorder %s54, 0
      %p447 = por %p445, %p446
      %p448 = scmp.ne.s32.totalorder %s436, %s437
      %p449 = scmp.eq.s32.totalorder %s55, 1
      %p450 = por %p448, %p449
      %p452 = scmp.ne.s32.totalorder %s437, %s451
      %p453 = scmp.eq.s32.totalorder %s55, 0
      %p454 = por %p452, %p453
      %s456 = sadd.s32 %s455, 1
      %p459 = scmp.eq.s32.totalorder %s49, 1
      %p460 = scmp.ne.s32.totalorder %s455, %s457
      %p461 = scmp.eq.s32.totalorder %s49, 0
      %p462 = por %p460, %p461
      %p463 = scmp.ne.s32.totalorder %s455, %s457
      %p464 = scmp.eq.s32.totalorder %s54, 1
      %p465 = por %p463, %p464
      %p466 = scmp.ne.s32.totalorder %s457, %s458
      %p467 = scmp.eq.s32.totalorder %s54, 0
      %p468 = por %p466, %p467
      %p469 = scmp.ne.s32.totalorder %s457, %s458
      %p470 = scmp.eq.s32.totalorder %s55, 1
      %p471 = por %p469, %p470
      %p473 = scmp.ne.s32.totalorder %s458, %s472
      %p474 = scmp.eq.s32.totalorder %s55, 0
      %p475 = por %p473, %p474
      %s477 = sadd.s32 %s476, 1
      %p480 = scmp.eq.s32.totalorder %s49, 1
      %p481 = scmp.ne.s32.totalorder %s476, %s478
      %p482 = scmp.eq.s32.totalorder %s49, 0
      %p483 = por %p481, %p482
      %p484 = scmp.ne.s32.totalorder %s476, %s478
      %p485 = scmp.eq.s32.totalorder %s54, 1
      %p486 = por %p484, %p485
      %p487 = scmp.ne.s32.totalorder %s478, %s479
      %p488 = scmp.eq.s32.totalorder %s54, 0
      %p489 = por %p487, %p488
      %p490 = scmp.ne.s32.totalorder %s478, %s479
      %p491 = scmp.eq.s32.totalorder %s55, 1
      %p492 = por %p490, %p491
      %p494 = scmp.ne.s32.totalorder %s479, %s493
      %p495 = scmp.eq.s32.totalorder %s55, 0
      %p496 = por %p494, %p495
      %s498 = sadd.s32 %s497, 1
      %p501 = scmp.eq.s32.totalorder %s49, 1
      %p502 = scmp.ne.s32.totalorder %s497, %s499
      %p503 = scmp.eq.s32.totalorder %s49, 0
      %p504 = por %p502, %p503
      %p505 = scmp.ne.s32.totalorder %s497, %s499
      %p506 = scmp.eq.s32.totalorder %s54, 1
      %p507 = por %p505, %p506
      %p508 = scmp.ne.s32.totalorder %s499, %s500
      %p509 = scmp.eq.s32.totalorder %s54, 0
      %p510 = por %p508, %p509
      %p511 = scmp.ne.s32.totalorder %s499, %s500
      %p512 = scmp.eq.s32.totalorder %s55, 1
      %p513 = por %p511, %p512
      %p515 = scmp.ne.s32.totalorder %s500, %s514
      %p516 = scmp.eq.s32.totalorder %s55, 0
      %p517 = por %p515, %p516
      %s519 = sadd.s32 %s518, 1
      %p522 = scmp.eq.s32.totalorder %s49, 1
      %p523 = scmp.ne.s32.totalorder %s518, %s520
      %p524 = scmp.eq.s32.totalorder %s49, 0
      %p525 = por %p523, %p524
      %p526 = scmp.ne.s32.totalorder %s518, %s520
      %p527 = scmp.eq.s32.totalorder %s54, 1
      %p528 = por %p526, %p527
      %p529 = scmp.ne.s32.totalorder %s520, %s521
      %p530 = scmp.eq.s32.totalorder %s54, 0
      %p531 = por %p529, %p530
      %p532 = scmp.ne.s32.totalorder %s520, %s521
      %p533 = scmp.eq.s32.totalorder %s55, 1
      %p534 = por %p532, %p533
      %p536 = scmp.ne.s32.totalorder %s521, %s535
      %p537 = scmp.eq.s32.totalorder %s55, 0
      %p538 = por %p536, %p537
      %s540 = sadd.s32 %s539, 1
      %p543 = scmp.eq.s32.totalorder %s49, 1
      %p544 = scmp.ne.s32.totalorder %s539, %s541
      %p545 = scmp.eq.s32.totalorder %s49, 0
      %p546 = por %p544, %p545
      %p547 = scmp.ne.s32.totalorder %s539, %s541
      %p548 = scmp.eq.s32.totalorder %s54, 1
      %p549 = por %p547, %p548
      %p550 = scmp.ne.s32.totalorder %s541, %s542
      %p551 = scmp.eq.s32.totalorder %s54, 0
      %p552 = por %p550, %p551
      %p553 = scmp.ne.s32.totalorder %s541, %s542
      %p554 = scmp.eq.s32.totalorder %s55, 1
      %p555 = por %p553, %p554
      %p557 = scmp.ne.s32.totalorder %s542, %s556
      %p558 = scmp.eq.s32.totalorder %s55, 0
      %p559 = por %p557, %p558
      %s561 = sadd.s32 %s560, 1
      %p564 = scmp.eq.s32.totalorder %s49, 1
      %p565 = scmp.ne.s32.totalorder %s560, %s562
      %p566 = scmp.eq.s32.totalorder %s49, 0
      %p567 = por %p565, %p566
      %p568 = scmp.ne.s32.totalorder %s560, %s562
      %p569 = scmp.eq.s32.totalorder %s54, 1
      %p570 = por %p568, %p569
      %p571 = scmp.ne.s32.totalorder %s562, %s563
      %p572 = scmp.eq.s32.totalorder %s54, 0
      %p573 = por %p571, %p572
      %p574 = scmp.ne.s32.totalorder %s562, %s563
      %p575 = scmp.eq.s32.totalorder %s55, 1
      %p576 = por %p574, %p575
      %p578 = scmp.ne.s32.totalorder %s563, %s577
      %p579 = scmp.eq.s32.totalorder %s55, 0
      %p580 = por %p578, %p579
      %s582 = sadd.s32 %s581, 1
      %p585 = scmp.eq.s32.totalorder %s49, 1
      %p586 = scmp.ne.s32.totalorder %s581, %s583
      %p587 = scmp.eq.s32.totalorder %s49, 0
      %p588 = por %p586, %p587
      %p589 = scmp.ne.s32.totalorder %s581, %s583
      %p590 = scmp.eq.s32.totalorder %s54, 1
      %p591 = por %p589, %p590
      %p592 = scmp.ne.s32.totalorder %s583, %s584
      %p593 = scmp.eq.s32.totalorder %s54, 0
      %p594 = por %p592, %p593
      %p595 = scmp.ne.s32.totalorder %s583, %s584
      %p596 = scmp.eq.s32.totalorder %s55, 1
      %p597 = por %p595, %p596
      %p599 = scmp.ne.s32.totalorder %s584, %s598
      %p600 = scmp.eq.s32.totalorder %s55, 0
      %p601 = por %p599, %p600
      %s603 = sadd.s32 %s602, 1
      %p606 = scmp.eq.s32.totalorder %s49, 1
      %p607 = scmp.ne.s32.totalorder %s602, %s604
      %p608 = scmp.eq.s32.totalorder %s49, 0
      %p609 = por %p607, %p608
      %p610 = scmp.ne.s32.totalorder %s602, %s604
      %p611 = scmp.eq.s32.totalorder %s54, 1
      %p612 = por %p610, %p611
      %p613 = scmp.ne.s32.totalorder %s604, %s605
      %p614 = scmp.eq.s32.totalorder %s54, 0
      %p615 = por %p613, %p614
      %p616 = scmp.ne.s32.totalorder %s604, %s605
      %p617 = scmp.eq.s32.totalorder %s55, 1
      %p618 = por %p616, %p617
      %p620 = scmp.ne.s32.totalorder %s605, %s619
      %p621 = scmp.eq.s32.totalorder %s55, 0
      %p622 = por %p620, %p621
      %s624 = sadd.s32 %s623, 1
      %p627 = scmp.eq.s32.totalorder %s49, 1
      %p628 = scmp.ne.s32.totalorder %s623, %s625
      %p629 = scmp.eq.s32.totalorder %s49, 0
      %p630 = por %p628, %p629
      %p631 = scmp.ne.s32.totalorder %s623, %s625
      %p632 = scmp.eq.s32.totalorder %s54, 1
      %p633 = por %p631, %p632
      %p634 = scmp.ne.s32.totalorder %s625, %s626
      %p635 = scmp.eq.s32.totalorder %s54, 0
      %p636 = por %p634, %p635
      %p637 = scmp.ne.s32.totalorder %s625, %s626
      %p638 = scmp.eq.s32.totalorder %s55, 1
      %p639 = por %p637, %p638
      %p641 = scmp.ne.s32.totalorder %s626, %s640
      %p642 = scmp.eq.s32.totalorder %s55, 0
      %p643 = por %p641, %p642
      %s644 = ssub.s32 %s49, %s56
      %p645 = scmp.eq.s32.totalorder %s644, 0
      %s647 = sadd.s32 %s646, 1
      %s648 = scalar_select %p645, %s646, %s647
      %p651 = pneg %p645
      %p652 = scmp.eq.s32.totalorder %s49, 1
      %p653 = por %p651, %p652
      %p654 = scmp.ne.s32.totalorder %s646, %s649
      %p655 = scmp.eq.s32.totalorder %s49, 0
      %p656 = por %p654, %p655
      %p657 = scmp.ne.s32.totalorder %s646, %s649
      %p658 = scmp.eq.s32.totalorder %s54, 1
      %p659 = por %p657, %p658
      %p660 = scmp.ne.s32.totalorder %s649, %s650
      %p661 = scmp.eq.s32.totalorder %s54, 0
      %p662 = por %p660, %p661
      %p663 = scmp.ne.s32.totalorder %s649, %s650
      %p664 = scmp.eq.s32.totalorder %s55, 1
      %p665 = por %p663, %p664
      %p667 = scmp.ne.s32.totalorder %s650, %s666
      %p668 = scmp.eq.s32.totalorder %s55, 0
      %p669 = por %p667, %p668
      %p670 = scmp.le.s32.totalorder 1, %s49
      %p671 = scmp.lt.s32.totalorder %s49, 3
      %p672 = pnand %p670, %p671
      %p673 = pneg %p672
      // Predicated region
      $region9: #{tpu_custom_call.1} parent=5 // pred_check
        _
      $region10: #{tpu_custom_call.1} parent=5 // pred_check_branch
        %675 = sbr.rel (%p672) target = $region12
      $region11: #{tpu_custom_call.1} parent=5 // pred_region
        %s676 = ssub.s32 %s49, 1
        // Predicated region
        $region13: #{tpu_custom_call.1} parent=11 // pred_check
          %p677 = pneg %p148
        $region14: #{tpu_custom_call.1} parent=11 // pred_check_branch
          %679 = sbr.rel (%p677) target = $region16
        $region15: #{tpu_custom_call.1} parent=11 // pred_region
          %s681 = ssub.s32 256, 256
          %682 = vsyncadd [#allocation9], %s681
          %s683 = sshll.u32 [#allocation8], 4
          %s684 = int_to_ptr.vmem [resolvable:$true] %s683
          %689 = dma.hbm_to_vmem [thread:$0]  %s3, 256, %s684, [#allocation9], 128, 128, 8
        $region16: #{tpu_custom_call.1} parent=11 // pred_fallthru
          _
        // Predicated region
        $region17: #{tpu_custom_call.1} parent=11 // pred_check
          %p690 = pneg %p195
        $region18: #{tpu_custom_call.1} parent=11 // pred_check_branch
          %692 = sbr.rel (%p690) target = $region20
        $region19: #{tpu_custom_call.1} parent=11 // pred_region
          %s694 = ssub.s32 3072, 3072
          %695 = vsyncadd [#allocation6], %s694
          %s696 = sshll.u32 [#allocation11], 4
          %s697 = int_to_ptr.vmem [resolvable:$true] %s696
          %702 = dma.hbm_to_vmem [thread:$0]  %s5, 3072, %s697, [#allocation6], 64, 64, 4
        $region20: #{tpu_custom_call.1} parent=11 // pred_fallthru
          _
        // Predicated region
        $region21: #{tpu_custom_call.1} parent=11 // pred_check
          %p703 = pneg %p216
        $region22: #{tpu_custom_call.1} parent=11 // pred_check_branch
          %705 = sbr.rel (%p703) target = $region24
        $region23: #{tpu_custom_call.1} parent=11 // pred_region
          %s707 = ssub.s32 48, 48
          %708 = vsyncadd [#allocation9], %s707
          %s710 = sshll.u32 [#allocation12], 4
          %s711 = int_to_ptr.vmem [resolvable:$true] %s710
          %713 = dma.hbm_to_vmem [thread:$0]  %s6, 48, %s711, [#allocation9]
        $region24: #{tpu_custom_call.1} parent=11 // pred_fallthru
          _
        // Predicated region
        $region25: #{tpu_custom_call.1} parent=11 // pred_check
          %p714 = pneg %p237
        $region26: #{tpu_custom_call.1} parent=11 // pred_check_branch
          %716 = sbr.rel (%p714) target = $region28
        $region27: #{tpu_custom_call.1} parent=11 // pred_region
          %s718 = ssub.s32 1024, 1024
          %719 = vsyncadd [#allocation14], %s718
          %s720 = sshll.u32 [#allocation13], 4
          %s721 = int_to_ptr.vmem [resolvable:$true] %s720
          %726 = dma.hbm_to_vmem [thread:$0]  %s7, 1024, %s721, [#allocation14], 64, 64, 4
        $region28: #{tpu_custom_call.1} parent=11 // pred_fallthru
          _
        // Predicated region
        $region29: #{tpu_custom_call.1} parent=11 // pred_check
          %p727 = pneg %p258
        $region30: #{tpu_custom_call.1} parent=11 // pred_check_branch
          %729 = sbr.rel (%p727) target = $region32
        $region31: #{tpu_custom_call.1} parent=11 // pred_region
          %s731 = ssub.s32 16, 16
          %732 = vsyncadd [#allocation14], %s731
          %s734 = sshll.u32 [#allocation15], 4
          %s735 = int_to_ptr.vmem [resolvable:$true] %s734
          %737 = dma.hbm_to_vmem [thread:$0]  %s8, 16, %s735, [#allocation14]
        $region32: #{tpu_custom_call.1} parent=11 // pred_fallthru
          _
        // Predicated region
        $region33: #{tpu_custom_call.1} parent=11 // pred_check
          %p738 = pneg %p279
        $region34: #{tpu_custom_call.1} parent=11 // pred_check_branch
          %740 = sbr.rel (%p738) target = $region36
        $region35: #{tpu_custom_call.1} parent=11 // pred_region
          %s742 = ssub.s32 16, 16
          %743 = vsyncadd [#allocation17], %s742
          %s745 = sshll.u32 [#allocation16], 4
          %s746 = int_to_ptr.vmem [resolvable:$true] %s745
          %748 = dma.hbm_to_vmem [thread:$0]  %s9, 16, %s746, [#allocation17]
        $region36: #{tpu_custom_call.1} parent=11 // pred_fallthru
          _
        // Predicated region
        $region37: #{tpu_custom_call.1} parent=11 // pred_check
          %p749 = pneg %p300
        $region38: #{tpu_custom_call.1} parent=11 // pred_check_branch
          %751 = sbr.rel (%p749) target = $region40
        $region39: #{tpu_custom_call.1} parent=11 // pred_region
          %s753 = ssub.s32 16, 16
          %754 = vsyncadd [#allocation17], %s753
          %s756 = sshll.u32 [#allocation18], 4
          %s757 = int_to_ptr.vmem [resolvable:$true] %s756
          %759 = dma.hbm_to_vmem [thread:$0]  %s10, 16, %s757, [#allocation17]
        $region40: #{tpu_custom_call.1} parent=11 // pred_fallthru
          _
        // Predicated region
        $region41: #{tpu_custom_call.1} parent=11 // pred_check
          %p760 = pneg %p321
        $region42: #{tpu_custom_call.1} parent=11 // pred_check_branch
          %762 = sbr.rel (%p760) target = $region44
        $region43: #{tpu_custom_call.1} parent=11 // pred_region
          %s764 = ssub.s32 1024, 1024
          %765 = vsyncadd [#allocation20], %s764
          %s766 = sshll.u32 [#allocation19], 4
          %s767 = int_to_ptr.vmem [resolvable:$true] %s766
          %772 = dma.hbm_to_vmem [thread:$0]  %s11, 1024, %s767, [#allocation20], 64, 64, 4
        $region44: #{tpu_custom_call.1} parent=11 // pred_fallthru
          _
        // Predicated region
        $region45: #{tpu_custom_call.1} parent=11 // pred_check
          %p773 = pneg %p342
        $region46: #{tpu_custom_call.1} parent=11 // pred_check_branch
          %775 = sbr.rel (%p773) target = $region48
        $region47: #{tpu_custom_call.1} parent=11 // pred_region
          %s777 = ssub.s32 16, 16
          %778 = vsyncadd [#allocation20], %s777
          %s780 = sshll.u32 [#allocation21], 4
          %s781 = int_to_ptr.vmem [resolvable:$true] %s780
          %783 = dma.hbm_to_vmem [thread:$0]  %s12, 16, %s781, [#allocation20]
        $region48: #{tpu_custom_call.1} parent=11 // pred_fallthru
          _
        // Predicated region
        $region49: #{tpu_custom_call.1} parent=11 // pred_check
          %p784 = pneg %p363
        $region50: #{tpu_custom_call.1} parent=11 // pred_check_branch
          %786 = sbr.rel (%p784) target = $region52
        $region51: #{tpu_custom_call.1} parent=11 // pred_region
          %s788 = ssub.s32 1024, 1024
          %789 = vsyncadd [#allocation23], %s788
          %s790 = sshll.u32 [#allocation22], 4
          %s791 = int_to_ptr.vmem [resolvable:$true] %s790
          %796 = dma.hbm_to_vmem [thread:$0]  %s13, 1024, %s791, [#allocation23], 64, 64, 4
        $region52: #{tpu_custom_call.1} parent=11 // pred_fallthru
          _
        // Predicated region
        $region53: #{tpu_custom_call.1} parent=11 // pred_check
          %p797 = pneg %p384
        $region54: #{tpu_custom_call.1} parent=11 // pred_check_branch
          %799 = sbr.rel (%p797) target = $region56
        $region55: #{tpu_custom_call.1} parent=11 // pred_region
          %s801 = ssub.s32 16, 16
          %802 = vsyncadd [#allocation23], %s801
          %s804 = sshll.u32 [#allocation24], 4
          %s805 = int_to_ptr.vmem [resolvable:$true] %s804
          %807 = dma.hbm_to_vmem [thread:$0]  %s14, 16, %s805, [#allocation23]
        $region56: #{tpu_custom_call.1} parent=11 // pred_fallthru
          _
        // Predicated region
        $region57: #{tpu_custom_call.1} parent=11 // pred_check
          %p808 = pneg %p405
        $region58: #{tpu_custom_call.1} parent=11 // pred_check_branch
          %810 = sbr.rel (%p808) target = $region60
        $region59: #{tpu_custom_call.1} parent=11 // pred_region
          %s812 = ssub.s32 1024, 1024
          %813 = vsyncadd [#allocation26], %s812
          %s814 = sshll.u32 [#allocation25], 4
          %s815 = int_to_ptr.vmem [resolvable:$true] %s814
          %820 = dma.hbm_to_vmem [thread:$0]  %s15, 1024, %s815, [#allocation26], 64, 64, 4
        $region60: #{tpu_custom_call.1} parent=11 // pred_fallthru
          _
        // Predicated region
        $region61: #{tpu_custom_call.1} parent=11 // pred_check
          %p821 = pneg %p426
        $region62: #{tpu_custom_call.1} parent=11 // pred_check_branch
          %823 = sbr.rel (%p821) target = $region64
        $region63: #{tpu_custom_call.1} parent=11 // pred_region
          %s825 = ssub.s32 16, 16
          %826 = vsyncadd [#allocation26], %s825
          %s828 = sshll.u32 [#allocation27], 4
          %s829 = int_to_ptr.vmem [resolvable:$true] %s828
          %831 = dma.hbm_to_vmem [thread:$0]  %s16, 16, %s829, [#allocation26]
        $region64: #{tpu_custom_call.1} parent=11 // pred_fallthru
          _
        // Predicated region
        $region65: #{tpu_custom_call.1} parent=11 // pred_check
          %p832 = pneg %p447
        $region66: #{tpu_custom_call.1} parent=11 // pred_check_branch
          %834 = sbr.rel (%p832) target = $region68
        $region67: #{tpu_custom_call.1} parent=11 // pred_region
          _
        $region68: #{tpu_custom_call.1} parent=11 // pred_fallthru
          _
        // Predicated region
        $region69: #{tpu_custom_call.1} parent=11 // pred_check
          %p835 = pneg %p468
        $region70: #{tpu_custom_call.1} parent=11 // pred_check_branch
          %837 = sbr.rel (%p835) target = $region72
        $region71: #{tpu_custom_call.1} parent=11 // pred_region
          _
        $region72: #{tpu_custom_call.1} parent=11 // pred_fallthru
          _
        // Predicated region
        $region73: #{tpu_custom_call.1} parent=11 // pred_check
          %p838 = pneg %p489
        $region74: #{tpu_custom_call.1} parent=11 // pred_check_branch
          %840 = sbr.rel (%p838) target = $region76
        $region75: #{tpu_custom_call.1} parent=11 // pred_region
          _
        $region76: #{tpu_custom_call.1} parent=11 // pred_fallthru
          _
        // Predicated region
        $region77: #{tpu_custom_call.1} parent=11 // pred_check
          %p841 = pneg %p510
        $region78: #{tpu_custom_call.1} parent=11 // pred_check_branch
          %843 = sbr.rel (%p841) target = $region80
        $region79: #{tpu_custom_call.1} parent=11 // pred_region
          _
        $region80: #{tpu_custom_call.1} parent=11 // pred_fallthru
          _
        // Predicated region
        $region81: #{tpu_custom_call.1} parent=11 // pred_check
          %p844 = pneg %p531
        $region82: #{tpu_custom_call.1} parent=11 // pred_check_branch
          %846 = sbr.rel (%p844) target = $region84
        $region83: #{tpu_custom_call.1} parent=11 // pred_region
          %s848 = ssub.s32 2048, 2048
          %849 = vsyncadd [#allocation29], %s848
          %s850 = sshll.u32 [#allocation28], 4
          %s851 = int_to_ptr.vmem [resolvable:$true] %s850
          %856 = dma.hbm_to_vmem [thread:$0]  %s21, 2048, %s851, [#allocation29], 64, 64, 4
        $region84: #{tpu_custom_call.1} parent=11 // pred_fallthru
          _
        // Predicated region
        $region85: #{tpu_custom_call.1} parent=11 // pred_check
          %p857 = pneg %p552
        $region86: #{tpu_custom_call.1} parent=11 // pred_check_branch
          %859 = sbr.rel (%p857) target = $region88
        $region87: #{tpu_custom_call.1} parent=11 // pred_region
          _
        $region88: #{tpu_custom_call.1} parent=11 // pred_fallthru
          _
        // Predicated region
        $region89: #{tpu_custom_call.1} parent=11 // pred_check
          %p860 = pneg %p573
        $region90: #{tpu_custom_call.1} parent=11 // pred_check_branch
          %862 = sbr.rel (%p860) target = $region92
        $region91: #{tpu_custom_call.1} parent=11 // pred_region
          %s864 = ssub.s32 2048, 2048
          %865 = vsyncadd [#allocation29], %s864
          %s866 = sshll.u32 [#allocation30], 4
          %s867 = int_to_ptr.vmem [resolvable:$true] %s866
          %872 = dma.hbm_to_vmem [thread:$0]  %s23, 2048, %s867, [#allocation29], 128, 128, 8
        $region92: #{tpu_custom_call.1} parent=11 // pred_fallthru
          _
        // Predicated region
        $region93: #{tpu_custom_call.1} parent=11 // pred_check
          %p873 = pneg %p594
        $region94: #{tpu_custom_call.1} parent=11 // pred_check_branch
          %875 = sbr.rel (%p873) target = $region96
        $region95: #{tpu_custom_call.1} parent=11 // pred_region
          _
        $region96: #{tpu_custom_call.1} parent=11 // pred_fallthru
          _
        // Predicated region
        $region97: #{tpu_custom_call.1} parent=11 // pred_check
          %p876 = pneg %p615
        $region98: #{tpu_custom_call.1} parent=11 // pred_check_branch
          %878 = sbr.rel (%p876) target = $region100
        $region99: #{tpu_custom_call.1} parent=11 // pred_region
          _
        $region100: #{tpu_custom_call.1} parent=11 // pred_fallthru
          _
        // Predicated region
        $region101: #{tpu_custom_call.1} parent=11 // pred_check
          %p879 = pneg %p636
        $region102: #{tpu_custom_call.1} parent=11 // pred_check_branch
          %881 = sbr.rel (%p879) target = $region104
        $region103: #{tpu_custom_call.1} parent=11 // pred_region
          _
        $region104: #{tpu_custom_call.1} parent=11 // pred_fallthru
          _
      $region12: #{tpu_custom_call.1} parent=5 // pred_fallthru
        _
      %p882 = scmp.lt.s32.totalorder %s49, 2
      // Predicated region
      $region105: #{tpu_custom_call.1} parent=5 // pred_check
        %p883 = pneg %p882
      $region106: #{tpu_custom_call.1} parent=5 // pred_check_branch
        %885 = sbr.rel (%p883) target = $region108
      $region107: #{tpu_custom_call.1} parent=5 // pred_region
        // Predicated region
        $region109: #{tpu_custom_call.1} parent=107 // pred_check
          %p886 = pneg %p69
        $region110: #{tpu_custom_call.1} parent=107 // pred_check_branch
          %888 = sbr.rel (%p886) target = $region112
        $region111: #{tpu_custom_call.1} parent=107 // pred_region
          %s889 = sand.u32 %s49, 1
          %s890 = scalar_lea.sflag [#allocation3], %s889
          %s891 = sand.u32 %s59, 1
          %s892 = smul.addr %s891, 16
          %s893 = scalar_lea.vmem [#allocation2], %s892
          %s895 = ssub.s32 256, 256
          %896 = vsyncadd %s890, %s895
          %s897 = smul.addr %s49, 2
          %s898 = smul.addr %s897, 128
          %s899 = scalar_lea.hbm %s0, %s898
          %s900 = sshll.u32 %s893, 4
          %s901 = int_to_ptr.vmem [resolvable:$true] %s900
          %906 = dma.hbm_to_vmem [thread:$0]  %s899, 256, %s901, %s890, 128, 128, 8
        $region112: #{tpu_custom_call.1} parent=107 // pred_fallthru
          _
        // Predicated region
        $region113: #{tpu_custom_call.1} parent=107 // pred_check
          %p907 = pneg %p95
        $region114: #{tpu_custom_call.1} parent=107 // pred_check_branch
          %909 = sbr.rel (%p907) target = $region116
        $region115: #{tpu_custom_call.1} parent=107 // pred_region
          %s910 = sand.u32 %s49, 1
          %s911 = scalar_lea.sflag [#allocation6], %s910
          %s912 = sand.u32 %s85, 1
          %s913 = smul.addr %s912, 24
          %s914 = scalar_lea.vmem [#allocation5], %s913
          %s916 = ssub.s32 384, 384
          %917 = vsyncadd %s911, %s916
          %s918 = smul.addr %s49, 3
          %s919 = smul.addr %s918, 128
          %s920 = scalar_lea.hbm %s1, %s919
          %s921 = sshll.u32 %s914, 4
          %s922 = int_to_ptr.vmem [resolvable:$true] %s921
          %927 = dma.hbm_to_vmem [thread:$0]  %s920, 384, %s922, %s911, 128, 128, 8
        $region116: #{tpu_custom_call.1} parent=107 // pred_fallthru
          _
        // Predicated region
        $region117: #{tpu_custom_call.1} parent=107 // pred_check
          %p928 = pneg %p121
        $region118: #{tpu_custom_call.1} parent=107 // pred_check_branch
          %930 = sbr.rel (%p928) target = $region120
        $region119: #{tpu_custom_call.1} parent=107 // pred_region
          %s931 = sand.u32 %s49, 1
          %s932 = scalar_lea.sflag [#allocation6], %s931
          %s933 = sand.u32 %s111, 1
          %s934 = smul.addr %s933, 24
          %s935 = scalar_lea.vmem [#allocation7], %s934
          %s937 = ssub.s32 384, 384
          %938 = vsyncadd %s932, %s937
          %s939 = smul.addr %s49, 3
          %s940 = smul.addr %s939, 128
          %s941 = scalar_lea.hbm %s2, %s940
          %s942 = sshll.u32 %s935, 4
          %s943 = int_to_ptr.vmem [resolvable:$true] %s942
          %948 = dma.hbm_to_vmem [thread:$0]  %s941, 384, %s943, %s932, 128, 128, 8
        $region120: #{tpu_custom_call.1} parent=107 // pred_fallthru
          _
        // Predicated region
        $region121: #{tpu_custom_call.1} parent=107 // pred_check
          %p949 = pneg %p168
        $region122: #{tpu_custom_call.1} parent=107 // pred_check_branch
          %951 = sbr.rel (%p949) target = $region124
        $region123: #{tpu_custom_call.1} parent=107 // pred_region
          %s952 = sand.u32 %s49, 1
          %s953 = scalar_lea.sflag [#allocation3], %s952
          %s954 = sand.u32 %s158, 1
          %s955 = smul.addr %s954, 64
          %s956 = scalar_lea.vmem [#allocation10], %s955
          %s958 = ssub.s32 1024, 1024
          %959 = vsyncadd %s953, %s958
          %s960 = smul.addr %s49, 8
          %s961 = smul.addr %s960, 128
          %s962 = scalar_lea.hbm %s4, %s961
          %s963 = sshll.u32 %s956, 4
          %s964 = int_to_ptr.vmem [resolvable:$true] %s963
          %969 = dma.hbm_to_vmem [thread:$0]  %s962, 1024, %s964, %s953, 128, 128, 8
        $region124: #{tpu_custom_call.1} parent=107 // pred_fallthru
          _
      $region108: #{tpu_custom_call.1} parent=5 // pred_fallthru
        _
      %p970 = scmp.le.s32.totalorder 1, %s49
      %p971 = scmp.lt.s32.totalorder %s49, 3
      %p972 = pnand %p970, %p971
      %p973 = pneg %p972
      // Predicated region
      $region125: #{tpu_custom_call.1} parent=5 // pred_check
        _
      $region126: #{tpu_custom_call.1} parent=5 // pred_check_branch
        %975 = sbr.rel (%p972) target = $region128
      $region127: #{tpu_custom_call.1} parent=5 // pred_region
        %s976 = ssub.s32 %s49, 1
        %s977 = sand.u32 %s54, 1
        %s978 = scalar_lea.sflag [#allocation3], %s977
        %s979 = sand.u32 %s62, 1
        %s980 = smul.addr %s979, 16
        %s981 = scalar_lea.vmem [#allocation2], %s980
        // Predicated region
        $region129: #{tpu_custom_call.1} parent=127 // pred_check
          %p982 = pneg %p75
        $region130: #{tpu_custom_call.1} parent=127 // pred_check_branch
          %984 = sbr.rel (%p982) target = $region132
        $region131: #{tpu_custom_call.1} parent=127 // pred_region
          %985 = dma.done %s978, 256
        $region132: #{tpu_custom_call.1} parent=127 // pred_fallthru
          _
        %s986 = sand.u32 %s54, 1
        %s987 = scalar_lea.sflag [#allocation6], %s986
        %s988 = sand.u32 %s88, 1
        %s989 = smul.addr %s988, 24
        %s990 = scalar_lea.vmem [#allocation5], %s989
        // Predicated region
        $region133: #{tpu_custom_call.1} parent=127 // pred_check
          %p991 = pneg %p101
        $region134: #{tpu_custom_call.1} parent=127 // pred_check_branch
          %993 = sbr.rel (%p991) target = $region136
        $region135: #{tpu_custom_call.1} parent=127 // pred_region
          %994 = dma.done %s987, 384
        $region136: #{tpu_custom_call.1} parent=127 // pred_fallthru
          _
        %s995 = sand.u32 %s54, 1
        %s996 = scalar_lea.sflag [#allocation6], %s995
        %s997 = sand.u32 %s114, 1
        %s998 = smul.addr %s997, 24
        %s999 = scalar_lea.vmem [#allocation7], %s998
        // Predicated region
        $region137: #{tpu_custom_call.1} parent=127 // pred_check
          %p1000 = pneg %p127
        $region138: #{tpu_custom_call.1} parent=127 // pred_check_branch
          %1002 = sbr.rel (%p1000) target = $region140
        $region139: #{tpu_custom_call.1} parent=127 // pred_region
          %1003 = dma.done %s996, 384
        $region140: #{tpu_custom_call.1} parent=127 // pred_fallthru
          _
        // Predicated region
        $region141: #{tpu_custom_call.1} parent=127 // pred_check
          %p1004 = pneg %p148
        $region142: #{tpu_custom_call.1} parent=127 // pred_check_branch
          %1006 = sbr.rel (%p1004) target = $region144
        $region143: #{tpu_custom_call.1} parent=127 // pred_region
          %1007 = dma.done [#allocation9], 256
        $region144: #{tpu_custom_call.1} parent=127 // pred_fallthru
          _
        %s1008 = sand.u32 %s54, 1
        %s1009 = scalar_lea.sflag [#allocation3], %s1008
        %s1010 = sand.u32 %s161, 1
        %s1011 = smul.addr %s1010, 64
        %s1012 = scalar_lea.vmem [#allocation10], %s1011
        // Predicated region
        $region145: #{tpu_custom_call.1} parent=127 // pred_check
          %p1013 = pneg %p174
        $region146: #{tpu_custom_call.1} parent=127 // pred_check_branch
          %1015 = sbr.rel (%p1013) target = $region148
        $region147: #{tpu_custom_call.1} parent=127 // pred_region
          %1016 = dma.done %s1009, 1024
        $region148: #{tpu_custom_call.1} parent=127 // pred_fallthru
          _
        // Predicated region
        $region149: #{tpu_custom_call.1} parent=127 // pred_check
          %p1017 = pneg %p195
        $region150: #{tpu_custom_call.1} parent=127 // pred_check_branch
          %1019 = sbr.rel (%p1017) target = $region152
        $region151: #{tpu_custom_call.1} parent=127 // pred_region
          %1020 = dma.done [#allocation6], 3072
        $region152: #{tpu_custom_call.1} parent=127 // pred_fallthru
          _
        // Predicated region
        $region153: #{tpu_custom_call.1} parent=127 // pred_check
          %p1021 = pneg %p216
        $region154: #{tpu_custom_call.1} parent=127 // pred_check_branch
          %1023 = sbr.rel (%p1021) target = $region156
        $region155: #{tpu_custom_call.1} parent=127 // pred_region
          %1024 = dma.done [#allocation9], 48
        $region156: #{tpu_custom_call.1} parent=127 // pred_fallthru
          _
        // Predicated region
        $region157: #{tpu_custom_call.1} parent=127 // pred_check
          %p1025 = pneg %p237
        $region158: #{tpu_custom_call.1} parent=127 // pred_check_branch
          %1027 = sbr.rel (%p1025) target = $region160
        $region159: #{tpu_custom_call.1} parent=127 // pred_region
          %1028 = dma.done [#allocation14], 1024
        $region160: #{tpu_custom_call.1} parent=127 // pred_fallthru
          _
        // Predicated region
        $region161: #{tpu_custom_call.1} parent=127 // pred_check
          %p1029 = pneg %p258
        $region162: #{tpu_custom_call.1} parent=127 // pred_check_branch
          %1031 = sbr.rel (%p1029) target = $region164
        $region163: #{tpu_custom_call.1} parent=127 // pred_region
          %1032 = dma.done [#allocation14], 16
        $region164: #{tpu_custom_call.1} parent=127 // pred_fallthru
          _
        // Predicated region
        $region165: #{tpu_custom_call.1} parent=127 // pred_check
          %p1033 = pneg %p279
        $region166: #{tpu_custom_call.1} parent=127 // pred_check_branch
          %1035 = sbr.rel (%p1033) target = $region168
        $region167: #{tpu_custom_call.1} parent=127 // pred_region
          %1036 = dma.done [#allocation17], 16
        $region168: #{tpu_custom_call.1} parent=127 // pred_fallthru
          _
        // Predicated region
        $region169: #{tpu_custom_call.1} parent=127 // pred_check
          %p1037 = pneg %p300
        $region170: #{tpu_custom_call.1} parent=127 // pred_check_branch
          %1039 = sbr.rel (%p1037) target = $region172
        $region171: #{tpu_custom_call.1} parent=127 // pred_region
          %1040 = dma.done [#allocation17], 16
        $region172: #{tpu_custom_call.1} parent=127 // pred_fallthru
          _
        // Predicated region
        $region173: #{tpu_custom_call.1} parent=127 // pred_check
          %p1041 = pneg %p321
        $region174: #{tpu_custom_call.1} parent=127 // pred_check_branch
          %1043 = sbr.rel (%p1041) target = $region176
        $region175: #{tpu_custom_call.1} parent=127 // pred_region
          %1044 = dma.done [#allocation20], 1024
        $region176: #{tpu_custom_call.1} parent=127 // pred_fallthru
          _
        // Predicated region
        $region177: #{tpu_custom_call.1} parent=127 // pred_check
          %p1045 = pneg %p342
        $region178: #{tpu_custom_call.1} parent=127 // pred_check_branch
          %1047 = sbr.rel (%p1045) target = $region180
        $region179: #{tpu_custom_call.1} parent=127 // pred_region
          %1048 = dma.done [#allocation20], 16
        $region180: #{tpu_custom_call.1} parent=127 // pred_fallthru
          _
        // Predicated region
        $region181: #{tpu_custom_call.1} parent=127 // pred_check
          %p1049 = pneg %p363
        $region182: #{tpu_custom_call.1} parent=127 // pred_check_branch
          %1051 = sbr.rel (%p1049) target = $region184
        $region183: #{tpu_custom_call.1} parent=127 // pred_region
          %1052 = dma.done [#allocation23], 1024
        $region184: #{tpu_custom_call.1} parent=127 // pred_fallthru
          _
        // Predicated region
        $region185: #{tpu_custom_call.1} parent=127 // pred_check
          %p1053 = pneg %p384
        $region186: #{tpu_custom_call.1} parent=127 // pred_check_branch
          %1055 = sbr.rel (%p1053) target = $region188
        $region187: #{tpu_custom_call.1} parent=127 // pred_region
          %1056 = dma.done [#allocation23], 16
        $region188: #{tpu_custom_call.1} parent=127 // pred_fallthru
          _
        // Predicated region
        $region189: #{tpu_custom_call.1} parent=127 // pred_check
          %p1057 = pneg %p405
        $region190: #{tpu_custom_call.1} parent=127 // pred_check_branch
          %1059 = sbr.rel (%p1057) target = $region192
        $region191: #{tpu_custom_call.1} parent=127 // pred_region
          %1060 = dma.done [#allocation26], 1024
        $region192: #{tpu_custom_call.1} parent=127 // pred_fallthru
          _
        // Predicated region
        $region193: #{tpu_custom_call.1} parent=127 // pred_check
          %p1061 = pneg %p426
        $region194: #{tpu_custom_call.1} parent=127 // pred_check_branch
          %1063 = sbr.rel (%p1061) target = $region196
        $region195: #{tpu_custom_call.1} parent=127 // pred_region
          %1064 = dma.done [#allocation26], 16
        $region196: #{tpu_custom_call.1} parent=127 // pred_fallthru
          _
        // Predicated region
        $region197: #{tpu_custom_call.1} parent=127 // pred_check
          %p1065 = pneg %p531
        $region198: #{tpu_custom_call.1} parent=127 // pred_check_branch
          %1067 = sbr.rel (%p1065) target = $region200
        $region199: #{tpu_custom_call.1} parent=127 // pred_region
          %1068 = dma.done [#allocation29], 2048
        $region200: #{tpu_custom_call.1} parent=127 // pred_fallthru
          _
        // Predicated region
        $region201: #{tpu_custom_call.1} parent=127 // pred_check
          %p1069 = pneg %p573
        $region202: #{tpu_custom_call.1} parent=127 // pred_check_branch
          %1071 = sbr.rel (%p1069) target = $region204
        $region203: #{tpu_custom_call.1} parent=127 // pred_region
          %1072 = dma.done [#allocation29], 2048
        $region204: #{tpu_custom_call.1} parent=127 // pred_fallthru
          _
        %s1073 = sand.u32 %s54, 1
        %s1074 = scalar_lea.sflag [#allocation3], %s1073
        %s1075 = sand.u32 %s62, 1
        %s1076 = smul.addr %s1075, 16
        %s1077 = scalar_lea.vmem [#allocation2], %s1076
        %p1078 = pneg %p75
        %p1079 = pneg %p72
        %s1080 = sand.u32 %s54, 1
        %s1081 = scalar_lea.sflag [#allocation6], %s1080
        %s1082 = sand.u32 %s88, 1
        %s1083 = smul.addr %s1082, 24
        %s1084 = scalar_lea.vmem [#allocation5], %s1083
        %p1085 = pneg %p101
        %p1086 = pneg %p98
        %s1087 = sand.u32 %s54, 1
        %s1088 = scalar_lea.sflag [#allocation6], %s1087
        %s1089 = sand.u32 %s114, 1
        %s1090 = smul.addr %s1089, 24
        %s1091 = scalar_lea.vmem [#allocation7], %s1090
        %p1092 = pneg %p127
        %p1093 = pneg %p124
        %p1094 = pneg %p148
        %p1095 = pneg %p145
        %s1096 = sand.u32 %s54, 1
        %s1097 = scalar_lea.sflag [#allocation3], %s1096
        %s1098 = sand.u32 %s161, 1
        %s1099 = smul.addr %s1098, 64
        %s1100 = scalar_lea.vmem [#allocation10], %s1099
        %p1101 = pneg %p174
        %p1102 = pneg %p171
        %p1103 = pneg %p195
        %p1104 = pneg %p192
        %p1105 = pneg %p216
        %p1106 = pneg %p213
        %p1107 = pneg %p237
        %p1108 = pneg %p234
        %p1109 = pneg %p258
        %p1110 = pneg %p255
        %p1111 = pneg %p279
        %p1112 = pneg %p276
        %p1113 = pneg %p300
        %p1114 = pneg %p297
        %p1115 = pneg %p321
        %p1116 = pneg %p318
        %p1117 = pneg %p342
        %p1118 = pneg %p339
        %p1119 = pneg %p363
        %p1120 = pneg %p360
        %p1121 = pneg %p384
        %p1122 = pneg %p381
        %p1123 = pneg %p405
        %p1124 = pneg %p402
        %p1125 = pneg %p426
        %p1126 = pneg %p423
        %p1127 = pneg %p447
        %p1128 = pneg %p444
        %p1129 = pneg %p468
        %p1130 = pneg %p465
        %p1131 = pneg %p489
        %p1132 = pneg %p486
        %p1133 = pneg %p510
        %p1134 = pneg %p507
        %p1135 = pneg %p531
        %p1136 = pneg %p528
        %p1137 = pneg %p552
        %p1138 = pneg %p549
        %p1139 = pneg %p573
        %p1140 = pneg %p570
        %p1141 = pneg %p594
        %p1142 = pneg %p591
        %p1143 = pneg %p615
        %p1144 = pneg %p612
        %p1145 = pneg %p636
        %p1146 = pneg %p633
        %p1147 = pneg %p662
        %p1148 = pneg %p659
        %s1149 = sand.u32 %s649, 1
        %s1150 = scalar_lea.sflag [#allocation4], %s1149
        %s1151 = sand.u32 %s649, 1
        %s1152 = smul.addr %s1151, 16
        %s1153 = scalar_lea.vmem [#allocation31], %s1152
        %v1155 = vld [vmem:[%s981] sm:$0xff]
        %v1156 = vld [vmem:[%s981 + $0x8] sm:$0xff]
        %v1157 = vld [vmem:[#allocation8] sm:$0xff]
        %v1158 = vld [vmem:[#allocation8 + $0x8] sm:$0xff]
        %v1159 = vld [vmem:[#allocation16] sm:$0x1]
        %v1160 = vld [vmem:[#allocation18] sm:$0x1]
        %1161 = vadd.xlane.f32.xlu0 %v1155
        %v1162 = vpop.xlane.xlu0 %1161
        %1163 = vadd.xlane.f32.xlu0 %v1156
        %v1164 = vpop.xlane.xlu0 %1163
        %v1165 = vrcp.pop 128.0
        %v1166 = vmul.f32 %v1162, %v1165
        %v1167 = vmul.f32 %v1164, %v1165
        %v1168 = vsub.f32 %v1155, %v1166
        %v1169 = vsub.f32 %v1156, %v1167
        %v1170 = vmul.f32 %v1168, %v1168
        %v1171 = vmul.f32 %v1169, %v1169
        %1172 = vadd.xlane.f32.xlu0 %v1170
        %v1173 = vpop.xlane.xlu0 %1172
        %1174 = vadd.xlane.f32.xlu0 %v1171
        %v1175 = vpop.xlane.xlu0 %1174
        %v1176 = vmul.f32 %v1173, %v1165
        %v1177 = vmul.f32 %v1175, %v1165
        %v1178 = vadd.f32 %v1176, 1e-05
        %v1179 = vadd.f32 %v1177, 1e-05
        %v1180 = vrsqrt.pop %v1178
        %v1181 = vrsqrt.pop %v1179
        %v1182 = vmul.f32 %v1168, %v1180
        %v1183 = vmul.f32 %v1169, %v1181
        %v1185 = vlaneseq
        %v1186 = vshrl.u32 %v1185, 7
        %v1187 = vsub.s32 0, %v1186
        %v1188 = vrot.slane %v1159, %v1187
        %v1190 = vmul.f32 %v1182, %v1188
        %v1191 = vmul.f32 %v1183, %v1188
        %v1193 = vlaneseq
        %v1194 = vshrl.u32 %v1193, 7
        %v1195 = vsub.s32 0, %v1194
        %v1196 = vrot.slane %v1160, %v1195
        %v1198 = vadd.f32 %v1190, %v1196
        %v1199 = vadd.f32 %v1191, %v1196
        %v1200 = vpack.c.bf16 %v1199, %v1198
        %v1201 = vld [vmem:[#allocation11] sm:$0xf]
        %v1202 = vld [vmem:[#allocation11 + $0x4] sm:$0xf]
        %v1203 = vld [vmem:[#allocation11 + $0x8] sm:$0xf]
        %v1204 = vld [vmem:[#allocation11 + $0xc] sm:$0xf]
        %v1205 = vld [vmem:[#allocation11 + $0x10] sm:$0xf]
        %v1206 = vld [vmem:[#allocation11 + $0x14] sm:$0xf]
        %v1207 = vld [vmem:[#allocation11 + $0x18] sm:$0xf]
        %v1208 = vld [vmem:[#allocation11 + $0x1c] sm:$0xf]
        %v1209 = vld [vmem:[#allocation11 + $0x20] sm:$0xf]
        %v1210 = vld [vmem:[#allocation11 + $0x24] sm:$0xf]
        %v1211 = vld [vmem:[#allocation11 + $0x28] sm:$0xf]
        %v1212 = vld [vmem:[#allocation11 + $0x2c] sm:$0xf]
        %v1213 = vld [vmem:[#allocation11 + $0x30] sm:$0xf]
        %v1214 = vld [vmem:[#allocation11 + $0x34] sm:$0xf]
        %v1215 = vld [vmem:[#allocation11 + $0x38] sm:$0xf]
        %v1216 = vld [vmem:[#allocation11 + $0x3c] sm:$0xf]
        %v1217 = vld [vmem:[#allocation11 + $0x40] sm:$0xf]
        %v1218 = vld [vmem:[#allocation11 + $0x44] sm:$0xf]
        %v1219 = vld [vmem:[#allocation11 + $0x48] sm:$0xf]
        %v1220 = vld [vmem:[#allocation11 + $0x4c] sm:$0xf]
        %v1221 = vld [vmem:[#allocation11 + $0x50] sm:$0xf]
        %v1222 = vld [vmem:[#allocation11 + $0x54] sm:$0xf]
        %v1223 = vld [vmem:[#allocation11 + $0x58] sm:$0xf]
        %v1224 = vld [vmem:[#allocation11 + $0x5c] sm:$0xf]
        %v1225 = vld [vmem:[#allocation11 + $0x60] sm:$0xf]
        %v1226 = vld [vmem:[#allocation11 + $0x64] sm:$0xf]
        %v1227 = vld [vmem:[#allocation11 + $0x68] sm:$0xf]
        %v1228 = vld [vmem:[#allocation11 + $0x6c] sm:$0xf]
        %v1229 = vld [vmem:[#allocation11 + $0x70] sm:$0xf]
        %v1230 = vld [vmem:[#allocation11 + $0x74] sm:$0xf]
        %v1231 = vld [vmem:[#allocation11 + $0x78] sm:$0xf]
        %v1232 = vld [vmem:[#allocation11 + $0x7c] sm:$0xf]
        %v1233 = vld [vmem:[#allocation11 + $0x80] sm:$0xf]
        %v1234 = vld [vmem:[#allocation11 + $0x84] sm:$0xf]
        %v1235 = vld [vmem:[#allocation11 + $0x88] sm:$0xf]
        %v1236 = vld [vmem:[#allocation11 + $0x8c] sm:$0xf]
        %v1237 = vld [vmem:[#allocation11 + $0x90] sm:$0xf]
        %v1238 = vld [vmem:[#allocation11 + $0x94] sm:$0xf]
        %v1239 = vld [vmem:[#allocation11 + $0x98] sm:$0xf]
        %v1240 = vld [vmem:[#allocation11 + $0x9c] sm:$0xf]
        %v1241 = vld [vmem:[#allocation11 + $0xa0] sm:$0xf]
        %v1242 = vld [vmem:[#allocation11 + $0xa4] sm:$0xf]
        %v1243 = vld [vmem:[#allocation11 + $0xa8] sm:$0xf]
        %v1244 = vld [vmem:[#allocation11 + $0xac] sm:$0xf]
        %v1245 = vld [vmem:[#allocation11 + $0xb0] sm:$0xf]
        %v1246 = vld [vmem:[#allocation11 + $0xb4] sm:$0xf]
        %v1247 = vld [vmem:[#allocation11 + $0xb8] sm:$0xf]
        %v1248 = vld [vmem:[#allocation11 + $0xbc] sm:$0xf]
        %v1249 = vld [vmem:[#allocation12] sm:$0x7]
        %v1251 = vlaneseq
        %v1252 = vshrl.u32 %v1251, 7
        %v1253 = vsub.s32 0, %v1252
        %v1254 = vrot.slane %v1249, %v1253
        %v1255 = vlaneseq
        %v1256 = vshrl.u32 %v1255, 7
        %v1257 = vsub.s32 1, %v1256
        %v1258 = vrot.slane %v1249, %v1257
        %v1259 = vlaneseq
        %v1260 = vshrl.u32 %v1259, 7
        %v1261 = vsub.s32 2, %v1260
        %v1262 = vrot.slane %v1249, %v1261
        %v1314 = vunpack.c.l.b16 %v1201
        %v1315 = vunpack.c.l.b16 %v1202
        %v1316 = vunpack.c.l.b16 %v1203
        %v1317 = vunpack.c.l.b16 %v1204
        %v1318 = vunpack.c.l.b16 %v1205
        %v1319 = vunpack.c.l.b16 %v1206
        %v1320 = vunpack.c.l.b16 %v1207
        %v1321 = vunpack.c.l.b16 %v1208
        %v1322 = vunpack.c.l.b16 %v1209
        %v1323 = vunpack.c.l.b16 %v1210
        %v1324 = vunpack.c.l.b16 %v1211
        %v1325 = vunpack.c.l.b16 %v1212
        %v1326 = vunpack.c.l.b16 %v1213
        %v1327 = vunpack.c.l.b16 %v1214
        %v1328 = vunpack.c.l.b16 %v1215
        %v1329 = vunpack.c.l.b16 %v1216
        %v1330 = vunpack.c.l.b16 %v1217
        %v1331 = vunpack.c.l.b16 %v1218
        %v1332 = vunpack.c.l.b16 %v1219
        %v1333 = vunpack.c.l.b16 %v1220
        %v1334 = vunpack.c.l.b16 %v1221
        %v1335 = vunpack.c.l.b16 %v1222
        %v1336 = vunpack.c.l.b16 %v1223
        %v1337 = vunpack.c.l.b16 %v1224
        %v1338 = vunpack.c.l.b16 %v1225
        %v1339 = vunpack.c.l.b16 %v1226
        %v1340 = vunpack.c.l.b16 %v1227
        %v1341 = vunpack.c.l.b16 %v1228
        %v1342 = vunpack.c.l.b16 %v1229
        %v1343 = vunpack.c.l.b16 %v1230
        %v1344 = vunpack.c.l.b16 %v1231
        %v1345 = vunpack.c.l.b16 %v1232
        %v1346 = vunpack.c.l.b16 %v1233
        %v1347 = vunpack.c.l.b16 %v1234
        %v1348 = vunpack.c.l.b16 %v1235
        %v1349 = vunpack.c.l.b16 %v1236
        %v1350 = vunpack.c.l.b16 %v1237
        %v1351 = vunpack.c.l.b16 %v1238
        %v1352 = vunpack.c.l.b16 %v1239
        %v1353 = vunpack.c.l.b16 %v1240
        %v1354 = vunpack.c.l.b16 %v1241
        %v1355 = vunpack.c.l.b16 %v1242
        %v1356 = vunpack.c.l.b16 %v1243
        %v1357 = vunpack.c.l.b16 %v1244
        %v1358 = vunpack.c.l.b16 %v1245
        %v1359 = vunpack.c.l.b16 %v1246
        %v1360 = vunpack.c.l.b16 %v1247
        %v1361 = vunpack.c.l.b16 %v1248
        %v1362 = vpack.c.b16 %v1315, %v1314
        %v1363 = vpack.c.b16 %v1317, %v1316
        %v1364 = vpack.c.b16 %v1319, %v1318
        %v1365 = vpack.c.b16 %v1321, %v1320
        %v1366 = vpack.c.b16 %v1323, %v1322
        %v1367 = vpack.c.b16 %v1325, %v1324
        %v1368 = vpack.c.b16 %v1327, %v1326
        %v1369 = vpack.c.b16 %v1329, %v1328
        %v1370 = vpack.c.b16 %v1331, %v1330
        %v1371 = vpack.c.b16 %v1333, %v1332
        %v1372 = vpack.c.b16 %v1335, %v1334
        %v1373 = vpack.c.b16 %v1337, %v1336
        %v1374 = vpack.c.b16 %v1339, %v1338
        %v1375 = vpack.c.b16 %v1341, %v1340
        %v1376 = vpack.c.b16 %v1343, %v1342
        %v1377 = vpack.c.b16 %v1345, %v1344
        %v1378 = vpack.c.b16 %v1347, %v1346
        %v1379 = vpack.c.b16 %v1349, %v1348
        %v1380 = vpack.c.b16 %v1351, %v1350
        %v1381 = vpack.c.b16 %v1353, %v1352
        %v1382 = vpack.c.b16 %v1355, %v1354
        %v1383 = vpack.c.b16 %v1357, %v1356
        %v1384 = vpack.c.b16 %v1359, %v1358
        %v1385 = vpack.c.b16 %v1361, %v1360
        %1410 = vmatprep.subr.bf16.mxu0 0
        %1411 = vmatpush1.bf16.xpose.msra.mxu0 %v1362
        %1412 = vmatprep.subr.bf16.mxu0 0
        %1413 = vmatpush1.bf16.xpose.msra.mxu0 %v1363
        %1414 = vmatprep.subr.bf16.mxu0 0
        %1415 = vmatpush1.bf16.xpose.msra.mxu0 %v1364
        %1416 = vmatprep.subr.bf16.mxu0 0
        %1417 = vmatpush1.bf16.xpose.msra.mxu0 %v1365
        %1418 = vmatprep.subr.bf16.mxu0 0
        %1419 = vmatpush1.bf16.xpose.msra.mxu0 %v1366
        %1420 = vmatprep.subr.bf16.mxu0 0
        %1421 = vmatpush1.bf16.xpose.msra.mxu0 %v1367
        %1422 = vmatprep.subr.bf16.mxu0 0
        %1423 = vmatpush1.bf16.xpose.msra.mxu0 %v1368
        %1424 = vmatprep.subr.bf16.mxu0 0
        %1425 = vmatpush1.bf16.xpose.msra.mxu0 %v1369
        %1426 = vmatprep.subr.bf16.mxu0 0
        %1427 = vmatpush1.bf16.xpose.msra.mxu0 %v1370
        %1428 = vmatprep.subr.bf16.mxu0 0
        %1429 = vmatpush1.bf16.xpose.msra.mxu0 %v1371
        %1430 = vmatprep.subr.bf16.mxu0 0
        %1431 = vmatpush1.bf16.xpose.msra.mxu0 %v1372
        %1432 = vmatprep.subr.bf16.mxu0 0
        %1433 = vmatpush1.bf16.xpose.msra.mxu0 %v1373
        %1434 = vmatprep.subr.bf16.mxu0 0
        %1435 = vmatpush1.bf16.xpose.msra.mxu0 %v1374
        %1436 = vmatprep.subr.bf16.mxu0 0
        %1437 = vmatpush1.bf16.xpose.msra.mxu0 %v1375
        %1438 = vmatprep.subr.bf16.mxu0 0
        %1439 = vmatpush1.bf16.xpose.msra.mxu0 %v1376
        %1440 = vmatprep.subr.bf16.mxu0 0
        %1441 = vmatpush1.bf16.xpose.msra.mxu0 %v1377
        %1442 = vmatprep.mubr.bf16.mxu0 0
        %1443 = vmatmul.mubr.bf16.gmra.mrb[0].mxu0 %v1200
        %v1444 = vpop.f32.mrb[0].mxu0
        %v1445 = vadd.f32 %v1254, %v1444
        %v1446 = vpop.f32.mrb[0].mxu0
        %v1447 = vadd.f32 %v1258, %v1446
        %v1448 = vpop.f32.mrb[0].mxu0
        %v1449 = vadd.f32 %v1254, %v1448
        %v1450 = vpop.f32.mrb[0].mxu0
        %v1451 = vadd.f32 %v1258, %v1450
        %1452 = vdwg.mxu0
        %1453 = vmatprep.subr.bf16.mxu0 0
        %1454 = vmatpush1.bf16.xpose.msra.mxu0 %v1378
        %1455 = vmatprep.subr.bf16.mxu0 0
        %1456 = vmatpush1.bf16.xpose.msra.mxu0 %v1379
        %1457 = vmatprep.subr.bf16.mxu0 0
        %1458 = vmatpush1.bf16.xpose.msra.mxu0 %v1380
        %1459 = vmatprep.subr.bf16.mxu0 0
        %1460 = vmatpush1.bf16.xpose.msra.mxu0 %v1381
        %1461 = vmatprep.subr.bf16.mxu0 0
        %1462 = vmatpush1.bf16.xpose.msra.mxu0 %v1382
        %1463 = vmatprep.subr.bf16.mxu0 0
        %1464 = vmatpush1.bf16.xpose.msra.mxu0 %v1383
        %1465 = vmatprep.subr.bf16.mxu0 0
        %1466 = vmatpush1.bf16.xpose.msra.mxu0 %v1384
        %1467 = vmatprep.subr.bf16.mxu0 0
        %1468 = vmatpush1.bf16.xpose.msra.mxu0 %v1385
        %1469 = vmatprep.subr.bf16.mxu0 0
        %1470 = vmatpush1.bf16.xpose.msra.mxu0 0
        %1471 = vmatprep.subr.bf16.mxu0 0
        %1472 = vmatpush1.bf16.xpose.msra.mxu0 0
        %1473 = vmatprep.subr.bf16.mxu0 0
        %1474 = vmatpush1.bf16.xpose.msra.mxu0 0
        %1475 = vmatprep.subr.bf16.mxu0 0
        %1476 = vmatpush1.bf16.xpose.msra.mxu0 0
        %1477 = vmatprep.subr.bf16.mxu0 0
        %1478 = vmatpush1.bf16.xpose.msra.mxu0 0
        %1479 = vmatprep.subr.bf16.mxu0 0
        %1480 = vmatpush1.bf16.xpose.msra.mxu0 0
        %1481 = vmatprep.subr.bf16.mxu0 0
        %1482 = vmatpush1.bf16.xpose.msra.mxu0 0
        %1483 = vmatprep.subr.bf16.mxu0 0
        %1484 = vmatpush1.bf16.xpose.msra.mxu0 0
        %1485 = vmatprep.mubr.bf16.mxu0 0
        %1486 = vmatmul.mubr.bf16.gmra.mrb[0].mxu0 %v1200
        %v1487 = vpop.f32.mrb[0].mxu0
        %v1488 = vadd.f32 %v1262, %v1487
        %v1489 = vpop.f32.mrb[0].mxu0
        %v1490 = vpop.f32.mrb[0].mxu0
        %v1491 = vadd.f32 %v1262, %v1490
        %v1492 = vpop.f32.mrb[0].mxu0
        %1493 = vdwg.mxu0
        %v1494 = vmul.f32 %v1445, 0.17677669
        %v1495 = vmul.f32 %v1449, 0.17677669
        %v1496 = vld [vmem:[%s1012] sm:$0xff]
        %v1497 = vld [vmem:[%s1012 + $0x8] sm:$0xff]
        %v1498 = vld [vmem:[%s1012 + $0x10] sm:$0xff]
        %v1499 = vld [vmem:[%s1012 + $0x18] sm:$0xff]
        %v1500 = vld [vmem:[%s1012 + $0x20] sm:$0xff]
        %v1501 = vld [vmem:[%s1012 + $0x28] sm:$0xff]
        %v1502 = vld [vmem:[%s1012 + $0x30] sm:$0xff]
        %v1503 = vld [vmem:[%s1012 + $0x38] sm:$0xff]
        %v1504 = vpack.c.bf16 %v1495, %v1494
        %v1505 = vpack.c.bf16 %v1451, %v1447
        %v1506 = vpack.c.bf16 %v1491, %v1488
        %vm1507 = vcmask 261120
        %v1509 = vsel %vm1507, %v1504, 0
        %v1512 = vsel %vm1507, %v1505, 0
        %1514 = vmatprep.subr.bf16.mxu0 0
        %1515 = vmatpush1.bf16.xpose.msra.mxu0 %v1512
        %1516 = vmatprep.subr.bf16.mxu0 0
        %1517 = vmatpush1.bf16.xpose.msra.mxu0 0
        %1518 = vmatprep.subr.bf16.mxu0 0
        %1519 = vmatpush1.bf16.xpose.msra.mxu0 0
        %1520 = vmatprep.subr.bf16.mxu0 0
        %1521 = vmatpush1.bf16.xpose.msra.mxu0 0
        %1522 = vmatprep.subr.bf16.mxu0 0
        %1523 = vmatpush1.bf16.xpose.msra.mxu0 0
        %1524 = vmatprep.subr.bf16.mxu0 0
        %1525 = vmatpush1.bf16.xpose.msra.mxu0 0
        %1526 = vmatprep.subr.bf16.mxu0 0
        %1527 = vmatpush1.bf16.xpose.msra.mxu0 0
        %1528 = vmatprep.subr.bf16.mxu0 0
        %1529 = vmatpush1.bf16.xpose.msra.mxu0 0
        %1530 = vmatprep.subr.bf16.mxu0 0
        %1531 = vmatpush1.bf16.xpose.msra.mxu0 0
        %1532 = vmatprep.subr.bf16.mxu0 0
        %1533 = vmatpush1.bf16.xpose.msra.mxu0 0
        %1534 = vmatprep.subr.bf16.mxu0 0
        %1535 = vmatpush1.bf16.xpose.msra.mxu0 0
        %1536 = vmatprep.subr.bf16.mxu0 0
        %1537 = vmatpush1.bf16.xpose.msra.mxu0 0
        %1538 = vmatprep.subr.bf16.mxu0 0
        %1539 = vmatpush1.bf16.xpose.msra.mxu0 0
        %1540 = vmatprep.subr.bf16.mxu0 0
        %1541 = vmatpush1.bf16.xpose.msra.mxu0 0
        %1542 = vmatprep.subr.bf16.mxu0 0
        %1543 = vmatpush1.bf16.xpose.msra.mxu0 0
        %1544 = vmatprep.subr.bf16.mxu0 0
        %1545 = vmatpush1.bf16.xpose.msra.mxu0 0
        %1546 = vmatprep.mubr.bf16.mxu0 0
        %1547 = vmatmul.mubr.bf16.gmra.mrb[0].mxu0 %v1509
        %v1548 = vpop.f32.mrb[0].mxu0
        %v1549 = vadd.f32 %v1496, %v1548
        %v1550 = vpop.f32.mrb[0].mxu0
        %v1551 = vpop.f32.mrb[0].mxu0
        %v1552 = vadd.f32 %v1497, %v1551
        %v1553 = vpop.f32.mrb[0].mxu0
        %1554 = vdwg.mxu0
        %v1555 = vadd.f32 %v1549, %v1157
        %v1556 = vadd.f32 %v1552, %v1158
        %vm1557 = vcmask 130048
        %v1558 = vsel %vm1557, %v1555, -inf
        %1559 = vmax.xlane.f32.xlu0 %v1558
        %v1560 = vpop.xlane.xlu0 %1559
        %v1561 = vsel %vm1557, %v1556, -inf
        %1562 = vmax.xlane.f32.xlu0 %v1561
        %v1563 = vpop.xlane.xlu0 %1562
        %v1564 = vsub.f32 %v1555, %v1560
        %v1565 = vsub.f32 %v1556, %v1563
        %v1566 = vmul.f32 %v1564, 1.442695
        %v1567 = vpow.pop %v1566
        %v1568 = vmul.f32 %v1565, 1.442695
        %v1569 = vpow.pop %v1568
        %v1570 = vsel %vm1557, %v1567, 0.0
        %1571 = vadd.xlane.f32.xlu0 %v1570
        %v1572 = vpop.xlane.xlu0 %1571
        %v1573 = vsel %vm1557, %v1569, 0.0
        %1574 = vadd.xlane.f32.xlu0 %v1573
        %v1575 = vpop.xlane.xlu0 %1574
        %v1576 = vrcp.pop %v1572
        %v1577 = vrcp.pop %v1575
        %v1578 = vmul.f32 %v1567, %v1576
        %v1579 = vmul.f32 %v1569, %v1577
        %v1580 = vpack.c.bf16 %v1579, %v1578
        %v1582 = vsel %vm1557, %v1580, 0
        %1584 = vmatprep.subr.bf16.mxu0 0
        %1585 = vmatpush1.bf16.msra.mxu0 %v1506
        %1586 = vmatprep.subr.bf16.mxu0 0
        %1587 = vmatpush1.bf16.msra.mxu0 0
        %1588 = vmatprep.subr.bf16.mxu0 0
        %1589 = vmatpush1.bf16.msra.mxu0 0
        %1590 = vmatprep.subr.bf16.mxu0 0
        %1591 = vmatpush1.bf16.msra.mxu0 0
        %1592 = vmatprep.subr.bf16.mxu0 0
        %1593 = vmatpush1.bf16.msra.mxu0 0
        %1594 = vmatprep.subr.bf16.mxu0 0
        %1595 = vmatpush1.bf16.msra.mxu0 0
        %1596 = vmatprep.subr.bf16.mxu0 0
        %1597 = vmatpush1.bf16.msra.mxu0 0
        %1598 = vmatprep.subr.bf16.mxu0 0
        %1599 = vmatpush1.bf16.msra.mxu0 0
        %1600 = vmatprep.subr.bf16.mxu0 0
        %1601 = vmatpush1.bf16.msra.mxu0 0
        %1602 = vmatprep.subr.bf16.mxu0 0
        %1603 = vmatpush1.bf16.msra.mxu0 0
        %1604 = vmatprep.subr.bf16.mxu0 0
        %1605 = vmatpush1.bf16.msra.mxu0 0
        %1606 = vmatprep.subr.bf16.mxu0 0
        %1607 = vmatpush1.bf16.msra.mxu0 0
        %1608 = vmatprep.subr.bf16.mxu0 0
        %1609 = vmatpush1.bf16.msra.mxu0 0
        %1610 = vmatprep.subr.bf16.mxu0 0
        %1611 = vmatpush1.bf16.msra.mxu0 0
        %1612 = vmatprep.subr.bf16.mxu0 0
        %1613 = vmatpush1.bf16.msra.mxu0 0
        %1614 = vmatprep.subr.bf16.mxu0 0
        %1615 = vmatpush1.bf16.msra.mxu0 0
        %1616 = vmatprep.mubr.bf16.mxu0 0
        %1617 = vmatmul.mubr.bf16.gmra.mrb[0].mxu0 %v1582
        %v1618 = vpop.f32.mrb[0].mxu0
        %v1619 = vadd.f32 0.0, %v1618
        %v1620 = vpop.f32.mrb[0].mxu0
        %v1621 = vpop.f32.mrb[0].mxu0
        %v1622 = vadd.f32 0.0, %v1621
        %v1623 = vpop.f32.mrb[0].mxu0
        %1624 = vdwg.mxu0
        %1626 = vrot.lane.b32.xlu0 %v1504, 96
        %v1627 = vpop.permute.xlu0 %1626
        %1629 = vrot.lane.b32.xlu0 %v1505, 96
        %v1630 = vpop.permute.xlu0 %1629
        %v1632 = vsel %vm1507, %v1627, 0
        %v1635 = vsel %vm1507, %v1630, 0
        %1637 = vmatprep.subr.bf16.mxu0 0
        %1638 = vmatpush1.bf16.xpose.msra.mxu0 %v1635
        %1639 = vmatprep.subr.bf16.mxu0 0
        %1640 = vmatpush1.bf16.xpose.msra.mxu0 0
        %1641 = vmatprep.subr.bf16.mxu0 0
        %1642 = vmatpush1.bf16.xpose.msra.mxu0 0
        %1643 = vmatprep.subr.bf16.mxu0 0
        %1644 = vmatpush1.bf16.xpose.msra.mxu0 0
        %1645 = vmatprep.subr.bf16.mxu0 0
        %1646 = vmatpush1.bf16.xpose.msra.mxu0 0
        %1647 = vmatprep.subr.bf16.mxu0 0
        %1648 = vmatpush1.bf16.xpose.msra.mxu0 0
        %1649 = vmatprep.subr.bf16.mxu0 0
        %1650 = vmatpush1.bf16.xpose.msra.mxu0 0
        %1651 = vmatprep.subr.bf16.mxu0 0
        %1652 = vmatpush1.bf16.xpose.msra.mxu0 0
        %1653 = vmatprep.subr.bf16.mxu0 0
        %1654 = vmatpush1.bf16.xpose.msra.mxu0 0
        %1655 = vmatprep.subr.bf16.mxu0 0
        %1656 = vmatpush1.bf16.xpose.msra.mxu0 0
        %1657 = vmatprep.subr.bf16.mxu0 0
        %1658 = vmatpush1.bf16.xpose.msra.mxu0 0
        %1659 = vmatprep.subr.bf16.mxu0 0
        %1660 = vmatpush1.bf16.xpose.msra.mxu0 0
        %1661 = vmatprep.subr.bf16.mxu0 0
        %1662 = vmatpush1.bf16.xpose.msra.mxu0 0
        %1663 = vmatprep.subr.bf16.mxu0 0
        %1664 = vmatpush1.bf16.xpose.msra.mxu0 0
        %1665 = vmatprep.subr.bf16.mxu0 0
        %1666 = vmatpush1.bf16.xpose.msra.mxu0 0
        %1667 = vmatprep.subr.bf16.mxu0 0
        %1668 = vmatpush1.bf16.xpose.msra.mxu0 0
        %1669 = vmatprep.mubr.bf16.mxu0 0
        %1670 = vmatmul.mubr.bf16.gmra.mrb[0].mxu0 %v1632
        %v1671 = vpop.f32.mrb[0].mxu0
        %v1672 = vadd.f32 %v1498, %v1671
        %v1673 = vpop.f32.mrb[0].mxu0
        %v1674 = vpop.f32.mrb[0].mxu0
        %v1675 = vadd.f32 %v1499, %v1674
        %v1676 = vpop.f32.mrb[0].mxu0
        %1677 = vdwg.mxu0
        %v1678 = vadd.f32 %v1672, %v1157
        %v1679 = vadd.f32 %v1675, %v1158
        %v1680 = vsel %vm1557, %v1678, -inf
        %1681 = vmax.xlane.f32.xlu0 %v1680
        %v1682 = vpop.xlane.xlu0 %1681
        %v1683 = vsel %vm1557, %v1679, -inf
        %1684 = vmax.xlane.f32.xlu0 %v1683
        %v1685 = vpop.xlane.xlu0 %1684
        %v1686 = vsub.f32 %v1678, %v1682
        %v1687 = vsub.f32 %v1679, %v1685
        %v1688 = vmul.f32 %v1686, 1.442695
        %v1689 = vpow.pop %v1688
        %v1690 = vmul.f32 %v1687, 1.442695
        %v1691 = vpow.pop %v1690
        %v1692 = vsel %vm1557, %v1689, 0.0
        %1693 = vadd.xlane.f32.xlu0 %v1692
        %v1694 = vpop.xlane.xlu0 %1693
        %v1695 = vsel %vm1557, %v1691, 0.0
        %1696 = vadd.xlane.f32.xlu0 %v1695
        %v1697 = vpop.xlane.xlu0 %1696
        %v1698 = vrcp.pop %v1694
        %v1699 = vrcp.pop %v1697
        %v1700 = vmul.f32 %v1689, %v1698
        %v1701 = vmul.f32 %v1691, %v1699
        %v1702 = vpack.c.bf16 %v1701, %v1700
        %1704 = vrot.lane.b32.xlu0 %v1506, 96
        %v1705 = vpop.permute.xlu0 %1704
        %v1708 = vsel %vm1557, %v1702, 0
        %1710 = vmatprep.subr.bf16.mxu0 0
        %1711 = vmatpush1.bf16.msra.mxu0 %v1705
        %1712 = vmatprep.subr.bf16.mxu0 0
        %1713 = vmatpush1.bf16.msra.mxu0 0
        %1714 = vmatprep.subr.bf16.mxu0 0
        %1715 = vmatpush1.bf16.msra.mxu0 0
        %1716 = vmatprep.subr.bf16.mxu0 0
        %1717 = vmatpush1.bf16.msra.mxu0 0
        %1718 = vmatprep.subr.bf16.mxu0 0
        %1719 = vmatpush1.bf16.msra.mxu0 0
        %1720 = vmatprep.subr.bf16.mxu0 0
        %1721 = vmatpush1.bf16.msra.mxu0 0
        %1722 = vmatprep.subr.bf16.mxu0 0
        %1723 = vmatpush1.bf16.msra.mxu0 0
        %1724 = vmatprep.subr.bf16.mxu0 0
        %1725 = vmatpush1.bf16.msra.mxu0 0
        %1726 = vmatprep.subr.bf16.mxu0 0
        %1727 = vmatpush1.bf16.msra.mxu0 0
        %1728 = vmatprep.subr.bf16.mxu0 0
        %1729 = vmatpush1.bf16.msra.mxu0 0
        %1730 = vmatprep.subr.bf16.mxu0 0
        %1731 = vmatpush1.bf16.msra.mxu0 0
        %1732 = vmatprep.subr.bf16.mxu0 0
        %1733 = vmatpush1.bf16.msra.mxu0 0
        %1734 = vmatprep.subr.bf16.mxu0 0
        %1735 = vmatpush1.bf16.msra.mxu0 0
        %1736 = vmatprep.subr.bf16.mxu0 0
        %1737 = vmatpush1.bf16.msra.mxu0 0
        %1738 = vmatprep.subr.bf16.mxu0 0
        %1739 = vmatpush1.bf16.msra.mxu0 0
        %1740 = vmatprep.subr.bf16.mxu0 0
        %1741 = vmatpush1.bf16.msra.mxu0 0
        %1742 = vmatprep.mubr.bf16.mxu0 0
        %1743 = vmatmul.mubr.bf16.gmra.mrb[0].mxu0 %v1708
        %v1744 = vpop.f32.mrb[0].mxu0
        %v1745 = vadd.f32 0.0, %v1744
        %v1746 = vpop.f32.mrb[0].mxu0
        %v1747 = vpop.f32.mrb[0].mxu0
        %v1748 = vadd.f32 0.0, %v1747
        %v1749 = vpop.f32.mrb[0].mxu0
        %1750 = vdwg.mxu0
        %1751 = vrot.lane.b32.xlu0 %v1504, 64
        %v1752 = vpop.permute.xlu0 %1751
        %1753 = vrot.lane.b32.xlu0 %v1505, 64
        %v1754 = vpop.permute.xlu0 %1753
        %v1756 = vsel %vm1507, %v1752, 0
        %v1759 = vsel %vm1507, %v1754, 0
        %1761 = vmatprep.subr.bf16.mxu0 0
        %1762 = vmatpush1.bf16.xpose.msra.mxu0 %v1759
        %1763 = vmatprep.subr.bf16.mxu0 0
        %1764 = vmatpush1.bf16.xpose.msra.mxu0 0
        %1765 = vmatprep.subr.bf16.mxu0 0
        %1766 = vmatpush1.bf16.xpose.msra.mxu0 0
        %1767 = vmatprep.subr.bf16.mxu0 0
        %1768 = vmatpush1.bf16.xpose.msra.mxu0 0
        %1769 = vmatprep.subr.bf16.mxu0 0
        %1770 = vmatpush1.bf16.xpose.msra.mxu0 0
        %1771 = vmatprep.subr.bf16.mxu0 0
        %1772 = vmatpush1.bf16.xpose.msra.mxu0 0
        %1773 = vmatprep.subr.bf16.mxu0 0
        %1774 = vmatpush1.bf16.xpose.msra.mxu0 0
        %1775 = vmatprep.subr.bf16.mxu0 0
        %1776 = vmatpush1.bf16.xpose.msra.mxu0 0
        %1777 = vmatprep.subr.bf16.mxu0 0
        %1778 = vmatpush1.bf16.xpose.msra.mxu0 0
        %1779 = vmatprep.subr.bf16.mxu0 0
        %1780 = vmatpush1.bf16.xpose.msra.mxu0 0
        %1781 = vmatprep.subr.bf16.mxu0 0
        %1782 = vmatpush1.bf16.xpose.msra.mxu0 0
        %1783 = vmatprep.subr.bf16.mxu0 0
        %1784 = vmatpush1.bf16.xpose.msra.mxu0 0
        %1785 = vmatprep.subr.bf16.mxu0 0
        %1786 = vmatpush1.bf16.xpose.msra.mxu0 0
        %1787 = vmatprep.subr.bf16.mxu0 0
        %1788 = vmatpush1.bf16.xpose.msra.mxu0 0
        %1789 = vmatprep.subr.bf16.mxu0 0
        %1790 = vmatpush1.bf16.xpose.msra.mxu0 0
        %1791 = vmatprep.subr.bf16.mxu0 0
        %1792 = vmatpush1.bf16.xpose.msra.mxu0 0
        %1793 = vmatprep.mubr.bf16.mxu0 0
        %1794 = vmatmul.mubr.bf16.gmra.mrb[0].mxu0 %v1756
        %v1795 = vpop.f32.mrb[0].mxu0
        %v1796 = vadd.f32 %v1500, %v1795
        %v1797 = vpop.f32.mrb[0].mxu0
        %v1798 = vpop.f32.mrb[0].mxu0
        %v1799 = vadd.f32 %v1501, %v1798
        %v1800 = vpop.f32.mrb[0].mxu0
        %1801 = vdwg.mxu0
        %v1802 = vadd.f32 %v1796, %v1157
        %v1803 = vadd.f32 %v1799, %v1158
        %v1804 = vsel %vm1557, %v1802, -inf
        %1805 = vmax.xlane.f32.xlu0 %v1804
        %v1806 = vpop.xlane.xlu0 %1805
        %v1807 = vsel %vm1557, %v1803, -inf
        %1808 = vmax.xlane.f32.xlu0 %v1807
        %v1809 = vpop.xlane.xlu0 %1808
        %v1810 = vsub.f32 %v1802, %v1806
        %v1811 = vsub.f32 %v1803, %v1809
        %v1812 = vmul.f32 %v1810, 1.442695
        %v1813 = vpow.pop %v1812
        %v1814 = vmul.f32 %v1811, 1.442695
        %v1815 = vpow.pop %v1814
        %v1816 = vsel %vm1557, %v1813, 0.0
        %1817 = vadd.xlane.f32.xlu0 %v1816
        %v1818 = vpop.xlane.xlu0 %1817
        %v1819 = vsel %vm1557, %v1815, 0.0
        %1820 = vadd.xlane.f32.xlu0 %v1819
        %v1821 = vpop.xlane.xlu0 %1820
        %v1822 = vrcp.pop %v1818
        %v1823 = vrcp.pop %v1821
        %v1824 = vmul.f32 %v1813, %v1822
        %v1825 = vmul.f32 %v1815, %v1823
        %v1826 = vpack.c.bf16 %v1825, %v1824
        %1827 = vrot.lane.b32.xlu0 %v1506, 64
        %v1828 = vpop.permute.xlu0 %1827
        %v1831 = vsel %vm1557, %v1826, 0
        %1833 = vmatprep.subr.bf16.mxu0 0
        %1834 = vmatpush1.bf16.msra.mxu0 %v1828
        %1835 = vmatprep.subr.bf16.mxu0 0
        %1836 = vmatpush1.bf16.msra.mxu0 0
        %1837 = vmatprep.subr.bf16.mxu0 0
        %1838 = vmatpush1.bf16.msra.mxu0 0
        %1839 = vmatprep.subr.bf16.mxu0 0
        %1840 = vmatpush1.bf16.msra.mxu0 0
        %1841 = vmatprep.subr.bf16.mxu0 0
        %1842 = vmatpush1.bf16.msra.mxu0 0
        %1843 = vmatprep.subr.bf16.mxu0 0
        %1844 = vmatpush1.bf16.msra.mxu0 0
        %1845 = vmatprep.subr.bf16.mxu0 0
        %1846 = vmatpush1.bf16.msra.mxu0 0
        %1847 = vmatprep.subr.bf16.mxu0 0
        %1848 = vmatpush1.bf16.msra.mxu0 0
        %1849 = vmatprep.subr.bf16.mxu0 0
        %1850 = vmatpush1.bf16.msra.mxu0 0
        %1851 = vmatprep.subr.bf16.mxu0 0
        %1852 = vmatpush1.bf16.msra.mxu0 0
        %1853 = vmatprep.subr.bf16.mxu0 0
        %1854 = vmatpush1.bf16.msra.mxu0 0
        %1855 = vmatprep.subr.bf16.mxu0 0
        %1856 = vmatpush1.bf16.msra.mxu0 0
        %1857 = vmatprep.subr.bf16.mxu0 0
        %1858 = vmatpush1.bf16.msra.mxu0 0
        %1859 = vmatprep.subr.bf16.mxu0 0
        %1860 = vmatpush1.bf16.msra.mxu0 0
        %1861 = vmatprep.subr.bf16.mxu0 0
        %1862 = vmatpush1.bf16.msra.mxu0 0
        %1863 = vmatprep.subr.bf16.mxu0 0
        %1864 = vmatpush1.bf16.msra.mxu0 0
        %1865 = vmatprep.mubr.bf16.mxu0 0
        %1866 = vmatmul.mubr.bf16.gmra.mrb[0].mxu0 %v1831
        %v1867 = vpop.f32.mrb[0].mxu0
        %v1868 = vadd.f32 0.0, %v1867
        %v1869 = vpop.f32.mrb[0].mxu0
        %v1870 = vpop.f32.mrb[0].mxu0
        %v1871 = vadd.f32 0.0, %v1870
        %v1872 = vpop.f32.mrb[0].mxu0
        %1873 = vdwg.mxu0
        %1874 = vrot.lane.b32.xlu0 %v1504, 32
        %v1875 = vpop.permute.xlu0 %1874
        %1876 = vrot.lane.b32.xlu0 %v1505, 32
        %v1877 = vpop.permute.xlu0 %1876
        %v1879 = vsel %vm1507, %v1875, 0
        %v1882 = vsel %vm1507, %v1877, 0
        %1884 = vmatprep.subr.bf16.mxu0 0
        %1885 = vmatpush1.bf16.xpose.msra.mxu0 %v1882
        %1886 = vmatprep.subr.bf16.mxu0 0
        %1887 = vmatpush1.bf16.xpose.msra.mxu0 0
        %1888 = vmatprep.subr.bf16.mxu0 0
        %1889 = vmatpush1.bf16.xpose.msra.mxu0 0
        %1890 = vmatprep.subr.bf16.mxu0 0
        %1891 = vmatpush1.bf16.xpose.msra.mxu0 0
        %1892 = vmatprep.subr.bf16.mxu0 0
        %1893 = vmatpush1.bf16.xpose.msra.mxu0 0
        %1894 = vmatprep.subr.bf16.mxu0 0
        %1895 = vmatpush1.bf16.xpose.msra.mxu0 0
        %1896 = vmatprep.subr.bf16.mxu0 0
        %1897 = vmatpush1.bf16.xpose.msra.mxu0 0
        %1898 = vmatprep.subr.bf16.mxu0 0
        %1899 = vmatpush1.bf16.xpose.msra.mxu0 0
        %1900 = vmatprep.subr.bf16.mxu0 0
        %1901 = vmatpush1.bf16.xpose.msra.mxu0 0
        %1902 = vmatprep.subr.bf16.mxu0 0
        %1903 = vmatpush1.bf16.xpose.msra.mxu0 0
        %1904 = vmatprep.subr.bf16.mxu0 0
        %1905 = vmatpush1.bf16.xpose.msra.mxu0 0
        %1906 = vmatprep.subr.bf16.mxu0 0
        %1907 = vmatpush1.bf16.xpose.msra.mxu0 0
        %1908 = vmatprep.subr.bf16.mxu0 0
        %1909 = vmatpush1.bf16.xpose.msra.mxu0 0
        %1910 = vmatprep.subr.bf16.mxu0 0
        %1911 = vmatpush1.bf16.xpose.msra.mxu0 0
        %1912 = vmatprep.subr.bf16.mxu0 0
        %1913 = vmatpush1.bf16.xpose.msra.mxu0 0
        %1914 = vmatprep.subr.bf16.mxu0 0
        %1915 = vmatpush1.bf16.xpose.msra.mxu0 0
        %1916 = vmatprep.mubr.bf16.mxu0 0
        %1917 = vmatmul.mubr.bf16.gmra.mrb[0].mxu0 %v1879
        %v1918 = vpop.f32.mrb[0].mxu0
        %v1919 = vadd.f32 %v1502, %v1918
        %v1920 = vpop.f32.mrb[0].mxu0
        %v1921 = vpop.f32.mrb[0].mxu0
        %v1922 = vadd.f32 %v1503, %v1921
        %v1923 = vpop.f32.mrb[0].mxu0
        %1924 = vdwg.mxu0
        %v1925 = vadd.f32 %v1919, %v1157
        %v1926 = vadd.f32 %v1922, %v1158
        %v1927 = vsel %vm1557, %v1925, -inf
        %1928 = vmax.xlane.f32.xlu0 %v1927
        %v1929 = vpop.xlane.xlu0 %1928
        %v1930 = vsel %vm1557, %v1926, -inf
        %1931 = vmax.xlane.f32.xlu0 %v1930
        %v1932 = vpop.xlane.xlu0 %1931
        %v1933 = vsub.f32 %v1925, %v1929
        %v1934 = vsub.f32 %v1926, %v1932
        %v1935 = vmul.f32 %v1933, 1.442695
        %v1936 = vpow.pop %v1935
        %v1937 = vmul.f32 %v1934, 1.442695
        %v1938 = vpow.pop %v1937
        %v1939 = vsel %vm1557, %v1936, 0.0
        %1940 = vadd.xlane.f32.xlu0 %v1939
        %v1941 = vpop.xlane.xlu0 %1940
        %v1942 = vsel %vm1557, %v1938, 0.0
        %1943 = vadd.xlane.f32.xlu0 %v1942
        %v1944 = vpop.xlane.xlu0 %1943
        %v1945 = vrcp.pop %v1941
        %v1946 = vrcp.pop %v1944
        %v1947 = vmul.f32 %v1936, %v1945
        %v1948 = vmul.f32 %v1938, %v1946
        %v1949 = vpack.c.bf16 %v1948, %v1947
        %1950 = vrot.lane.b32.xlu0 %v1506, 32
        %v1951 = vpop.permute.xlu0 %1950
        %v1954 = vsel %vm1557, %v1949, 0
        %1956 = vmatprep.subr.bf16.mxu0 0
        %1957 = vmatpush1.bf16.msra.mxu0 %v1951
        %1958 = vmatprep.subr.bf16.mxu0 0
        %1959 = vmatpush1.bf16.msra.mxu0 0
        %1960 = vmatprep.subr.bf16.mxu0 0
        %1961 = vmatpush1.bf16.msra.mxu0 0
        %1962 = vmatprep.subr.bf16.mxu0 0
        %1963 = vmatpush1.bf16.msra.mxu0 0
        %1964 = vmatprep.subr.bf16.mxu0 0
        %1965 = vmatpush1.bf16.msra.mxu0 0
        %1966 = vmatprep.subr.bf16.mxu0 0
        %1967 = vmatpush1.bf16.msra.mxu0 0
        %1968 = vmatprep.subr.bf16.mxu0 0
        %1969 = vmatpush1.bf16.msra.mxu0 0
        %1970 = vmatprep.subr.bf16.mxu0 0
        %1971 = vmatpush1.bf16.msra.mxu0 0
        %1972 = vmatprep.subr.bf16.mxu0 0
        %1973 = vmatpush1.bf16.msra.mxu0 0
        %1974 = vmatprep.subr.bf16.mxu0 0
        %1975 = vmatpush1.bf16.msra.mxu0 0
        %1976 = vmatprep.subr.bf16.mxu0 0
        %1977 = vmatpush1.bf16.msra.mxu0 0
        %1978 = vmatprep.subr.bf16.mxu0 0
        %1979 = vmatpush1.bf16.msra.mxu0 0
        %1980 = vmatprep.subr.bf16.mxu0 0
        %1981 = vmatpush1.bf16.msra.mxu0 0
        %1982 = vmatprep.subr.bf16.mxu0 0
        %1983 = vmatpush1.bf16.msra.mxu0 0
        %1984 = vmatprep.subr.bf16.mxu0 0
        %1985 = vmatpush1.bf16.msra.mxu0 0
        %1986 = vmatprep.subr.bf16.mxu0 0
        %1987 = vmatpush1.bf16.msra.mxu0 0
        %1988 = vmatprep.mubr.bf16.mxu0 0
        %1989 = vmatmul.mubr.bf16.gmra.mrb[0].mxu0 %v1954
        %v1990 = vpop.f32.mrb[0].mxu0
        %v1991 = vadd.f32 0.0, %v1990
        %v1992 = vpop.f32.mrb[0].mxu0
        %v1993 = vpop.f32.mrb[0].mxu0
        %v1994 = vadd.f32 0.0, %v1993
        %v1995 = vpop.f32.mrb[0].mxu0
        %1996 = vdwg.mxu0
        %1999 = vrot.lane.b32.xlu0 %v1745, 32
        %v2000 = vpop.permute.xlu0 %1999
        %2001 = vrot.lane.b32.xlu0 %v1748, 32
        %v2002 = vpop.permute.xlu0 %2001
        %2007 = vrot.lane.b32.xlu0 %v1868, 64
        %v2008 = vpop.permute.xlu0 %2007
        %2009 = vrot.lane.b32.xlu0 %v1871, 64
        %v2010 = vpop.permute.xlu0 %2009
        %2015 = vrot.lane.b32.xlu0 %v1991, 96
        %v2016 = vpop.permute.xlu0 %2015
        %2017 = vrot.lane.b32.xlu0 %v1994, 96
        %v2018 = vpop.permute.xlu0 %2017
        %v2021 = vsel %vm1507, %v1619, %v2000
        %v2022 = vsel %vm1507, %v1622, %v2002
        %vm2023 = vcmask 523264
        %v2024 = vsel %vm2023, %v2021, %v2008
        %v2025 = vsel %vm2023, %v2022, %v2010
        %vm2026 = vcmask 785408
        %v2027 = vsel %vm2026, %v2024, %v2016
        %v2028 = vsel %vm2026, %v2025, %v2018
        %v2029 = vpack.c.bf16 %v2028, %v2027
        %v2030 = vld [vmem:[#allocation13] sm:$0xf]
        %v2031 = vld [vmem:[#allocation13 + $0x4] sm:$0xf]
        %v2032 = vld [vmem:[#allocation13 + $0x8] sm:$0xf]
        %v2033 = vld [vmem:[#allocation13 + $0xc] sm:$0xf]
        %v2034 = vld [vmem:[#allocation13 + $0x10] sm:$0xf]
        %v2035 = vld [vmem:[#allocation13 + $0x14] sm:$0xf]
        %v2036 = vld [vmem:[#allocation13 + $0x18] sm:$0xf]
        %v2037 = vld [vmem:[#allocation13 + $0x1c] sm:$0xf]
        %v2038 = vld [vmem:[#allocation13 + $0x20] sm:$0xf]
        %v2039 = vld [vmem:[#allocation13 + $0x24] sm:$0xf]
        %v2040 = vld [vmem:[#allocation13 + $0x28] sm:$0xf]
        %v2041 = vld [vmem:[#allocation13 + $0x2c] sm:$0xf]
        %v2042 = vld [vmem:[#allocation13 + $0x30] sm:$0xf]
        %v2043 = vld [vmem:[#allocation13 + $0x34] sm:$0xf]
        %v2044 = vld [vmem:[#allocation13 + $0x38] sm:$0xf]
        %v2045 = vld [vmem:[#allocation13 + $0x3c] sm:$0xf]
        %v2046 = vld [vmem:[#allocation15] sm:$0x1]
        %v2048 = vlaneseq
        %v2049 = vshrl.u32 %v2048, 7
        %v2050 = vsub.s32 0, %v2049
        %v2051 = vrot.slane %v2046, %v2050
        %v2069 = vunpack.c.l.b16 %v2030
        %v2070 = vunpack.c.l.b16 %v2031
        %v2071 = vunpack.c.l.b16 %v2032
        %v2072 = vunpack.c.l.b16 %v2033
        %v2073 = vunpack.c.l.b16 %v2034
        %v2074 = vunpack.c.l.b16 %v2035
        %v2075 = vunpack.c.l.b16 %v2036
        %v2076 = vunpack.c.l.b16 %v2037
        %v2077 = vunpack.c.l.b16 %v2038
        %v2078 = vunpack.c.l.b16 %v2039
        %v2079 = vunpack.c.l.b16 %v2040
        %v2080 = vunpack.c.l.b16 %v2041
        %v2081 = vunpack.c.l.b16 %v2042
        %v2082 = vunpack.c.l.b16 %v2043
        %v2083 = vunpack.c.l.b16 %v2044
        %v2084 = vunpack.c.l.b16 %v2045
        %v2085 = vpack.c.b16 %v2070, %v2069
        %v2086 = vpack.c.b16 %v2072, %v2071
        %v2087 = vpack.c.b16 %v2074, %v2073
        %v2088 = vpack.c.b16 %v2076, %v2075
        %v2089 = vpack.c.b16 %v2078, %v2077
        %v2090 = vpack.c.b16 %v2080, %v2079
        %v2091 = vpack.c.b16 %v2082, %v2081
        %v2092 = vpack.c.b16 %v2084, %v2083
        %2101 = vmatprep.subr.bf16.mxu0 0
        %2102 = vmatpush1.bf16.xpose.msra.mxu0 %v2085
        %2103 = vmatprep.subr.bf16.mxu0 0
        %2104 = vmatpush1.bf16.xpose.msra.mxu0 %v2086
        %2105 = vmatprep.subr.bf16.mxu0 0
        %2106 = vmatpush1.bf16.xpose.msra.mxu0 %v2087
        %2107 = vmatprep.subr.bf16.mxu0 0
        %2108 = vmatpush1.bf16.xpose.msra.mxu0 %v2088
        %2109 = vmatprep.subr.bf16.mxu0 0
        %2110 = vmatpush1.bf16.xpose.msra.mxu0 %v2089
        %2111 = vmatprep.subr.bf16.mxu0 0
        %2112 = vmatpush1.bf16.xpose.msra.mxu0 %v2090
        %2113 = vmatprep.subr.bf16.mxu0 0
        %2114 = vmatpush1.bf16.xpose.msra.mxu0 %v2091
        %2115 = vmatprep.subr.bf16.mxu0 0
        %2116 = vmatpush1.bf16.xpose.msra.mxu0 %v2092
        %2117 = vmatprep.subr.bf16.mxu0 0
        %2118 = vmatpush1.bf16.xpose.msra.mxu0 0
        %2119 = vmatprep.subr.bf16.mxu0 0
        %2120 = vmatpush1.bf16.xpose.msra.mxu0 0
        %2121 = vmatprep.subr.bf16.mxu0 0
        %2122 = vmatpush1.bf16.xpose.msra.mxu0 0
        %2123 = vmatprep.subr.bf16.mxu0 0
        %2124 = vmatpush1.bf16.xpose.msra.mxu0 0
        %2125 = vmatprep.subr.bf16.mxu0 0
        %2126 = vmatpush1.bf16.xpose.msra.mxu0 0
        %2127 = vmatprep.subr.bf16.mxu0 0
        %2128 = vmatpush1.bf16.xpose.msra.mxu0 0
        %2129 = vmatprep.subr.bf16.mxu0 0
        %2130 = vmatpush1.bf16.xpose.msra.mxu0 0
        %2131 = vmatprep.subr.bf16.mxu0 0
        %2132 = vmatpush1.bf16.xpose.msra.mxu0 0
        %2133 = vmatprep.mubr.bf16.mxu0 0
        %2134 = vmatmul.mubr.bf16.gmra.mrb[0].mxu0 %v2029
        %v2135 = vpop.f32.mrb[0].mxu0
        %v2136 = vadd.f32 %v2051, %v2135
        %v2137 = vpop.f32.mrb[0].mxu0
        %v2138 = vpop.f32.mrb[0].mxu0
        %v2139 = vadd.f32 %v2051, %v2138
        %v2140 = vpop.f32.mrb[0].mxu0
        %2141 = vdwg.mxu0
        %v2142 = vadd.f32 %v1155, %v2136
        %v2143 = vadd.f32 %v1156, %v2139
        %v2144 = vld [vmem:[%s19] sm:$0x1]
        %v2145 = vld [vmem:[%s20] sm:$0x1]
        %2146 = vadd.xlane.f32.xlu0 %v2142
        %v2147 = vpop.xlane.xlu0 %2146
        %2148 = vadd.xlane.f32.xlu0 %v2143
        %v2149 = vpop.xlane.xlu0 %2148
        %v2150 = vmul.f32 %v2147, %v1165
        %v2151 = vmul.f32 %v2149, %v1165
        %v2152 = vsub.f32 %v2142, %v2150
        %v2153 = vsub.f32 %v2143, %v2151
        %v2154 = vmul.f32 %v2152, %v2152
        %v2155 = vmul.f32 %v2153, %v2153
        %2156 = vadd.xlane.f32.xlu0 %v2154
        %v2157 = vpop.xlane.xlu0 %2156
        %2158 = vadd.xlane.f32.xlu0 %v2155
        %v2159 = vpop.xlane.xlu0 %2158
        %v2160 = vmul.f32 %v2157, %v1165
        %v2161 = vmul.f32 %v2159, %v1165
        %v2162 = vadd.f32 %v2160, 1e-05
        %v2163 = vadd.f32 %v2161, 1e-05
        %v2164 = vrsqrt.pop %v2162
        %v2165 = vrsqrt.pop %v2163
        %v2166 = vmul.f32 %v2152, %v2164
        %v2167 = vmul.f32 %v2153, %v2165
        %v2169 = vlaneseq
        %v2170 = vshrl.u32 %v2169, 7
        %v2171 = vsub.s32 0, %v2170
        %v2172 = vrot.slane %v2144, %v2171
        %v2174 = vmul.f32 %v2166, %v2172
        %v2175 = vmul.f32 %v2167, %v2172
        %v2177 = vlaneseq
        %v2178 = vshrl.u32 %v2177, 7
        %v2179 = vsub.s32 0, %v2178
        %v2180 = vrot.slane %v2145, %v2179
        %v2182 = vadd.f32 %v2174, %v2180
        %v2183 = vadd.f32 %v2175, %v2180
        %v2184 = vpack.c.bf16 %v2183, %v2182
        %v2185 = vld [vmem:[#allocation19] sm:$0xf]
        %v2186 = vld [vmem:[#allocation19 + $0x4] sm:$0xf]
        %v2187 = vld [vmem:[#allocation19 + $0x8] sm:$0xf]
        %v2188 = vld [vmem:[#allocation19 + $0xc] sm:$0xf]
        %v2189 = vld [vmem:[#allocation19 + $0x10] sm:$0xf]
        %v2190 = vld [vmem:[#allocation19 + $0x14] sm:$0xf]
        %v2191 = vld [vmem:[#allocation19 + $0x18] sm:$0xf]
        %v2192 = vld [vmem:[#allocation19 + $0x1c] sm:$0xf]
        %v2193 = vld [vmem:[#allocation19 + $0x20] sm:$0xf]
        %v2194 = vld [vmem:[#allocation19 + $0x24] sm:$0xf]
        %v2195 = vld [vmem:[#allocation19 + $0x28] sm:$0xf]
        %v2196 = vld [vmem:[#allocation19 + $0x2c] sm:$0xf]
        %v2197 = vld [vmem:[#allocation19 + $0x30] sm:$0xf]
        %v2198 = vld [vmem:[#allocation19 + $0x34] sm:$0xf]
        %v2199 = vld [vmem:[#allocation19 + $0x38] sm:$0xf]
        %v2200 = vld [vmem:[#allocation19 + $0x3c] sm:$0xf]
        %v2201 = vld [vmem:[#allocation21] sm:$0x1]
        %v2203 = vlaneseq
        %v2204 = vshrl.u32 %v2203, 7
        %v2205 = vsub.s32 0, %v2204
        %v2206 = vrot.slane %v2201, %v2205
        %v2224 = vunpack.c.l.b16 %v2185
        %v2225 = vunpack.c.l.b16 %v2186
        %v2226 = vunpack.c.l.b16 %v2187
        %v2227 = vunpack.c.l.b16 %v2188
        %v2228 = vunpack.c.l.b16 %v2189
        %v2229 = vunpack.c.l.b16 %v2190
        %v2230 = vunpack.c.l.b16 %v2191
        %v2231 = vunpack.c.l.b16 %v2192
        %v2232 = vunpack.c.l.b16 %v2193
        %v2233 = vunpack.c.l.b16 %v2194
        %v2234 = vunpack.c.l.b16 %v2195
        %v2235 = vunpack.c.l.b16 %v2196
        %v2236 = vunpack.c.l.b16 %v2197
        %v2237 = vunpack.c.l.b16 %v2198
        %v2238 = vunpack.c.l.b16 %v2199
        %v2239 = vunpack.c.l.b16 %v2200
        %v2240 = vpack.c.b16 %v2225, %v2224
        %v2241 = vpack.c.b16 %v2227, %v2226
        %v2242 = vpack.c.b16 %v2229, %v2228
        %v2243 = vpack.c.b16 %v2231, %v2230
        %v2244 = vpack.c.b16 %v2233, %v2232
        %v2245 = vpack.c.b16 %v2235, %v2234
        %v2246 = vpack.c.b16 %v2237, %v2236
        %v2247 = vpack.c.b16 %v2239, %v2238
        %2256 = vmatprep.subr.bf16.mxu0 0
        %2257 = vmatpush1.bf16.xpose.msra.mxu0 %v2240
        %2258 = vmatprep.subr.bf16.mxu0 0
        %2259 = vmatpush1.bf16.xpose.msra.mxu0 %v2241
        %2260 = vmatprep.subr.bf16.mxu0 0
        %2261 = vmatpush1.bf16.xpose.msra.mxu0 %v2242
        %2262 = vmatprep.subr.bf16.mxu0 0
        %2263 = vmatpush1.bf16.xpose.msra.mxu0 %v2243
        %2264 = vmatprep.subr.bf16.mxu0 0
        %2265 = vmatpush1.bf16.xpose.msra.mxu0 %v2244
        %2266 = vmatprep.subr.bf16.mxu0 0
        %2267 = vmatpush1.bf16.xpose.msra.mxu0 %v2245
        %2268 = vmatprep.subr.bf16.mxu0 0
        %2269 = vmatpush1.bf16.xpose.msra.mxu0 %v2246
        %2270 = vmatprep.subr.bf16.mxu0 0
        %2271 = vmatpush1.bf16.xpose.msra.mxu0 %v2247
        %2272 = vmatprep.subr.bf16.mxu0 0
        %2273 = vmatpush1.bf16.xpose.msra.mxu0 0
        %2274 = vmatprep.subr.bf16.mxu0 0
        %2275 = vmatpush1.bf16.xpose.msra.mxu0 0
        %2276 = vmatprep.subr.bf16.mxu0 0
        %2277 = vmatpush1.bf16.xpose.msra.mxu0 0
        %2278 = vmatprep.subr.bf16.mxu0 0
        %2279 = vmatpush1.bf16.xpose.msra.mxu0 0
        %2280 = vmatprep.subr.bf16.mxu0 0
        %2281 = vmatpush1.bf16.xpose.msra.mxu0 0
        %2282 = vmatprep.subr.bf16.mxu0 0
        %2283 = vmatpush1.bf16.xpose.msra.mxu0 0
        %2284 = vmatprep.subr.bf16.mxu0 0
        %2285 = vmatpush1.bf16.xpose.msra.mxu0 0
        %2286 = vmatprep.subr.bf16.mxu0 0
        %2287 = vmatpush1.bf16.xpose.msra.mxu0 0
        %2288 = vmatprep.mubr.bf16.mxu0 0
        %2289 = vmatmul.mubr.bf16.gmra.mrb[0].mxu0 %v2184
        %v2290 = vpop.f32.mrb[0].mxu0
        %v2291 = vadd.f32 %v2206, %v2290
        %v2292 = vpop.f32.mrb[0].mxu0
        %v2293 = vpop.f32.mrb[0].mxu0
        %v2294 = vadd.f32 %v2206, %v2293
        %v2295 = vpop.f32.mrb[0].mxu0
        %2296 = vdwg.mxu0
        %v2297 = vmul.f32 %v2291, 0.17677669
        %v2298 = vmul.f32 %v2294, 0.17677669
        %v2299 = vld [vmem:[%s990] sm:$0xff]
        %v2300 = vld [vmem:[%s990 + $0x8] sm:$0xff]
        %v2301 = vld [vmem:[%s990 + $0x10] sm:$0xff]
        %v2302 = vpack.c.bf16 %v2300, %v2299
        %v2303 = vpack.c.bf16 %v2301, %v2301
        %v2304 = vld [vmem:[#allocation22] sm:$0xf]
        %v2305 = vld [vmem:[#allocation22 + $0x4] sm:$0xf]
        %v2306 = vld [vmem:[#allocation22 + $0x8] sm:$0xf]
        %v2307 = vld [vmem:[#allocation22 + $0xc] sm:$0xf]
        %v2308 = vld [vmem:[#allocation22 + $0x10] sm:$0xf]
        %v2309 = vld [vmem:[#allocation22 + $0x14] sm:$0xf]
        %v2310 = vld [vmem:[#allocation22 + $0x18] sm:$0xf]
        %v2311 = vld [vmem:[#allocation22 + $0x1c] sm:$0xf]
        %v2312 = vld [vmem:[#allocation22 + $0x20] sm:$0xf]
        %v2313 = vld [vmem:[#allocation22 + $0x24] sm:$0xf]
        %v2314 = vld [vmem:[#allocation22 + $0x28] sm:$0xf]
        %v2315 = vld [vmem:[#allocation22 + $0x2c] sm:$0xf]
        %v2316 = vld [vmem:[#allocation22 + $0x30] sm:$0xf]
        %v2317 = vld [vmem:[#allocation22 + $0x34] sm:$0xf]
        %v2318 = vld [vmem:[#allocation22 + $0x38] sm:$0xf]
        %v2319 = vld [vmem:[#allocation22 + $0x3c] sm:$0xf]
        %v2320 = vld [vmem:[#allocation24] sm:$0x1]
        %v2322 = vlaneseq
        %v2323 = vshrl.u32 %v2322, 7
        %v2324 = vsub.s32 0, %v2323
        %v2325 = vrot.slane %v2320, %v2324
        %v2343 = vunpack.c.l.b16 %v2304
        %v2344 = vunpack.c.l.b16 %v2305
        %v2345 = vunpack.c.l.b16 %v2306
        %v2346 = vunpack.c.l.b16 %v2307
        %v2347 = vunpack.c.l.b16 %v2308
        %v2348 = vunpack.c.l.b16 %v2309
        %v2349 = vunpack.c.l.b16 %v2310
        %v2350 = vunpack.c.l.b16 %v2311
        %v2351 = vunpack.c.l.b16 %v2312
        %v2352 = vunpack.c.l.b16 %v2313
        %v2353 = vunpack.c.l.b16 %v2314
        %v2354 = vunpack.c.l.b16 %v2315
        %v2355 = vunpack.c.l.b16 %v2316
        %v2356 = vunpack.c.l.b16 %v2317
        %v2357 = vunpack.c.l.b16 %v2318
        %v2358 = vunpack.c.l.b16 %v2319
        %v2359 = vpack.c.b16 %v2344, %v2343
        %v2360 = vpack.c.b16 %v2346, %v2345
        %v2361 = vpack.c.b16 %v2348, %v2347
        %v2362 = vpack.c.b16 %v2350, %v2349
        %v2363 = vpack.c.b16 %v2352, %v2351
        %v2364 = vpack.c.b16 %v2354, %v2353
        %v2365 = vpack.c.b16 %v2356, %v2355
        %v2366 = vpack.c.b16 %v2358, %v2357
        %2375 = vmatprep.subr.bf16.mxu0 0
        %2376 = vmatpush1.bf16.xpose.msra.mxu0 %v2359
        %2377 = vmatprep.subr.bf16.mxu0 0
        %2378 = vmatpush1.bf16.xpose.msra.mxu0 %v2360
        %2379 = vmatprep.subr.bf16.mxu0 0
        %2380 = vmatpush1.bf16.xpose.msra.mxu0 %v2361
        %2381 = vmatprep.subr.bf16.mxu0 0
        %2382 = vmatpush1.bf16.xpose.msra.mxu0 %v2362
        %2383 = vmatprep.subr.bf16.mxu0 0
        %2384 = vmatpush1.bf16.xpose.msra.mxu0 %v2363
        %2385 = vmatprep.subr.bf16.mxu0 0
        %2386 = vmatpush1.bf16.xpose.msra.mxu0 %v2364
        %2387 = vmatprep.subr.bf16.mxu0 0
        %2388 = vmatpush1.bf16.xpose.msra.mxu0 %v2365
        %2389 = vmatprep.subr.bf16.mxu0 0
        %2390 = vmatpush1.bf16.xpose.msra.mxu0 %v2366
        %2391 = vmatprep.subr.bf16.mxu0 0
        %2392 = vmatpush1.bf16.xpose.msra.mxu0 0
        %2393 = vmatprep.subr.bf16.mxu0 0
        %2394 = vmatpush1.bf16.xpose.msra.mxu0 0
        %2395 = vmatprep.subr.bf16.mxu0 0
        %2396 = vmatpush1.bf16.xpose.msra.mxu0 0
        %2397 = vmatprep.subr.bf16.mxu0 0
        %2398 = vmatpush1.bf16.xpose.msra.mxu0 0
        %2399 = vmatprep.subr.bf16.mxu0 0
        %2400 = vmatpush1.bf16.xpose.msra.mxu0 0
        %2401 = vmatprep.subr.bf16.mxu0 0
        %2402 = vmatpush1.bf16.xpose.msra.mxu0 0
        %2403 = vmatprep.subr.bf16.mxu0 0
        %2404 = vmatpush1.bf16.xpose.msra.mxu0 0
        %2405 = vmatprep.subr.bf16.mxu0 0
        %2406 = vmatpush1.bf16.xpose.msra.mxu0 0
        %2407 = vmatprep.mubr.bf16.mxu0 0
        %2408 = vmatmul.mubr.bf16.gmra.mrb[0].mxu0 %v2302
        %v2409 = vpop.f32.mrb[0].mxu0
        %v2410 = vadd.f32 %v2325, %v2409
        %v2411 = vpop.f32.mrb[0].mxu0
        %v2412 = vpop.f32.mrb[0].mxu0
        %v2413 = vadd.f32 %v2325, %v2412
        %v2414 = vpop.f32.mrb[0].mxu0
        %2415 = vmatprep.mubr.bf16.mxu0 0
        %2416 = vmatmul.mubr.bf16.gmra.mrb[0].mxu0 %v2303
        %v2417 = vpop.f32.mrb[0].mxu0
        %v2418 = vadd.f32 %v2325, %v2417
        %v2419 = vpop.f32.mrb[0].mxu0
        %v2420 = vpop.f32.mrb[0].mxu0
        %v2421 = vpop.f32.mrb[0].mxu0
        %2422 = vdwg.mxu0
        %v2423 = vld [vmem:[%s999] sm:$0xff]
        %v2424 = vld [vmem:[%s999 + $0x8] sm:$0xff]
        %v2425 = vld [vmem:[%s999 + $0x10] sm:$0xff]
        %v2426 = vpack.c.bf16 %v2424, %v2423
        %v2427 = vpack.c.bf16 %v2425, %v2425
        %v2428 = vld [vmem:[#allocation25] sm:$0xf]
        %v2429 = vld [vmem:[#allocation25 + $0x4] sm:$0xf]
        %v2430 = vld [vmem:[#allocation25 + $0x8] sm:$0xf]
        %v2431 = vld [vmem:[#allocation25 + $0xc] sm:$0xf]
        %v2432 = vld [vmem:[#allocation25 + $0x10] sm:$0xf]
        %v2433 = vld [vmem:[#allocation25 + $0x14] sm:$0xf]
        %v2434 = vld [vmem:[#allocation25 + $0x18] sm:$0xf]
        %v2435 = vld [vmem:[#allocation25 + $0x1c] sm:$0xf]
        %v2436 = vld [vmem:[#allocation25 + $0x20] sm:$0xf]
        %v2437 = vld [vmem:[#allocation25 + $0x24] sm:$0xf]
        %v2438 = vld [vmem:[#allocation25 + $0x28] sm:$0xf]
        %v2439 = vld [vmem:[#allocation25 + $0x2c] sm:$0xf]
        %v2440 = vld [vmem:[#allocation25 + $0x30] sm:$0xf]
        %v2441 = vld [vmem:[#allocation25 + $0x34] sm:$0xf]
        %v2442 = vld [vmem:[#allocation25 + $0x38] sm:$0xf]
        %v2443 = vld [vmem:[#allocation25 + $0x3c] sm:$0xf]
        %v2444 = vld [vmem:[#allocation27] sm:$0x1]
        %v2446 = vlaneseq
        %v2447 = vshrl.u32 %v2446, 7
        %v2448 = vsub.s32 0, %v2447
        %v2449 = vrot.slane %v2444, %v2448
        %v2467 = vunpack.c.l.b16 %v2428
        %v2468 = vunpack.c.l.b16 %v2429
        %v2469 = vunpack.c.l.b16 %v2430
        %v2470 = vunpack.c.l.b16 %v2431
        %v2471 = vunpack.c.l.b16 %v2432
        %v2472 = vunpack.c.l.b16 %v2433
        %v2473 = vunpack.c.l.b16 %v2434
        %v2474 = vunpack.c.l.b16 %v2435
        %v2475 = vunpack.c.l.b16 %v2436
        %v2476 = vunpack.c.l.b16 %v2437
        %v2477 = vunpack.c.l.b16 %v2438
        %v2478 = vunpack.c.l.b16 %v2439
        %v2479 = vunpack.c.l.b16 %v2440
        %v2480 = vunpack.c.l.b16 %v2441
        %v2481 = vunpack.c.l.b16 %v2442
        %v2482 = vunpack.c.l.b16 %v2443
        %v2483 = vpack.c.b16 %v2468, %v2467
        %v2484 = vpack.c.b16 %v2470, %v2469
        %v2485 = vpack.c.b16 %v2472, %v2471
        %v2486 = vpack.c.b16 %v2474, %v2473
        %v2487 = vpack.c.b16 %v2476, %v2475
        %v2488 = vpack.c.b16 %v2478, %v2477
        %v2489 = vpack.c.b16 %v2480, %v2479
        %v2490 = vpack.c.b16 %v2482, %v2481
        %2499 = vmatprep.subr.bf16.mxu0 0
        %2500 = vmatpush1.bf16.xpose.msra.mxu0 %v2483
        %2501 = vmatprep.subr.bf16.mxu0 0
        %2502 = vmatpush1.bf16.xpose.msra.mxu0 %v2484
        %2503 = vmatprep.subr.bf16.mxu0 0
        %2504 = vmatpush1.bf16.xpose.msra.mxu0 %v2485
        %2505 = vmatprep.subr.bf16.mxu0 0
        %2506 = vmatpush1.bf16.xpose.msra.mxu0 %v2486
        %2507 = vmatprep.subr.bf16.mxu0 0
        %2508 = vmatpush1.bf16.xpose.msra.mxu0 %v2487
        %2509 = vmatprep.subr.bf16.mxu0 0
        %2510 = vmatpush1.bf16.xpose.msra.mxu0 %v2488
        %2511 = vmatprep.subr.bf16.mxu0 0
        %2512 = vmatpush1.bf16.xpose.msra.mxu0 %v2489
        %2513 = vmatprep.subr.bf16.mxu0 0
        %2514 = vmatpush1.bf16.xpose.msra.mxu0 %v2490
        %2515 = vmatprep.subr.bf16.mxu0 0
        %2516 = vmatpush1.bf16.xpose.msra.mxu0 0
        %2517 = vmatprep.subr.bf16.mxu0 0
        %2518 = vmatpush1.bf16.xpose.msra.mxu0 0
        %2519 = vmatprep.subr.bf16.mxu0 0
        %2520 = vmatpush1.bf16.xpose.msra.mxu0 0
        %2521 = vmatprep.subr.bf16.mxu0 0
        %2522 = vmatpush1.bf16.xpose.msra.mxu0 0
        %2523 = vmatprep.subr.bf16.mxu0 0
        %2524 = vmatpush1.bf16.xpose.msra.mxu0 0
        %2525 = vmatprep.subr.bf16.mxu0 0
        %2526 = vmatpush1.bf16.xpose.msra.mxu0 0
        %2527 = vmatprep.subr.bf16.mxu0 0
        %2528 = vmatpush1.bf16.xpose.msra.mxu0 0
        %2529 = vmatprep.subr.bf16.mxu0 0
        %2530 = vmatpush1.bf16.xpose.msra.mxu0 0
        %2531 = vmatprep.mubr.bf16.mxu0 0
        %2532 = vmatmul.mubr.bf16.gmra.mrb[0].mxu0 %v2426
        %v2533 = vpop.f32.mrb[0].mxu0
        %v2534 = vadd.f32 %v2449, %v2533
        %v2535 = vpop.f32.mrb[0].mxu0
        %v2536 = vpop.f32.mrb[0].mxu0
        %v2537 = vadd.f32 %v2449, %v2536
        %v2538 = vpop.f32.mrb[0].mxu0
        %2539 = vmatprep.mubr.bf16.mxu0 0
        %2540 = vmatmul.mubr.bf16.gmra.mrb[0].mxu0 %v2427
        %v2541 = vpop.f32.mrb[0].mxu0
        %v2542 = vadd.f32 %v2449, %v2541
        %v2543 = vpop.f32.mrb[0].mxu0
        %v2544 = vpop.f32.mrb[0].mxu0
        %v2545 = vpop.f32.mrb[0].mxu0
        %2546 = vdwg.mxu0
        %v2547 = vpack.c.bf16 %v2298, %v2297
        %v2548 = vpack.c.bf16 %v2413, %v2410
        %v2549 = vpack.c.bf16 %v2418, %v2418
        %v2550 = vpack.c.bf16 %v2537, %v2534
        %v2551 = vpack.c.bf16 %v2542, %v2542
        %v2553 = vsel %vm1507, %v2547, 0
        %v2556 = vsel %vm1507, %v2548, 0
        %v2559 = vsel %vm1507, %v2549, 0
        %2561 = vmatprep.subr.bf16.mxu0 0
        %2562 = vmatpush1.bf16.xpose.msra.mxu0 %v2556
        %2563 = vmatprep.subr.bf16.mxu0 0
        %2564 = vmatpush1.bf16.xpose.msra.mxu0 %v2559
        %2565 = vmatprep.subr.bf16.mxu0 0
        %2566 = vmatpush1.bf16.xpose.msra.mxu0 0
        %2567 = vmatprep.subr.bf16.mxu0 0
        %2568 = vmatpush1.bf16.xpose.msra.mxu0 0
        %2569 = vmatprep.subr.bf16.mxu0 0
        %2570 = vmatpush1.bf16.xpose.msra.mxu0 0
        %2571 = vmatprep.subr.bf16.mxu0 0
        %2572 = vmatpush1.bf16.xpose.msra.mxu0 0
        %2573 = vmatprep.subr.bf16.mxu0 0
        %2574 = vmatpush1.bf16.xpose.msra.mxu0 0
        %2575 = vmatprep.subr.bf16.mxu0 0
        %2576 = vmatpush1.bf16.xpose.msra.mxu0 0
        %2577 = vmatprep.subr.bf16.mxu0 0
        %2578 = vmatpush1.bf16.xpose.msra.mxu0 0
        %2579 = vmatprep.subr.bf16.mxu0 0
        %2580 = vmatpush1.bf16.xpose.msra.mxu0 0
        %2581 = vmatprep.subr.bf16.mxu0 0
        %2582 = vmatpush1.bf16.xpose.msra.mxu0 0
        %2583 = vmatprep.subr.bf16.mxu0 0
        %2584 = vmatpush1.bf16.xpose.msra.mxu0 0
        %2585 = vmatprep.subr.bf16.mxu0 0
        %2586 = vmatpush1.bf16.xpose.msra.mxu0 0
        %2587 = vmatprep.subr.bf16.mxu0 0
        %2588 = vmatpush1.bf16.xpose.msra.mxu0 0
        %2589 = vmatprep.subr.bf16.mxu0 0
        %2590 = vmatpush1.bf16.xpose.msra.mxu0 0
        %2591 = vmatprep.subr.bf16.mxu0 0
        %2592 = vmatpush1.bf16.xpose.msra.mxu0 0
        %2593 = vmatprep.mubr.bf16.mxu0 0
        %2594 = vmatmul.mubr.bf16.gmra.mrb[0].mxu0 %v2553
        %v2595 = vpop.f32.mrb[0].mxu0
        %v2596 = vadd.f32 0.0, %v2595
        %v2597 = vpop.f32.mrb[0].mxu0
        %v2598 = vpop.f32.mrb[0].mxu0
        %v2599 = vadd.f32 0.0, %v2598
        %v2600 = vpop.f32.mrb[0].mxu0
        %2601 = vdwg.mxu0
        %vm2602 = vcmask 195584
        %v2603 = vsel %vm2602, %v2596, -inf
        %2604 = vmax.xlane.f32.xlu0 %v2603
        %v2605 = vpop.xlane.xlu0 %2604
        %v2606 = vsel %vm2602, %v2599, -inf
        %2607 = vmax.xlane.f32.xlu0 %v2606
        %v2608 = vpop.xlane.xlu0 %2607
        %v2609 = vsub.f32 %v2596, %v2605
        %v2610 = vsub.f32 %v2599, %v2608
        %v2611 = vmul.f32 %v2609, 1.442695
        %v2612 = vpow.pop %v2611
        %v2613 = vmul.f32 %v2610, 1.442695
        %v2614 = vpow.pop %v2613
        %v2615 = vsel %vm2602, %v2612, 0.0
        %2616 = vadd.xlane.f32.xlu0 %v2615
        %v2617 = vpop.xlane.xlu0 %2616
        %v2618 = vsel %vm2602, %v2614, 0.0
        %2619 = vadd.xlane.f32.xlu0 %v2618
        %v2620 = vpop.xlane.xlu0 %2619
        %v2621 = vrcp.pop %v2617
        %v2622 = vrcp.pop %v2620
        %v2623 = vmul.f32 %v2612, %v2621
        %v2624 = vmul.f32 %v2614, %v2622
        %v2625 = vpack.c.bf16 %v2624, %v2623
        %v2627 = vsel %vm2602, %v2625, 0
        %vm2629 = vcmask 1043456
        %v2631 = vsel %vm2629, %v2551, 0
        %2633 = vmatprep.subr.bf16.mxu0 0
        %2634 = vmatpush1.bf16.msra.mxu0 %v2550
        %2635 = vmatprep.subr.bf16.mxu0 0
        %2636 = vmatpush1.bf16.msra.mxu0 %v2631
        %2637 = vmatprep.subr.bf16.mxu0 0
        %2638 = vmatpush1.bf16.msra.mxu0 0
        %2639 = vmatprep.subr.bf16.mxu0 0
        %2640 = vmatpush1.bf16.msra.mxu0 0
        %2641 = vmatprep.subr.bf16.mxu0 0
        %2642 = vmatpush1.bf16.msra.mxu0 0
        %2643 = vmatprep.subr.bf16.mxu0 0
        %2644 = vmatpush1.bf16.msra.mxu0 0
        %2645 = vmatprep.subr.bf16.mxu0 0
        %2646 = vmatpush1.bf16.msra.mxu0 0
        %2647 = vmatprep.subr.bf16.mxu0 0
        %2648 = vmatpush1.bf16.msra.mxu0 0
        %2649 = vmatprep.subr.bf16.mxu0 0
        %2650 = vmatpush1.bf16.msra.mxu0 0
        %2651 = vmatprep.subr.bf16.mxu0 0
        %2652 = vmatpush1.bf16.msra.mxu0 0
        %2653 = vmatprep.subr.bf16.mxu0 0
        %2654 = vmatpush1.bf16.msra.mxu0 0
        %2655 = vmatprep.subr.bf16.mxu0 0
        %2656 = vmatpush1.bf16.msra.mxu0 0
        %2657 = vmatprep.subr.bf16.mxu0 0
        %2658 = vmatpush1.bf16.msra.mxu0 0
        %2659 = vmatprep.subr.bf16.mxu0 0
        %2660 = vmatpush1.bf16.msra.mxu0 0
        %2661 = vmatprep.subr.bf16.mxu0 0
        %2662 = vmatpush1.bf16.msra.mxu0 0
        %2663 = vmatprep.subr.bf16.mxu0 0
        %2664 = vmatpush1.bf16.msra.mxu0 0
        %2665 = vmatprep.mubr.bf16.mxu0 0
        %2666 = vmatmul.mubr.bf16.gmra.mrb[0].mxu0 %v2627
        %v2667 = vpop.f32.mrb[0].mxu0
        %v2668 = vadd.f32 0.0, %v2667
        %v2669 = vpop.f32.mrb[0].mxu0
        %v2670 = vpop.f32.mrb[0].mxu0
        %v2671 = vadd.f32 0.0, %v2670
        %v2672 = vpop.f32.mrb[0].mxu0
        %2673 = vdwg.mxu0
        %2675 = vrot.lane.b32.xlu0 %v2547, 96
        %v2676 = vpop.permute.xlu0 %2675
        %2679 = vrot.lane.b32.xlu0 %v2548, 96
        %v2680 = vpop.permute.xlu0 %2679
        %2681 = vrot.lane.b32.xlu0 %v2549, 96
        %v2682 = vpop.permute.xlu0 %2681
        %v2684 = vsel %vm1507, %v2676, 0
        %v2687 = vsel %vm1507, %v2680, 0
        %v2690 = vsel %vm1507, %v2682, 0
        %2692 = vmatprep.subr.bf16.mxu0 0
        %2693 = vmatpush1.bf16.xpose.msra.mxu0 %v2687
        %2694 = vmatprep.subr.bf16.mxu0 0
        %2695 = vmatpush1.bf16.xpose.msra.mxu0 %v2690
        %2696 = vmatprep.subr.bf16.mxu0 0
        %2697 = vmatpush1.bf16.xpose.msra.mxu0 0
        %2698 = vmatprep.subr.bf16.mxu0 0
        %2699 = vmatpush1.bf16.xpose.msra.mxu0 0
        %2700 = vmatprep.subr.bf16.mxu0 0
        %2701 = vmatpush1.bf16.xpose.msra.mxu0 0
        %2702 = vmatprep.subr.bf16.mxu0 0
        %2703 = vmatpush1.bf16.xpose.msra.mxu0 0
        %2704 = vmatprep.subr.bf16.mxu0 0
        %2705 = vmatpush1.bf16.xpose.msra.mxu0 0
        %2706 = vmatprep.subr.bf16.mxu0 0
        %2707 = vmatpush1.bf16.xpose.msra.mxu0 0
        %2708 = vmatprep.subr.bf16.mxu0 0
        %2709 = vmatpush1.bf16.xpose.msra.mxu0 0
        %2710 = vmatprep.subr.bf16.mxu0 0
        %2711 = vmatpush1.bf16.xpose.msra.mxu0 0
        %2712 = vmatprep.subr.bf16.mxu0 0
        %2713 = vmatpush1.bf16.xpose.msra.mxu0 0
        %2714 = vmatprep.subr.bf16.mxu0 0
        %2715 = vmatpush1.bf16.xpose.msra.mxu0 0
        %2716 = vmatprep.subr.bf16.mxu0 0
        %2717 = vmatpush1.bf16.xpose.msra.mxu0 0
        %2718 = vmatprep.subr.bf16.mxu0 0
        %2719 = vmatpush1.bf16.xpose.msra.mxu0 0
        %2720 = vmatprep.subr.bf16.mxu0 0
        %2721 = vmatpush1.bf16.xpose.msra.mxu0 0
        %2722 = vmatprep.subr.bf16.mxu0 0
        %2723 = vmatpush1.bf16.xpose.msra.mxu0 0
        %2724 = vmatprep.mubr.bf16.mxu0 0
        %2725 = vmatmul.mubr.bf16.gmra.mrb[0].mxu0 %v2684
        %v2726 = vpop.f32.mrb[0].mxu0
        %v2727 = vadd.f32 0.0, %v2726
        %v2728 = vpop.f32.mrb[0].mxu0
        %v2729 = vpop.f32.mrb[0].mxu0
        %v2730 = vadd.f32 0.0, %v2729
        %v2731 = vpop.f32.mrb[0].mxu0
        %2732 = vdwg.mxu0
        %v2733 = vsel %vm2602, %v2727, -inf
        %2734 = vmax.xlane.f32.xlu0 %v2733
        %v2735 = vpop.xlane.xlu0 %2734
        %v2736 = vsel %vm2602, %v2730, -inf
        %2737 = vmax.xlane.f32.xlu0 %v2736
        %v2738 = vpop.xlane.xlu0 %2737
        %v2739 = vsub.f32 %v2727, %v2735
        %v2740 = vsub.f32 %v2730, %v2738
        %v2741 = vmul.f32 %v2739, 1.442695
        %v2742 = vpow.pop %v2741
        %v2743 = vmul.f32 %v2740, 1.442695
        %v2744 = vpow.pop %v2743
        %v2745 = vsel %vm2602, %v2742, 0.0
        %2746 = vadd.xlane.f32.xlu0 %v2745
        %v2747 = vpop.xlane.xlu0 %2746
        %v2748 = vsel %vm2602, %v2744, 0.0
        %2749 = vadd.xlane.f32.xlu0 %v2748
        %v2750 = vpop.xlane.xlu0 %2749
        %v2751 = vrcp.pop %v2747
        %v2752 = vrcp.pop %v2750
        %v2753 = vmul.f32 %v2742, %v2751
        %v2754 = vmul.f32 %v2744, %v2752
        %v2755 = vpack.c.bf16 %v2754, %v2753
        %2758 = vrot.lane.b32.xlu0 %v2550, 96
        %v2759 = vpop.permute.xlu0 %2758
        %2760 = vrot.lane.b32.xlu0 %v2551, 96
        %v2761 = vpop.permute.xlu0 %2760
        %v2764 = vsel %vm2602, %v2755, 0
        %v2767 = vsel %vm2629, %v2761, 0
        %2769 = vmatprep.subr.bf16.mxu0 0
        %2770 = vmatpush1.bf16.msra.mxu0 %v2759
        %2771 = vmatprep.subr.bf16.mxu0 0
        %2772 = vmatpush1.bf16.msra.mxu0 %v2767
        %2773 = vmatprep.subr.bf16.mxu0 0
        %2774 = vmatpush1.bf16.msra.mxu0 0
        %2775 = vmatprep.subr.bf16.mxu0 0
        %2776 = vmatpush1.bf16.msra.mxu0 0
        %2777 = vmatprep.subr.bf16.mxu0 0
        %2778 = vmatpush1.bf16.msra.mxu0 0
        %2779 = vmatprep.subr.bf16.mxu0 0
        %2780 = vmatpush1.bf16.msra.mxu0 0
        %2781 = vmatprep.subr.bf16.mxu0 0
        %2782 = vmatpush1.bf16.msra.mxu0 0
        %2783 = vmatprep.subr.bf16.mxu0 0
        %2784 = vmatpush1.bf16.msra.mxu0 0
        %2785 = vmatprep.subr.bf16.mxu0 0
        %2786 = vmatpush1.bf16.msra.mxu0 0
        %2787 = vmatprep.subr.bf16.mxu0 0
        %2788 = vmatpush1.bf16.msra.mxu0 0
        %2789 = vmatprep.subr.bf16.mxu0 0
        %2790 = vmatpush1.bf16.msra.mxu0 0
        %2791 = vmatprep.subr.bf16.mxu0 0
        %2792 = vmatpush1.bf16.msra.mxu0 0
        %2793 = vmatprep.subr.bf16.mxu0 0
        %2794 = vmatpush1.bf16.msra.mxu0 0
        %2795 = vmatprep.subr.bf16.mxu0 0
        %2796 = vmatpush1.bf16.msra.mxu0 0
        %2797 = vmatprep.subr.bf16.mxu0 0
        %2798 = vmatpush1.bf16.msra.mxu0 0
        %2799 = vmatprep.subr.bf16.mxu0 0
        %2800 = vmatpush1.bf16.msra.mxu0 0
        %2801 = vmatprep.mubr.bf16.mxu0 0
        %2802 = vmatmul.mubr.bf16.gmra.mrb[0].mxu0 %v2764
        %v2803 = vpop.f32.mrb[0].mxu0
        %v2804 = vadd.f32 0.0, %v2803
        %v2805 = vpop.f32.mrb[0].mxu0
        %v2806 = vpop.f32.mrb[0].mxu0
        %v2807 = vadd.f32 0.0, %v2806
        %v2808 = vpop.f32.mrb[0].mxu0
        %2809 = vdwg.mxu0
        %2810 = vrot.lane.b32.xlu0 %v2547, 64
        %v2811 = vpop.permute.xlu0 %2810
        %2812 = vrot.lane.b32.xlu0 %v2548, 64
        %v2813 = vpop.permute.xlu0 %2812
        %2814 = vrot.lane.b32.xlu0 %v2549, 64
        %v2815 = vpop.permute.xlu0 %2814
        %v2817 = vsel %vm1507, %v2811, 0
        %v2820 = vsel %vm1507, %v2813, 0
        %v2823 = vsel %vm1507, %v2815, 0
        %2825 = vmatprep.subr.bf16.mxu0 0
        %2826 = vmatpush1.bf16.xpose.msra.mxu0 %v2820
        %2827 = vmatprep.subr.bf16.mxu0 0
        %2828 = vmatpush1.bf16.xpose.msra.mxu0 %v2823
        %2829 = vmatprep.subr.bf16.mxu0 0
        %2830 = vmatpush1.bf16.xpose.msra.mxu0 0
        %2831 = vmatprep.subr.bf16.mxu0 0
        %2832 = vmatpush1.bf16.xpose.msra.mxu0 0
        %2833 = vmatprep.subr.bf16.mxu0 0
        %2834 = vmatpush1.bf16.xpose.msra.mxu0 0
        %2835 = vmatprep.subr.bf16.mxu0 0
        %2836 = vmatpush1.bf16.xpose.msra.mxu0 0
        %2837 = vmatprep.subr.bf16.mxu0 0
        %2838 = vmatpush1.bf16.xpose.msra.mxu0 0
        %2839 = vmatprep.subr.bf16.mxu0 0
        %2840 = vmatpush1.bf16.xpose.msra.mxu0 0
        %2841 = vmatprep.subr.bf16.mxu0 0
        %2842 = vmatpush1.bf16.xpose.msra.mxu0 0
        %2843 = vmatprep.subr.bf16.mxu0 0
        %2844 = vmatpush1.bf16.xpose.msra.mxu0 0
        %2845 = vmatprep.subr.bf16.mxu0 0
        %2846 = vmatpush1.bf16.xpose.msra.mxu0 0
        %2847 = vmatprep.subr.bf16.mxu0 0
        %2848 = vmatpush1.bf16.xpose.msra.mxu0 0
        %2849 = vmatprep.subr.bf16.mxu0 0
        %2850 = vmatpush1.bf16.xpose.msra.mxu0 0
        %2851 = vmatprep.subr.bf16.mxu0 0
        %2852 = vmatpush1.bf16.xpose.msra.mxu0 0
        %2853 = vmatprep.subr.bf16.mxu0 0
        %2854 = vmatpush1.bf16.xpose.msra.mxu0 0
        %2855 = vmatprep.subr.bf16.mxu0 0
        %2856 = vmatpush1.bf16.xpose.msra.mxu0 0
        %2857 = vmatprep.mubr.bf16.mxu0 0
        %2858 = vmatmul.mubr.bf16.gmra.mrb[0].mxu0 %v2817
        %v2859 = vpop.f32.mrb[0].mxu0
        %v2860 = vadd.f32 0.0, %v2859
        %v2861 = vpop.f32.mrb[0].mxu0
        %v2862 = vpop.f32.mrb[0].mxu0
        %v2863 = vadd.f32 0.0, %v2862
        %v2864 = vpop.f32.mrb[0].mxu0
        %2865 = vdwg.mxu0
        %v2866 = vsel %vm2602, %v2860, -inf
        %2867 = vmax.xlane.f32.xlu0 %v2866
        %v2868 = vpop.xlane.xlu0 %2867
        %v2869 = vsel %vm2602, %v2863, -inf
        %2870 = vmax.xlane.f32.xlu0 %v2869
        %v2871 = vpop.xlane.xlu0 %2870
        %v2872 = vsub.f32 %v2860, %v2868
        %v2873 = vsub.f32 %v2863, %v2871
        %v2874 = vmul.f32 %v2872, 1.442695
        %v2875 = vpow.pop %v2874
        %v2876 = vmul.f32 %v2873, 1.442695
        %v2877 = vpow.pop %v2876
        %v2878 = vsel %vm2602, %v2875, 0.0
        %2879 = vadd.xlane.f32.xlu0 %v2878
        %v2880 = vpop.xlane.xlu0 %2879
        %v2881 = vsel %vm2602, %v2877, 0.0
        %2882 = vadd.xlane.f32.xlu0 %v2881
        %v2883 = vpop.xlane.xlu0 %2882
        %v2884 = vrcp.pop %v2880
        %v2885 = vrcp.pop %v2883
        %v2886 = vmul.f32 %v2875, %v2884
        %v2887 = vmul.f32 %v2877, %v2885
        %v2888 = vpack.c.bf16 %v2887, %v2886
        %2889 = vrot.lane.b32.xlu0 %v2550, 64
        %v2890 = vpop.permute.xlu0 %2889
        %2891 = vrot.lane.b32.xlu0 %v2551, 64
        %v2892 = vpop.permute.xlu0 %2891
        %v2895 = vsel %vm2602, %v2888, 0
        %v2898 = vsel %vm2629, %v2892, 0
        %2900 = vmatprep.subr.bf16.mxu0 0
        %2901 = vmatpush1.bf16.msra.mxu0 %v2890
        %2902 = vmatprep.subr.bf16.mxu0 0
        %2903 = vmatpush1.bf16.msra.mxu0 %v2898
        %2904 = vmatprep.subr.bf16.mxu0 0
        %2905 = vmatpush1.bf16.msra.mxu0 0
        %2906 = vmatprep.subr.bf16.mxu0 0
        %2907 = vmatpush1.bf16.msra.mxu0 0
        %2908 = vmatprep.subr.bf16.mxu0 0
        %2909 = vmatpush1.bf16.msra.mxu0 0
        %2910 = vmatprep.subr.bf16.mxu0 0
        %2911 = vmatpush1.bf16.msra.mxu0 0
        %2912 = vmatprep.subr.bf16.mxu0 0
        %2913 = vmatpush1.bf16.msra.mxu0 0
        %2914 = vmatprep.subr.bf16.mxu0 0
        %2915 = vmatpush1.bf16.msra.mxu0 0
        %2916 = vmatprep.subr.bf16.mxu0 0
        %2917 = vmatpush1.bf16.msra.mxu0 0
        %2918 = vmatprep.subr.bf16.mxu0 0
        %2919 = vmatpush1.bf16.msra.mxu0 0
        %2920 = vmatprep.subr.bf16.mxu0 0
        %2921 = vmatpush1.bf16.msra.mxu0 0
        %2922 = vmatprep.subr.bf16.mxu0 0
        %2923 = vmatpush1.bf16.msra.mxu0 0
        %2924 = vmatprep.subr.bf16.mxu0 0
        %2925 = vmatpush1.bf16.msra.mxu0 0
        %2926 = vmatprep.subr.bf16.mxu0 0
        %2927 = vmatpush1.bf16.msra.mxu0 0
        %2928 = vmatprep.subr.bf16.mxu0 0
        %2929 = vmatpush1.bf16.msra.mxu0 0
        %2930 = vmatprep.subr.bf16.mxu0 0
        %2931 = vmatpush1.bf16.msra.mxu0 0
        %2932 = vmatprep.mubr.bf16.mxu0 0
        %2933 = vmatmul.mubr.bf16.gmra.mrb[0].mxu0 %v2895
        %v2934 = vpop.f32.mrb[0].mxu0
        %v2935 = vadd.f32 0.0, %v2934
        %v2936 = vpop.f32.mrb[0].mxu0
        %v2937 = vpop.f32.mrb[0].mxu0
        %v2938 = vadd.f32 0.0, %v2937
        %v2939 = vpop.f32.mrb[0].mxu0
        %2940 = vdwg.mxu0
        %2941 = vrot.lane.b32.xlu0 %v2547, 32
        %v2942 = vpop.permute.xlu0 %2941
        %2943 = vrot.lane.b32.xlu0 %v2548, 32
        %v2944 = vpop.permute.xlu0 %2943
        %2945 = vrot.lane.b32.xlu0 %v2549, 32
        %v2946 = vpop.permute.xlu0 %2945
        %v2948 = vsel %vm1507, %v2942, 0
        %v2951 = vsel %vm1507, %v2944, 0
        %v2954 = vsel %vm1507, %v2946, 0
        %2956 = vmatprep.subr.bf16.mxu0 0
        %2957 = vmatpush1.bf16.xpose.msra.mxu0 %v2951
        %2958 = vmatprep.subr.bf16.mxu0 0
        %2959 = vmatpush1.bf16.xpose.msra.mxu0 %v2954
        %2960 = vmatprep.subr.bf16.mxu0 0
        %2961 = vmatpush1.bf16.xpose.msra.mxu0 0
        %2962 = vmatprep.subr.bf16.mxu0 0
        %2963 = vmatpush1.bf16.xpose.msra.mxu0 0
        %2964 = vmatprep.subr.bf16.mxu0 0
        %2965 = vmatpush1.bf16.xpose.msra.mxu0 0
        %2966 = vmatprep.subr.bf16.mxu0 0
        %2967 = vmatpush1.bf16.xpose.msra.mxu0 0
        %2968 = vmatprep.subr.bf16.mxu0 0
        %2969 = vmatpush1.bf16.xpose.msra.mxu0 0
        %2970 = vmatprep.subr.bf16.mxu0 0
        %2971 = vmatpush1.bf16.xpose.msra.mxu0 0
        %2972 = vmatprep.subr.bf16.mxu0 0
        %2973 = vmatpush1.bf16.xpose.msra.mxu0 0
        %2974 = vmatprep.subr.bf16.mxu0 0
        %2975 = vmatpush1.bf16.xpose.msra.mxu0 0
        %2976 = vmatprep.subr.bf16.mxu0 0
        %2977 = vmatpush1.bf16.xpose.msra.mxu0 0
        %2978 = vmatprep.subr.bf16.mxu0 0
        %2979 = vmatpush1.bf16.xpose.msra.mxu0 0
        %2980 = vmatprep.subr.bf16.mxu0 0
        %2981 = vmatpush1.bf16.xpose.msra.mxu0 0
        %2982 = vmatprep.subr.bf16.mxu0 0
        %2983 = vmatpush1.bf16.xpose.msra.mxu0 0
        %2984 = vmatprep.subr.bf16.mxu0 0
        %2985 = vmatpush1.bf16.xpose.msra.mxu0 0
        %2986 = vmatprep.subr.bf16.mxu0 0
        %2987 = vmatpush1.bf16.xpose.msra.mxu0 0
        %2988 = vmatprep.mubr.bf16.mxu0 0
        %2989 = vmatmul.mubr.bf16.gmra.mrb[0].mxu0 %v2948
        %v2990 = vpop.f32.mrb[0].mxu0
        %v2991 = vadd.f32 0.0, %v2990
        %v2992 = vpop.f32.mrb[0].mxu0
        %v2993 = vpop.f32.mrb[0].mxu0
        %v2994 = vadd.f32 0.0, %v2993
        %v2995 = vpop.f32.mrb[0].mxu0
        %2996 = vdwg.mxu0
        %v2997 = vsel %vm2602, %v2991, -inf
        %2998 = vmax.xlane.f32.xlu0 %v2997
        %v2999 = vpop.xlane.xlu0 %2998
        %v3000 = vsel %vm2602, %v2994, -inf
        %3001 = vmax.xlane.f32.xlu0 %v3000
        %v3002 = vpop.xlane.xlu0 %3001
        %v3003 = vsub.f32 %v2991, %v2999
        %v3004 = vsub.f32 %v2994, %v3002
        %v3005 = vmul.f32 %v3003, 1.442695
        %v3006 = vpow.pop %v3005
        %v3007 = vmul.f32 %v3004, 1.442695
        %v3008 = vpow.pop %v3007
        %v3009 = vsel %vm2602, %v3006, 0.0
        %3010 = vadd.xlane.f32.xlu0 %v3009
        %v3011 = vpop.xlane.xlu0 %3010
        %v3012 = vsel %vm2602, %v3008, 0.0
        %3013 = vadd.xlane.f32.xlu0 %v3012
        %v3014 = vpop.xlane.xlu0 %3013
        %v3015 = vrcp.pop %v3011
        %v3016 = vrcp.pop %v3014
        %v3017 = vmul.f32 %v3006, %v3015
        %v3018 = vmul.f32 %v3008, %v3016
        %v3019 = vpack.c.bf16 %v3018, %v3017
        %3020 = vrot.lane.b32.xlu0 %v2550, 32
        %v3021 = vpop.permute.xlu0 %3020
        %3022 = vrot.lane.b32.xlu0 %v2551, 32
        %v3023 = vpop.permute.xlu0 %3022
        %v3026 = vsel %vm2602, %v3019, 0
        %v3029 = vsel %vm2629, %v3023, 0
        %3031 = vmatprep.subr.bf16.mxu0 0
        %3032 = vmatpush1.bf16.msra.mxu0 %v3021
        %3033 = vmatprep.subr.bf16.mxu0 0
        %3034 = vmatpush1.bf16.msra.mxu0 %v3029
        %3035 = vmatprep.subr.bf16.mxu0 0
        %3036 = vmatpush1.bf16.msra.mxu0 0
        %3037 = vmatprep.subr.bf16.mxu0 0
        %3038 = vmatpush1.bf16.msra.mxu0 0
        %3039 = vmatprep.subr.bf16.mxu0 0
        %3040 = vmatpush1.bf16.msra.mxu0 0
        %3041 = vmatprep.subr.bf16.mxu0 0
        %3042 = vmatpush1.bf16.msra.mxu0 0
        %3043 = vmatprep.subr.bf16.mxu0 0
        %3044 = vmatpush1.bf16.msra.mxu0 0
        %3045 = vmatprep.subr.bf16.mxu0 0
        %3046 = vmatpush1.bf16.msra.mxu0 0
        %3047 = vmatprep.subr.bf16.mxu0 0
        %3048 = vmatpush1.bf16.msra.mxu0 0
        %3049 = vmatprep.subr.bf16.mxu0 0
        %3050 = vmatpush1.bf16.msra.mxu0 0
        %3051 = vmatprep.subr.bf16.mxu0 0
        %3052 = vmatpush1.bf16.msra.mxu0 0
        %3053 = vmatprep.subr.bf16.mxu0 0
        %3054 = vmatpush1.bf16.msra.mxu0 0
        %3055 = vmatprep.subr.bf16.mxu0 0
        %3056 = vmatpush1.bf16.msra.mxu0 0
        %3057 = vmatprep.subr.bf16.mxu0 0
        %3058 = vmatpush1.bf16.msra.mxu0 0
        %3059 = vmatprep.subr.bf16.mxu0 0
        %3060 = vmatpush1.bf16.msra.mxu0 0
        %3061 = vmatprep.subr.bf16.mxu0 0
        %3062 = vmatpush1.bf16.msra.mxu0 0
        %3063 = vmatprep.mubr.bf16.mxu0 0
        %3064 = vmatmul.mubr.bf16.gmra.mrb[0].mxu0 %v3026
        %v3065 = vpop.f32.mrb[0].mxu0
        %v3066 = vadd.f32 0.0, %v3065
        %v3067 = vpop.f32.mrb[0].mxu0
        %v3068 = vpop.f32.mrb[0].mxu0
        %v3069 = vadd.f32 0.0, %v3068
        %v3070 = vpop.f32.mrb[0].mxu0
        %3071 = vdwg.mxu0
        %3074 = vrot.lane.b32.xlu0 %v2804, 32
        %v3075 = vpop.permute.xlu0 %3074
        %3076 = vrot.lane.b32.xlu0 %v2807, 32
        %v3077 = vpop.permute.xlu0 %3076
        %3082 = vrot.lane.b32.xlu0 %v2935, 64
        %v3083 = vpop.permute.xlu0 %3082
        %3084 = vrot.lane.b32.xlu0 %v2938, 64
        %v3085 = vpop.permute.xlu0 %3084
        %3090 = vrot.lane.b32.xlu0 %v3066, 96
        %v3091 = vpop.permute.xlu0 %3090
        %3092 = vrot.lane.b32.xlu0 %v3069, 96
        %v3093 = vpop.permute.xlu0 %3092
        %v3096 = vsel %vm1507, %v2668, %v3075
        %v3097 = vsel %vm1507, %v2671, %v3077
        %v3098 = vsel %vm2023, %v3096, %v3083
        %v3099 = vsel %vm2023, %v3097, %v3085
        %v3100 = vsel %vm2026, %v3098, %v3091
        %v3101 = vsel %vm2026, %v3099, %v3093
        %v3102 = vpack.c.bf16 %v3101, %v3100
        %v3103 = vld [vmem:[%s17] sm:$0xf]
        %v3104 = vld [vmem:[%s17 + $0x4] sm:$0xf]
        %v3105 = vld [vmem:[%s17 + $0x8] sm:$0xf]
        %v3106 = vld [vmem:[%s17 + $0xc] sm:$0xf]
        %v3107 = vld [vmem:[%s17 + $0x10] sm:$0xf]
        %v3108 = vld [vmem:[%s17 + $0x14] sm:$0xf]
        %v3109 = vld [vmem:[%s17 + $0x18] sm:$0xf]
        %v3110 = vld [vmem:[%s17 + $0x1c] sm:$0xf]
        %v3111 = vld [vmem:[%s17 + $0x20] sm:$0xf]
        %v3112 = vld [vmem:[%s17 + $0x24] sm:$0xf]
        %v3113 = vld [vmem:[%s17 + $0x28] sm:$0xf]
        %v3114 = vld [vmem:[%s17 + $0x2c] sm:$0xf]
        %v3115 = vld [vmem:[%s17 + $0x30] sm:$0xf]
        %v3116 = vld [vmem:[%s17 + $0x34] sm:$0xf]
        %v3117 = vld [vmem:[%s17 + $0x38] sm:$0xf]
        %v3118 = vld [vmem:[%s17 + $0x3c] sm:$0xf]
        %v3119 = vld [vmem:[%s18] sm:$0x1]
        %v3121 = vlaneseq
        %v3122 = vshrl.u32 %v3121, 7
        %v3123 = vsub.s32 0, %v3122
        %v3124 = vrot.slane %v3119, %v3123
        %v3142 = vunpack.c.l.b16 %v3103
        %v3143 = vunpack.c.l.b16 %v3104
        %v3144 = vunpack.c.l.b16 %v3105
        %v3145 = vunpack.c.l.b16 %v3106
        %v3146 = vunpack.c.l.b16 %v3107
        %v3147 = vunpack.c.l.b16 %v3108
        %v3148 = vunpack.c.l.b16 %v3109
        %v3149 = vunpack.c.l.b16 %v3110
        %v3150 = vunpack.c.l.b16 %v3111
        %v3151 = vunpack.c.l.b16 %v3112
        %v3152 = vunpack.c.l.b16 %v3113
        %v3153 = vunpack.c.l.b16 %v3114
        %v3154 = vunpack.c.l.b16 %v3115
        %v3155 = vunpack.c.l.b16 %v3116
        %v3156 = vunpack.c.l.b16 %v3117
        %v3157 = vunpack.c.l.b16 %v3118
        %v3158 = vpack.c.b16 %v3143, %v3142
        %v3159 = vpack.c.b16 %v3145, %v3144
        %v3160 = vpack.c.b16 %v3147, %v3146
        %v3161 = vpack.c.b16 %v3149, %v3148
        %v3162 = vpack.c.b16 %v3151, %v3150
        %v3163 = vpack.c.b16 %v3153, %v3152
        %v3164 = vpack.c.b16 %v3155, %v3154
        %v3165 = vpack.c.b16 %v3157, %v3156
        %3174 = vmatprep.subr.bf16.mxu0 0
        %3175 = vmatpush1.bf16.xpose.msra.mxu0 %v3158
        %3176 = vmatprep.subr.bf16.mxu0 0
        %3177 = vmatpush1.bf16.xpose.msra.mxu0 %v3159
        %3178 = vmatprep.subr.bf16.mxu0 0
        %3179 = vmatpush1.bf16.xpose.msra.mxu0 %v3160
        %3180 = vmatprep.subr.bf16.mxu0 0
        %3181 = vmatpush1.bf16.xpose.msra.mxu0 %v3161
        %3182 = vmatprep.subr.bf16.mxu0 0
        %3183 = vmatpush1.bf16.xpose.msra.mxu0 %v3162
        %3184 = vmatprep.subr.bf16.mxu0 0
        %3185 = vmatpush1.bf16.xpose.msra.mxu0 %v3163
        %3186 = vmatprep.subr.bf16.mxu0 0
        %3187 = vmatpush1.bf16.xpose.msra.mxu0 %v3164
        %3188 = vmatprep.subr.bf16.mxu0 0
        %3189 = vmatpush1.bf16.xpose.msra.mxu0 %v3165
        %3190 = vmatprep.subr.bf16.mxu0 0
        %3191 = vmatpush1.bf16.xpose.msra.mxu0 0
        %3192 = vmatprep.subr.bf16.mxu0 0
        %3193 = vmatpush1.bf16.xpose.msra.mxu0 0
        %3194 = vmatprep.subr.bf16.mxu0 0
        %3195 = vmatpush1.bf16.xpose.msra.mxu0 0
        %3196 = vmatprep.subr.bf16.mxu0 0
        %3197 = vmatpush1.bf16.xpose.msra.mxu0 0
        %3198 = vmatprep.subr.bf16.mxu0 0
        %3199 = vmatpush1.bf16.xpose.msra.mxu0 0
        %3200 = vmatprep.subr.bf16.mxu0 0
        %3201 = vmatpush1.bf16.xpose.msra.mxu0 0
        %3202 = vmatprep.subr.bf16.mxu0 0
        %3203 = vmatpush1.bf16.xpose.msra.mxu0 0
        %3204 = vmatprep.subr.bf16.mxu0 0
        %3205 = vmatpush1.bf16.xpose.msra.mxu0 0
        %3206 = vmatprep.mubr.bf16.mxu0 0
        %3207 = vmatmul.mubr.bf16.gmra.mrb[0].mxu0 %v3102
        %v3208 = vpop.f32.mrb[0].mxu0
        %v3209 = vadd.f32 %v3124, %v3208
        %v3210 = vpop.f32.mrb[0].mxu0
        %v3211 = vpop.f32.mrb[0].mxu0
        %v3212 = vadd.f32 %v3124, %v3211
        %v3213 = vpop.f32.mrb[0].mxu0
        %3214 = vdwg.mxu0
        %v3215 = vadd.f32 %v2142, %v3209
        %v3216 = vadd.f32 %v2143, %v3212
        %v3217 = vld [vmem:[%s25] sm:$0x1]
        %v3218 = vld [vmem:[%s26] sm:$0x1]
        %3219 = vadd.xlane.f32.xlu0 %v3215
        %v3220 = vpop.xlane.xlu0 %3219
        %3221 = vadd.xlane.f32.xlu0 %v3216
        %v3222 = vpop.xlane.xlu0 %3221
        %v3223 = vmul.f32 %v3220, %v1165
        %v3224 = vmul.f32 %v3222, %v1165
        %v3225 = vsub.f32 %v3215, %v3223
        %v3226 = vsub.f32 %v3216, %v3224
        %v3227 = vmul.f32 %v3225, %v3225
        %v3228 = vmul.f32 %v3226, %v3226
        %3229 = vadd.xlane.f32.xlu0 %v3227
        %v3230 = vpop.xlane.xlu0 %3229
        %3231 = vadd.xlane.f32.xlu0 %v3228
        %v3232 = vpop.xlane.xlu0 %3231
        %v3233 = vmul.f32 %v3230, %v1165
        %v3234 = vmul.f32 %v3232, %v1165
        %v3235 = vadd.f32 %v3233, 1e-05
        %v3236 = vadd.f32 %v3234, 1e-05
        %v3237 = vrsqrt.pop %v3235
        %v3238 = vrsqrt.pop %v3236
        %v3239 = vmul.f32 %v3225, %v3237
        %v3240 = vmul.f32 %v3226, %v3238
        %v3242 = vlaneseq
        %v3243 = vshrl.u32 %v3242, 7
        %v3244 = vsub.s32 0, %v3243
        %v3245 = vrot.slane %v3217, %v3244
        %v3247 = vmul.f32 %v3239, %v3245
        %v3248 = vmul.f32 %v3240, %v3245
        %v3250 = vlaneseq
        %v3251 = vshrl.u32 %v3250, 7
        %v3252 = vsub.s32 0, %v3251
        %v3253 = vrot.slane %v3218, %v3252
        %v3255 = vadd.f32 %v3247, %v3253
        %v3256 = vadd.f32 %v3248, %v3253
        %v3257 = vpack.c.bf16 %v3256, %v3255
        %v3258 = vld [vmem:[#allocation28] sm:$0xf]
        %v3259 = vld [vmem:[#allocation28 + $0x4] sm:$0xf]
        %v3260 = vld [vmem:[#allocation28 + $0x8] sm:$0xf]
        %v3261 = vld [vmem:[#allocation28 + $0xc] sm:$0xf]
        %v3262 = vld [vmem:[#allocation28 + $0x10] sm:$0xf]
        %v3263 = vld [vmem:[#allocation28 + $0x14] sm:$0xf]
        %v3264 = vld [vmem:[#allocation28 + $0x18] sm:$0xf]
        %v3265 = vld [vmem:[#allocation28 + $0x1c] sm:$0xf]
        %v3266 = vld [vmem:[#allocation28 + $0x20] sm:$0xf]
        %v3267 = vld [vmem:[#allocation28 + $0x24] sm:$0xf]
        %v3268 = vld [vmem:[#allocation28 + $0x28] sm:$0xf]
        %v3269 = vld [vmem:[#allocation28 + $0x2c] sm:$0xf]
        %v3270 = vld [vmem:[#allocation28 + $0x30] sm:$0xf]
        %v3271 = vld [vmem:[#allocation28 + $0x34] sm:$0xf]
        %v3272 = vld [vmem:[#allocation28 + $0x38] sm:$0xf]
        %v3273 = vld [vmem:[#allocation28 + $0x3c] sm:$0xf]
        %v3274 = vld [vmem:[#allocation28 + $0x40] sm:$0xf]
        %v3275 = vld [vmem:[#allocation28 + $0x44] sm:$0xf]
        %v3276 = vld [vmem:[#allocation28 + $0x48] sm:$0xf]
        %v3277 = vld [vmem:[#allocation28 + $0x4c] sm:$0xf]
        %v3278 = vld [vmem:[#allocation28 + $0x50] sm:$0xf]
        %v3279 = vld [vmem:[#allocation28 + $0x54] sm:$0xf]
        %v3280 = vld [vmem:[#allocation28 + $0x58] sm:$0xf]
        %v3281 = vld [vmem:[#allocation28 + $0x5c] sm:$0xf]
        %v3282 = vld [vmem:[#allocation28 + $0x60] sm:$0xf]
        %v3283 = vld [vmem:[#allocation28 + $0x64] sm:$0xf]
        %v3284 = vld [vmem:[#allocation28 + $0x68] sm:$0xf]
        %v3285 = vld [vmem:[#allocation28 + $0x6c] sm:$0xf]
        %v3286 = vld [vmem:[#allocation28 + $0x70] sm:$0xf]
        %v3287 = vld [vmem:[#allocation28 + $0x74] sm:$0xf]
        %v3288 = vld [vmem:[#allocation28 + $0x78] sm:$0xf]
        %v3289 = vld [vmem:[#allocation28 + $0x7c] sm:$0xf]
        %v3290 = vld [vmem:[%s22] sm:$0x3]
        %v3292 = vlaneseq
        %v3293 = vshrl.u32 %v3292, 7
        %v3294 = vsub.s32 0, %v3293
        %v3295 = vrot.slane %v3290, %v3294
        %v3296 = vlaneseq
        %v3297 = vshrl.u32 %v3296, 7
        %v3298 = vsub.s32 1, %v3297
        %v3299 = vrot.slane %v3290, %v3298
        %v3334 = vunpack.c.l.b16 %v3258
        %v3335 = vunpack.c.l.b16 %v3259
        %v3336 = vunpack.c.l.b16 %v3260
        %v3337 = vunpack.c.l.b16 %v3261
        %v3338 = vunpack.c.l.b16 %v3262
        %v3339 = vunpack.c.l.b16 %v3263
        %v3340 = vunpack.c.l.b16 %v3264
        %v3341 = vunpack.c.l.b16 %v3265
        %v3342 = vunpack.c.l.b16 %v3266
        %v3343 = vunpack.c.l.b16 %v3267
        %v3344 = vunpack.c.l.b16 %v3268
        %v3345 = vunpack.c.l.b16 %v3269
        %v3346 = vunpack.c.l.b16 %v3270
        %v3347 = vunpack.c.l.b16 %v3271
        %v3348 = vunpack.c.l.b16 %v3272
        %v3349 = vunpack.c.l.b16 %v3273
        %v3350 = vunpack.c.l.b16 %v3274
        %v3351 = vunpack.c.l.b16 %v3275
        %v3352 = vunpack.c.l.b16 %v3276
        %v3353 = vunpack.c.l.b16 %v3277
        %v3354 = vunpack.c.l.b16 %v3278
        %v3355 = vunpack.c.l.b16 %v3279
        %v3356 = vunpack.c.l.b16 %v3280
        %v3357 = vunpack.c.l.b16 %v3281
        %v3358 = vunpack.c.l.b16 %v3282
        %v3359 = vunpack.c.l.b16 %v3283
        %v3360 = vunpack.c.l.b16 %v3284
        %v3361 = vunpack.c.l.b16 %v3285
        %v3362 = vunpack.c.l.b16 %v3286
        %v3363 = vunpack.c.l.b16 %v3287
        %v3364 = vunpack.c.l.b16 %v3288
        %v3365 = vunpack.c.l.b16 %v3289
        %v3366 = vpack.c.b16 %v3335, %v3334
        %v3367 = vpack.c.b16 %v3337, %v3336
        %v3368 = vpack.c.b16 %v3339, %v3338
        %v3369 = vpack.c.b16 %v3341, %v3340
        %v3370 = vpack.c.b16 %v3343, %v3342
        %v3371 = vpack.c.b16 %v3345, %v3344
        %v3372 = vpack.c.b16 %v3347, %v3346
        %v3373 = vpack.c.b16 %v3349, %v3348
        %v3374 = vpack.c.b16 %v3351, %v3350
        %v3375 = vpack.c.b16 %v3353, %v3352
        %v3376 = vpack.c.b16 %v3355, %v3354
        %v3377 = vpack.c.b16 %v3357, %v3356
        %v3378 = vpack.c.b16 %v3359, %v3358
        %v3379 = vpack.c.b16 %v3361, %v3360
        %v3380 = vpack.c.b16 %v3363, %v3362
        %v3381 = vpack.c.b16 %v3365, %v3364
        %3398 = vmatprep.subr.bf16.mxu0 0
        %3399 = vmatpush1.bf16.xpose.msra.mxu0 %v3366
        %3400 = vmatprep.subr.bf16.mxu0 0
        %3401 = vmatpush1.bf16.xpose.msra.mxu0 %v3367
        %3402 = vmatprep.subr.bf16.mxu0 0
        %3403 = vmatpush1.bf16.xpose.msra.mxu0 %v3368
        %3404 = vmatprep.subr.bf16.mxu0 0
        %3405 = vmatpush1.bf16.xpose.msra.mxu0 %v3369
        %3406 = vmatprep.subr.bf16.mxu0 0
        %3407 = vmatpush1.bf16.xpose.msra.mxu0 %v3370
        %3408 = vmatprep.subr.bf16.mxu0 0
        %3409 = vmatpush1.bf16.xpose.msra.mxu0 %v3371
        %3410 = vmatprep.subr.bf16.mxu0 0
        %3411 = vmatpush1.bf16.xpose.msra.mxu0 %v3372
        %3412 = vmatprep.subr.bf16.mxu0 0
        %3413 = vmatpush1.bf16.xpose.msra.mxu0 %v3373
        %3414 = vmatprep.subr.bf16.mxu0 0
        %3415 = vmatpush1.bf16.xpose.msra.mxu0 %v3374
        %3416 = vmatprep.subr.bf16.mxu0 0
        %3417 = vmatpush1.bf16.xpose.msra.mxu0 %v3375
        %3418 = vmatprep.subr.bf16.mxu0 0
        %3419 = vmatpush1.bf16.xpose.msra.mxu0 %v3376
        %3420 = vmatprep.subr.bf16.mxu0 0
        %3421 = vmatpush1.bf16.xpose.msra.mxu0 %v3377
        %3422 = vmatprep.subr.bf16.mxu0 0
        %3423 = vmatpush1.bf16.xpose.msra.mxu0 %v3378
        %3424 = vmatprep.subr.bf16.mxu0 0
        %3425 = vmatpush1.bf16.xpose.msra.mxu0 %v3379
        %3426 = vmatprep.subr.bf16.mxu0 0
        %3427 = vmatpush1.bf16.xpose.msra.mxu0 %v3380
        %3428 = vmatprep.subr.bf16.mxu0 0
        %3429 = vmatpush1.bf16.xpose.msra.mxu0 %v3381
        %3430 = vmatprep.mubr.bf16.mxu0 0
        %3431 = vmatmul.mubr.bf16.gmra.mrb[0].mxu0 %v3257
        %v3432 = vpop.f32.mrb[0].mxu0
        %v3433 = vadd.f32 %v3295, %v3432
        %v3434 = vpop.f32.mrb[0].mxu0
        %v3435 = vadd.f32 %v3299, %v3434
        %v3436 = vpop.f32.mrb[0].mxu0
        %v3437 = vadd.f32 %v3295, %v3436
        %v3438 = vpop.f32.mrb[0].mxu0
        %v3439 = vadd.f32 %v3299, %v3438
        %3440 = vdwg.mxu0
        %v3441 = vmul.f32 %v3433, 0.5
        %v3442 = vmul.f32 %v3435, 0.5
        %v3443 = vmul.f32 %v3437, 0.5
        %v3444 = vmul.f32 %v3439, 0.5
        %v3445 = vmul.f32 %v3433, 0.70710677
        %v3446 = vmul.f32 %v3435, 0.70710677
        %v3447 = vmul.f32 %v3437, 0.70710677
        %v3448 = vmul.f32 %v3439, 0.70710677
        %v3449 = verf.f32.pop %v3445
        %v3450 = verf.f32.pop %v3446
        %v3451 = verf.f32.pop %v3447
        %v3452 = verf.f32.pop %v3448
        %v3453 = vadd.f32 %v3449, 1.0
        %v3454 = vadd.f32 %v3450, 1.0
        %v3455 = vadd.f32 %v3451, 1.0
        %v3456 = vadd.f32 %v3452, 1.0
        %v3457 = vmul.f32 %v3441, %v3453
        %v3458 = vmul.f32 %v3442, %v3454
        %v3459 = vmul.f32 %v3443, %v3455
        %v3460 = vmul.f32 %v3444, %v3456
        %v3461 = vpack.c.bf16 %v3459, %v3457
        %v3462 = vpack.c.bf16 %v3460, %v3458
        %v3463 = vld [vmem:[#allocation30] sm:$0xff]
        %v3464 = vld [vmem:[#allocation30 + $0x8] sm:$0xff]
        %v3465 = vld [vmem:[#allocation30 + $0x10] sm:$0xff]
        %v3466 = vld [vmem:[#allocation30 + $0x18] sm:$0xff]
        %v3467 = vld [vmem:[#allocation30 + $0x20] sm:$0xff]
        %v3468 = vld [vmem:[#allocation30 + $0x28] sm:$0xff]
        %v3469 = vld [vmem:[#allocation30 + $0x30] sm:$0xff]
        %v3470 = vld [vmem:[#allocation30 + $0x38] sm:$0xff]
        %v3471 = vld [vmem:[#allocation30 + $0x40] sm:$0xff]
        %v3472 = vld [vmem:[#allocation30 + $0x48] sm:$0xff]
        %v3473 = vld [vmem:[#allocation30 + $0x50] sm:$0xff]
        %v3474 = vld [vmem:[#allocation30 + $0x58] sm:$0xff]
        %v3475 = vld [vmem:[#allocation30 + $0x60] sm:$0xff]
        %v3476 = vld [vmem:[#allocation30 + $0x68] sm:$0xff]
        %v3477 = vld [vmem:[#allocation30 + $0x70] sm:$0xff]
        %v3478 = vld [vmem:[#allocation30 + $0x78] sm:$0xff]
        %v3479 = vld [vmem:[%s24] sm:$0x1]
        %v3481 = vlaneseq
        %v3482 = vshrl.u32 %v3481, 7
        %v3483 = vsub.s32 0, %v3482
        %v3484 = vrot.slane %v3479, %v3483
        %v3502 = vunpack.c.l.b16 %v3463
        %v3503 = vunpack.c.h.b16 %v3463
        %v3504 = vunpack.c.l.b16 %v3464
        %v3505 = vunpack.c.h.b16 %v3464
        %v3506 = vunpack.c.l.b16 %v3465
        %v3507 = vunpack.c.h.b16 %v3465
        %v3508 = vunpack.c.l.b16 %v3466
        %v3509 = vunpack.c.h.b16 %v3466
        %v3510 = vunpack.c.l.b16 %v3467
        %v3511 = vunpack.c.h.b16 %v3467
        %v3512 = vunpack.c.l.b16 %v3468
        %v3513 = vunpack.c.h.b16 %v3468
        %v3514 = vunpack.c.l.b16 %v3469
        %v3515 = vunpack.c.h.b16 %v3469
        %v3516 = vunpack.c.l.b16 %v3470
        %v3517 = vunpack.c.h.b16 %v3470
        %v3518 = vunpack.c.l.b16 %v3471
        %v3519 = vunpack.c.h.b16 %v3471
        %v3520 = vunpack.c.l.b16 %v3472
        %v3521 = vunpack.c.h.b16 %v3472
        %v3522 = vunpack.c.l.b16 %v3473
        %v3523 = vunpack.c.h.b16 %v3473
        %v3524 = vunpack.c.l.b16 %v3474
        %v3525 = vunpack.c.h.b16 %v3474
        %v3526 = vunpack.c.l.b16 %v3475
        %v3527 = vunpack.c.h.b16 %v3475
        %v3528 = vunpack.c.l.b16 %v3476
        %v3529 = vunpack.c.h.b16 %v3476
        %v3530 = vunpack.c.l.b16 %v3477
        %v3531 = vunpack.c.h.b16 %v3477
        %v3532 = vunpack.c.l.b16 %v3478
        %v3533 = vunpack.c.h.b16 %v3478
        %v3534 = vpack.c.b16 %v3504, %v3502
        %v3535 = vpack.c.b16 %v3505, %v3503
        %v3536 = vpack.c.b16 %v3508, %v3506
        %v3537 = vpack.c.b16 %v3509, %v3507
        %v3538 = vpack.c.b16 %v3512, %v3510
        %v3539 = vpack.c.b16 %v3513, %v3511
        %v3540 = vpack.c.b16 %v3516, %v3514
        %v3541 = vpack.c.b16 %v3517, %v3515
        %v3542 = vpack.c.b16 %v3520, %v3518
        %v3543 = vpack.c.b16 %v3521, %v3519
        %v3544 = vpack.c.b16 %v3524, %v3522
        %v3545 = vpack.c.b16 %v3525, %v3523
        %v3546 = vpack.c.b16 %v3528, %v3526
        %v3547 = vpack.c.b16 %v3529, %v3527
        %v3548 = vpack.c.b16 %v3532, %v3530
        %v3549 = vpack.c.b16 %v3533, %v3531
        %3566 = vmatprep.subr.bf16.mxu0 %v3535
        %3567 = vmatpush1.bf16.xpose.msra.mxu0 %v3534
        %3568 = vmatprep.subr.bf16.mxu0 %v3537
        %3569 = vmatpush1.bf16.xpose.msra.mxu0 %v3536
        %3570 = vmatprep.subr.bf16.mxu0 %v3539
        %3571 = vmatpush1.bf16.xpose.msra.mxu0 %v3538
        %3572 = vmatprep.subr.bf16.mxu0 %v3541
        %3573 = vmatpush1.bf16.xpose.msra.mxu0 %v3540
        %3574 = vmatprep.subr.bf16.mxu0 %v3543
        %3575 = vmatpush1.bf16.xpose.msra.mxu0 %v3542
        %3576 = vmatprep.subr.bf16.mxu0 %v3545
        %3577 = vmatpush1.bf16.xpose.msra.mxu0 %v3544
        %3578 = vmatprep.subr.bf16.mxu0 %v3547
        %3579 = vmatpush1.bf16.xpose.msra.mxu0 %v3546
        %3580 = vmatprep.subr.bf16.mxu0 %v3549
        %3581 = vmatpush1.bf16.xpose.msra.mxu0 %v3548
        %3582 = vmatprep.subr.bf16.mxu0 0
        %3583 = vmatpush1.bf16.xpose.msra.mxu0 0
        %3584 = vmatprep.subr.bf16.mxu0 0
        %3585 = vmatpush1.bf16.xpose.msra.mxu0 0
        %3586 = vmatprep.subr.bf16.mxu0 0
        %3587 = vmatpush1.bf16.xpose.msra.mxu0 0
        %3588 = vmatprep.subr.bf16.mxu0 0
        %3589 = vmatpush1.bf16.xpose.msra.mxu0 0
        %3590 = vmatprep.subr.bf16.mxu0 0
        %3591 = vmatpush1.bf16.xpose.msra.mxu0 0
        %3592 = vmatprep.subr.bf16.mxu0 0
        %3593 = vmatpush1.bf16.xpose.msra.mxu0 0
        %3594 = vmatprep.subr.bf16.mxu0 0
        %3595 = vmatpush1.bf16.xpose.msra.mxu0 0
        %3596 = vmatprep.subr.bf16.mxu0 0
        %3597 = vmatpush1.bf16.xpose.msra.mxu0 0
        %3598 = vmatprep.mubr.bf16.mxu0 %v3462
        %3599 = vmatmul.mubr.bf16.gmra.mrb[0].mxu0 %v3461
        %v3600 = vpop.f32.mrb[0].mxu0
        %v3601 = vadd.f32 %v3484, %v3600
        %v3602 = vpop.f32.mrb[0].mxu0
        %v3603 = vpop.f32.mrb[0].mxu0
        %v3604 = vadd.f32 %v3484, %v3603
        %v3605 = vpop.f32.mrb[0].mxu0
        %3606 = vdwg.mxu0
        %v3607 = vadd.f32 %v3215, %v3601
        %v3608 = vadd.f32 %v3216, %v3604
        %3609 = vst [vmem:[%s1153] sm:$0xff] %v3607
        %3610 = vst [vmem:[%s1153 + $0x8] sm:$0xff] %v3608
        %s3611 = sand.u32 %s649, 1
        %s3612 = scalar_lea.sflag [#allocation4], %s3611
        %s3613 = sand.u32 %s649, 1
        %s3614 = smul.addr %s3613, 16
        %s3615 = scalar_lea.vmem [#allocation31], %s3614
        // Predicated region
        $region205: #{tpu_custom_call.1} parent=127 // pred_check
          %p3616 = pneg %p659
        $region206: #{tpu_custom_call.1} parent=127 // pred_check_branch
          %3618 = sbr.rel (%p3616) target = $region208
        $region207: #{tpu_custom_call.1} parent=127 // pred_region
          %s3620 = ssub.s32 256, 256
          %3621 = vsyncadd %s3612, %s3620
          %s3622 = smul.addr %s54, 2
          %s3623 = smul.addr %s3622, 128
          %s3624 = scalar_lea.hbm %s27, %s3623
          %s3625 = sshll.u32 %s3615, 4
          %s3626 = int_to_ptr.vmem [resolvable:$true] %s3625
          %3631 = dma.vmem_to_hbm [thread:$0]  %s3626, 256, %s3624, %s3612, 128, 128, 8
        $region208: #{tpu_custom_call.1} parent=127 // pred_fallthru
          _
      $region128: #{tpu_custom_call.1} parent=5 // pred_fallthru
        _
      %p3632 = scmp.le.s32.totalorder 2, %s49
      // Predicated region
      $region209: #{tpu_custom_call.1} parent=5 // pred_check
        %p3633 = pneg %p3632
      $region210: #{tpu_custom_call.1} parent=5 // pred_check_branch
        %3635 = sbr.rel (%p3633) target = $region212
      $region211: #{tpu_custom_call.1} parent=5 // pred_region
        %s3636 = ssub.s32 %s49, 2
        // Predicated region
        $region213: #{tpu_custom_call.1} parent=211 // pred_check
          %p3637 = pneg %p665
        $region214: #{tpu_custom_call.1} parent=211 // pred_check_branch
          %3639 = sbr.rel (%p3637) target = $region216
        $region215: #{tpu_custom_call.1} parent=211 // pred_region
          %s3640 = sand.u32 %s650, 1
          %s3641 = scalar_lea.sflag [#allocation4], %s3640
          %s3642 = sand.u32 %s650, 1
          %s3643 = smul.addr %s3642, 16
          %s3644 = scalar_lea.vmem [#allocation31], %s3643
          %3645 = dma.done %s3641, 256
        $region216: #{tpu_custom_call.1} parent=211 // pred_fallthru
          _
      $region212: #{tpu_custom_call.1} parent=5 // pred_fallthru
        _
    $region6: #{tpu_custom_call.1} parent=1 // loop_footer
      %s53 = sadd.s32 1, %s49
    $region7: #{tpu_custom_call.1} parent=1 // loop_footer_branch
      %48 = sbr.rel target = $region3
    $region8: #{tpu_custom_call.1} parent=1 // loop_exit
      _
    %3646 = vsyncpa [#allocation3], 1
    %s3647 = scalar_lea.sflag [#allocation3], 1
    %3648 = vsyncpa %s3647, 1
    %3649 = vsyncpa [#allocation6], 1
    %s3650 = scalar_lea.sflag [#allocation6], 1
    %3651 = vsyncpa %s3650, 1
    %3652 = vsyncpa [#allocation9], 1
    %3653 = vsyncpa [#allocation14], 1
    %3654 = vsyncpa [#allocation17], 1
    %3655 = vsyncpa [#allocation20], 1
    %3656 = vsyncpa [#allocation23], 1
    %3657 = vsyncpa [#allocation26], 1
    %3658 = vsyncpa [#allocation29], 1
    %3659 = vsyncpa [#allocation4], 1
    %s3660 = scalar_lea.sflag [#allocation4], 1
    %3661 = vsyncpa %s3660, 1

</llo_original>
